<compile_context>
chip_gen: v5e
topology: v5e:2x2
jax: 0.10.0
libtpu: 0.0.40
codegen_flags: <defaults>
</compile_context>

<pallas_src>
import math
import functools

import jax
import jax.numpy as jnp
from jax.experimental import pallas as pl
from jax.experimental.pallas import tpu as pltpu

_LN_EPS = 1e-5


# ----------------------------------------------------------------------------
# In-kernel helpers
# ----------------------------------------------------------------------------
def _layernorm_f32(x, gamma, beta, eps):
    """LayerNorm over the last dim; statistics and affine in f32."""
    xf = x.astype(jnp.float32)
    mu = jnp.mean(xf, axis=-1, keepdims=True)
    xc = xf - mu
    var = jnp.mean(xc * xc, axis=-1, keepdims=True)
    return xc * jax.lax.rsqrt(var + eps) * gamma.astype(jnp.float32) + beta.astype(jnp.float32)


def _gelu_tanh(x):
    # TODO(synk): PyTorch nn.GELU defaults to the exact erf formulation; the
    # tanh approximation is used here (erf has no guaranteed Mosaic lowering).
    c = math.sqrt(2.0 / math.pi)
    return 0.5 * x * (1.0 + jnp.tanh(c * (x + 0.044715 * (x * x * x))))


def _mha(xn, kv, wq, wk, wv, wo3, bo, num_heads, head_dim):
    """Multi-head attention on VMEM tiles, heads batched in the MXU ops.

    `scale` is pre-folded into wq by the wrapper.  wo3 is the output projection
    pre-shaped (H, head_dim, C) in the wrapper, so the output projection is a
    single head-batched dot_general followed by one reduce over heads.
    Returns f32 (Sq, C) including the output bias.
    """
    dt = xn.dtype
    q = jnp.dot(xn, wq, preferred_element_type=jnp.float32)   # (Sq, D)
    k = jnp.dot(kv, wk, preferred_element_type=jnp.float32)   # (Skv, D)
    v = jnp.dot(kv, wv, preferred_element_type=jnp.float32)   # (Skv, D)

    def split_heads(t):  # (S, H*hd) -> (H, S, hd) via static lane slices + stack
        return jnp.stack(
            [t[:, h * head_dim:(h + 1) * head_dim] for h in range(num_heads)],
            axis=0).astype(dt)

    qh, kh, vh = split_heads(q), split_heads(k), split_heads(v)

    # Head-batched scores: (H, Sq, Skv)  ==  einsum('hqd,hkd->hqk')
    s = jax.lax.dot_general(qh, kh, (((2,), (2,)), ((0,), (0,))),
                            preferred_element_type=jnp.float32)
    s = s - jnp.max(s, axis=-1, keepdims=True)
    p = jnp.exp(s)
    p = p * (1.0 / jnp.sum(p, axis=-1, keepdims=True))   # exact normalization

    # Head-batched p@v: (H, Sq, hd)  ==  einsum('hqk,hkd->hqd')
    o = jax.lax.dot_general(p.astype(dt), vh, (((2,), (1,)), ((0,), (0,))),
                            preferred_element_type=jnp.float32)

    # Head-batched output projection + reduce over heads: (Sq, C)
    y = jax.lax.dot_general(o.astype(dt), wo3, (((2,), (1,)), ((0,), (0,))),
                            preferred_element_type=jnp.float32)
    return jnp.sum(y, axis=0) + bo.astype(jnp.float32)


# ----------------------------------------------------------------------------
# Fused whole-block kernel (one pallas_call)
# ----------------------------------------------------------------------------
def _transformer_block_kernel(
    x_ref, ctx_ref,
    g1_ref, be1_ref, wq1_ref, wk1_ref, wv1_ref, wo1_ref, bo1_ref,
    g2_ref, be2_ref, wq2_ref, wk2_ref, wv2_ref, wo2_ref, bo2_ref,
    g3_ref, be3_ref, fw1_ref, fb1_ref, fw2_ref, fb2_ref,
    o_ref, *, num_heads, head_dim, eps, cross):
    x_in = x_ref[0]                                   # (Sq, C)
    dt = x_in.dtype
    x = x_in.astype(jnp.float32)                      # residual stream kept in f32

    # --- sublayer 1: x = x + attn1(norm1(x))   (self-attention)
    xn = _layernorm_f32(x, g1_ref[...], be1_ref[...], eps).astype(dt)
    x = x + _mha(xn, xn, wq1_ref[...], wk1_ref[...], wv1_ref[...],
                 wo1_ref[...], bo1_ref[...], num_heads, head_dim)

    # --- sublayer 2: x = x + attn2(norm2(x), context)
    xn = _layernorm_f32(x, g2_ref[...], be2_ref[...], eps).astype(dt)
    kv = ctx_ref[0] if cross else xn
    x = x + _mha(xn, kv, wq2_ref[...], wk2_ref[...], wv2_ref[...],
                 wo2_ref[...], bo2_ref[...], num_heads, head_dim)

    # --- sublayer 3: x = x + ff(norm3(x))
    xn = _layernorm_f32(x, g3_ref[...], be3_ref[...], eps).astype(dt)
    h = jnp.dot(xn, fw1_ref[...], preferred_element_type=jnp.float32)
    h = _gelu_tanh(h + fb1_ref[...].astype(jnp.float32)).astype(dt)
    y = jnp.dot(h, fw2_ref[...], preferred_element_type=jnp.float32)
    x = x + y + fb2_ref[...].astype(jnp.float32)

    o_ref[0] = x.astype(o_ref.dtype)


# ----------------------------------------------------------------------------
# Wrapper
# ----------------------------------------------------------------------------
def _const_spec(shape):
    """Block index invariant over the grid -> block stays VMEM resident."""
    zeros = (0,) * len(shape)
    return pl.BlockSpec(shape, lambda b, _z=zeros: _z)


def basic_transformer_block_forward(x, context, params, num_heads):
    """x = attn1(norm1(x)) + x ; x = attn2(norm2(x), context) + x ; x = ff(norm3(x)) + x"""
    B, Sq, C = x.shape
    D = params["attn1"]["wq"].shape[1]
    hd = D // num_heads
    scale = 1.0 / math.sqrt(hd)
    dt = x.dtype

    cross = context is not None
    ctx = context.astype(dt) if cross else x          # placeholder when self-attn
    _, Skv, Cc = ctx.shape

    def norm_args(p):
        return (p["gamma"].reshape(1, C).astype(jnp.float32),
                p["beta"].reshape(1, C).astype(jnp.float32))

    def attn_args(p):
        return ((p["wq"] * scale).astype(dt),                       # fold softmax scale
                p["wk"].astype(dt),
                p["wv"].astype(dt),
                p["wo"].reshape(num_heads, hd, C).astype(dt),       # per-head (hd, C) slabs
                p["bo"].reshape(1, C).astype(jnp.float32))

    g1, be1 = norm_args(params["norm1"])
    g2, be2 = norm_args(params["norm2"])
    g3, be3 = norm_args(params["norm3"])
    wq1, wk1, wv1, wo1, bo1 = attn_args(params["attn1"])
    wq2, wk2, wv2, wo2, bo2 = attn_args(params["attn2"])

    Dh = params["ff"]["w1"].shape[1]
    fw1 = params["ff"]["w1"].astype(dt)
    fb1 = params["ff"]["b1"].reshape(1, Dh).astype(jnp.float32)
    fw2 = params["ff"]["w2"].astype(dt)
    fb2 = params["ff"]["b2"].reshape(1, C).astype(jnp.float32)

    kernel = functools.partial(_transformer_block_kernel, num_heads=num_heads,
                               head_dim=hd, eps=_LN_EPS, cross=cross)

    in_specs = [
        pl.BlockSpec((1, Sq, C), lambda b: (b, 0, 0)),
        pl.BlockSpec((1, Skv, Cc), lambda b: (b, 0, 0)),
        _const_spec((1, C)), _const_spec((1, C)),
        _const_spec((C, D)), _const_spec((C, D)), _const_spec((C, D)),
        _const_spec((num_heads, hd, C)), _const_spec((1, C)),
        _const_spec((1, C)), _const_spec((1, C)),
        _const_spec((C, D)), _const_spec((Cc, D)), _const_spec((Cc, D)),
        _const_spec((num_heads, hd, C)), _const_spec((1, C)),
        _const_spec((1, C)), _const_spec((1, C)),
        _const_spec((C, Dh)), _const_spec((1, Dh)),
        _const_spec((Dh, C)), _const_spec((1, C)),
    ]

    return pl.pallas_call(
        kernel,
        out_shape=jax.ShapeDtypeStruct((B, Sq, C), dt),
        grid_spec=pltpu.PrefetchScalarGridSpec(
            num_scalar_prefetch=0,
            grid=(B,),
            in_specs=in_specs,
            out_specs=pl.BlockSpec((1, Sq, C), lambda b: (b, 0, 0)),
        ),
        compiler_params=pltpu.CompilerParams(
            dimension_semantics=("parallel",),
            vmem_limit_bytes=48 * 1024 * 1024,
        ),
    )(x, ctx, g1, be1, wq1, wk1, wv1, wo1, bo1,
      g2, be2, wq2, wk2, wv2, wo2, bo2,
      g3, be3, fw1, fb1, fw2, fb2)


# ----------------------------------------------------------------------------
# Pure-JAX reference (for sanity check)
# ----------------------------------------------------------------------------
def reference_forward(x, context, params, num_heads, eps=_LN_EPS):
    def ln(t, p):
        mu = t.mean(-1, keepdims=True)
        var = ((t - mu) ** 2).mean(-1, keepdims=True)
        return (t - mu) / jnp.sqrt(var + eps) * p["gamma"] + p["beta"]

    def attn(q_in, kv_in, p):
        B, Sq, _ = q_in.shape
        Skv = kv_in.shape[1]
        D = p["wq"].shape[1]
        hd = D // num_heads
        scale = 1.0 / math.sqrt(hd)
        q = q_in @ p["wq"]
        k = kv_in @ p["wk"]
        v = kv_in @ p["wv"]

        def split(t, S):
            return t.reshape(B, S, num_heads, hd).transpose(0, 2, 1, 3)

        qh, kh, vh = split(q, Sq), split(k, Skv), split(v, Skv)
        s = jnp.einsum("bhqd,bhkd->bhqk", qh, kh) * scale
        pm = jax.nn.softmax(s, axis=-1)
        oh = jnp.einsum("bhqk,bhkd->bhqd", pm, vh)
        o = oh.transpose(0, 2, 1, 3).reshape(B, Sq, D)
        return o @ p["wo"] + p["bo"]

    h = ln(x, params["norm1"])
    x = attn(h, h, params["attn1"]) + x
    h = ln(x, params["norm2"])
    kv = h if context is None else context
    x = attn(h, kv, params["attn2"]) + x
    h = ln(x, params["norm3"])
    h = _gelu_tanh(h @ params["ff"]["w1"] + params["ff"]["b1"])
    x = h @ params["ff"]["w2"] + params["ff"]["b2"] + x
    return x


# ----------------------------------------------------------------------------
# Main
# ----------------------------------------------------------------------------
if __name__ == "__main__":
    batch = 2
    seq_q = 16
    seq_kv = 8
    num_channels = 32
    cross_attention_dim = 24
    num_attention_heads = 4
    num_head_channels = 8
    inner_dim = num_attention_heads * num_head_channels   # 32
    mlp_dim = num_channels * 4                             # 128

    key = jax.random.PRNGKey(0)
    keys = jax.random.split(key, 20)
    kit = iter(keys)

    def uinit(k, shape, fan_in):
        bound = 1.0 / math.sqrt(fan_in)
        return jax.random.uniform(k, shape, jnp.float32, -bound, bound)

    x = jax.random.normal(next(kit), (batch, seq_q, num_channels), jnp.float32)
    context = jax.random.normal(
        next(kit), (batch, seq_kv, cross_attention_dim), jnp.float32)

    def make_norm(k):
        kg, kb = jax.random.split(k)
        return {
            "gamma": 1.0 + 0.1 * jax.random.normal(kg, (num_channels,), jnp.float32),
            "beta": 0.1 * jax.random.normal(kb, (num_channels,), jnp.float32),
        }

    def make_attn(k1, k2, k3, k4, k5, qdim, kvdim):
        # Weights stored in (in, out) layout, i.e. transposed PyTorch Linear.
        return {
            "wq": uinit(k1, (qdim, inner_dim), qdim),
            "wk": uinit(k2, (kvdim, inner_dim), kvdim),
            "wv": uinit(k3, (kvdim, inner_dim), kvdim),
            "wo": uinit(k4, (inner_dim, qdim), inner_dim),
            "bo": uinit(k5, (qdim,), inner_dim),
        }

    params = {
        "norm1": make_norm(next(kit)),
        "attn1": make_attn(next(kit), next(kit), next(kit), next(kit), next(kit),
                           num_channels, num_channels),
        "norm2": make_norm(next(kit)),
        "attn2": make_attn(next(kit), next(kit), next(kit), next(kit), next(kit),
                           num_channels, cross_attention_dim),
        "norm3": make_norm(next(kit)),
        "ff": {
            "w1": uinit(next(kit), (num_channels, mlp_dim), num_channels),
            "b1": uinit(next(kit), (mlp_dim,), num_channels),
            "w2": uinit(next(kit), (mlp_dim, num_channels), mlp_dim),
            "b2": uinit(next(kit), (num_channels,), mlp_dim),
        },
    }

    out = basic_transformer_block_forward(x, context, params, num_attention_heads)
    out = jax.block_until_ready(out)

    ref = reference_forward(x, context, params, num_attention_heads)
    assert out.shape == (batch, seq_q, num_channels)
    # Tolerance covers MXU f32 (multi-pass bf16) rounding differences vs the
    # XLA reference; the softmax itself now uses an exact divide.
    assert jnp.allclose(out, ref, atol=1e-2, rtol=1e-2), "mismatch vs reference"

    print("KERNEL_OK")
</pallas_src>

<mosaic_0001>
module attributes {stable_mosaic.version = 11 : i64} {
  func.func @_transformer_block_kernel(%arg0: i32, %arg1: memref<1x16x32xf32, #tpu.memory_space<vmem>>, %arg2: memref<1x8x24xf32, #tpu.memory_space<vmem>>, %arg3: memref<1x32xf32, #tpu.memory_space<vmem>>, %arg4: memref<1x32xf32, #tpu.memory_space<vmem>>, %arg5: memref<32x32xf32, #tpu.memory_space<vmem>>, %arg6: memref<32x32xf32, #tpu.memory_space<vmem>>, %arg7: memref<32x32xf32, #tpu.memory_space<vmem>>, %arg8: memref<4x8x32xf32, #tpu.memory_space<vmem>>, %arg9: memref<1x32xf32, #tpu.memory_space<vmem>>, %arg10: memref<1x32xf32, #tpu.memory_space<vmem>>, %arg11: memref<1x32xf32, #tpu.memory_space<vmem>>, %arg12: memref<32x32xf32, #tpu.memory_space<vmem>>, %arg13: memref<24x32xf32, #tpu.memory_space<vmem>>, %arg14: memref<24x32xf32, #tpu.memory_space<vmem>>, %arg15: memref<4x8x32xf32, #tpu.memory_space<vmem>>, %arg16: memref<1x32xf32, #tpu.memory_space<vmem>>, %arg17: memref<1x32xf32, #tpu.memory_space<vmem>>, %arg18: memref<1x32xf32, #tpu.memory_space<vmem>>, %arg19: memref<32x128xf32, #tpu.memory_space<vmem>>, %arg20: memref<1x128xf32, #tpu.memory_space<vmem>>, %arg21: memref<128x32xf32, #tpu.memory_space<vmem>>, %arg22: memref<1x32xf32, #tpu.memory_space<vmem>>, %arg23: memref<1x16x32xf32, #tpu.memory_space<vmem>>) attributes {dimension_semantics = [#tpu.dimension_semantics<parallel>], iteration_bounds = array<i64: 2>, scalar_prefetch = 0 : i64, scratch_operands = 0 : i64, tpu.core_type = #tpu.core_type<tc>, window_params = [{transform_indices = @transform_0, window_bounds = array<i64: 1, 16, 32>}, {transform_indices = @transform_1, window_bounds = array<i64: 1, 8, 24>}, {pipeline_mode = #tpu.pipeline_mode<synchronous>, transform_indices = @transform_2, window_bounds = array<i64: 1, 32>}, {pipeline_mode = #tpu.pipeline_mode<synchronous>, transform_indices = @transform_3, window_bounds = array<i64: 1, 32>}, {pipeline_mode = #tpu.pipeline_mode<synchronous>, transform_indices = @transform_4, window_bounds = array<i64: 32, 32>}, {pipeline_mode = #tpu.pipeline_mode<synchronous>, transform_indices = @transform_5, window_bounds = array<i64: 32, 32>}, {pipeline_mode = #tpu.pipeline_mode<synchronous>, transform_indices = @transform_6, window_bounds = array<i64: 32, 32>}, {pipeline_mode = #tpu.pipeline_mode<synchronous>, transform_indices = @transform_7, window_bounds = array<i64: 4, 8, 32>}, {pipeline_mode = #tpu.pipeline_mode<synchronous>, transform_indices = @transform_8, window_bounds = array<i64: 1, 32>}, {pipeline_mode = #tpu.pipeline_mode<synchronous>, transform_indices = @transform_9, window_bounds = array<i64: 1, 32>}, {pipeline_mode = #tpu.pipeline_mode<synchronous>, transform_indices = @transform_10, window_bounds = array<i64: 1, 32>}, {pipeline_mode = #tpu.pipeline_mode<synchronous>, transform_indices = @transform_11, window_bounds = array<i64: 32, 32>}, {pipeline_mode = #tpu.pipeline_mode<synchronous>, transform_indices = @transform_12, window_bounds = array<i64: 24, 32>}, {pipeline_mode = #tpu.pipeline_mode<synchronous>, transform_indices = @transform_13, window_bounds = array<i64: 24, 32>}, {pipeline_mode = #tpu.pipeline_mode<synchronous>, transform_indices = @transform_14, window_bounds = array<i64: 4, 8, 32>}, {pipeline_mode = #tpu.pipeline_mode<synchronous>, transform_indices = @transform_15, window_bounds = array<i64: 1, 32>}, {pipeline_mode = #tpu.pipeline_mode<synchronous>, transform_indices = @transform_16, window_bounds = array<i64: 1, 32>}, {pipeline_mode = #tpu.pipeline_mode<synchronous>, transform_indices = @transform_17, window_bounds = array<i64: 1, 32>}, {pipeline_mode = #tpu.pipeline_mode<synchronous>, transform_indices = @transform_18, window_bounds = array<i64: 32, 128>}, {pipeline_mode = #tpu.pipeline_mode<synchronous>, transform_indices = @transform_19, window_bounds = array<i64: 1, 128>}, {pipeline_mode = #tpu.pipeline_mode<synchronous>, transform_indices = @transform_20, window_bounds = array<i64: 128, 32>}, {pipeline_mode = #tpu.pipeline_mode<synchronous>, transform_indices = @transform_21, window_bounds = array<i64: 1, 32>}, {transform_indices = @transform_22, window_bounds = array<i64: 1, 16, 32>}]} {
    %c0 = arith.constant 0 : index
    %c0_0 = arith.constant 0 : index
    %c0_1 = arith.constant 0 : index
    %0 = vector.load %arg1[%c0, %c0_0, %c0_1] : memref<1x16x32xf32, #tpu.memory_space<vmem>>, vector<1x16x32xf32>
    %1 = vector.shape_cast %0 : vector<1x16x32xf32> to vector<16x32xf32>
    %c0_2 = arith.constant 0 : index
    %c0_3 = arith.constant 0 : index
    %2 = vector.load %arg3[%c0_2, %c0_3] : memref<1x32xf32, #tpu.memory_space<vmem>>, vector<1x32xf32>
    %c0_4 = arith.constant 0 : index
    %c0_5 = arith.constant 0 : index
    %3 = vector.load %arg4[%c0_4, %c0_5] : memref<1x32xf32, #tpu.memory_space<vmem>>, vector<1x32xf32>
    %cst = arith.constant dense<0.000000e+00> : vector<16xf32>
    %4 = vector.multi_reduction <add>, %1, %cst [1] : vector<16x32xf32> to vector<16xf32>
    %5 = vector.shape_cast %4 : vector<16xf32> to vector<16x1xf32>
    %cst_6 = arith.constant 3.200000e+01 : f32
    %6 = vector.broadcast %cst_6 : f32 to vector<16x1xf32>
    %7 = arith.divf %5, %6 : vector<16x1xf32>
    %8 = vector.broadcast %7 : vector<16x1xf32> to vector<16x32xf32>
    %9 = arith.subf %1, %8 : vector<16x32xf32>
    %10 = arith.mulf %9, %9 : vector<16x32xf32>
    %cst_7 = arith.constant dense<0.000000e+00> : vector<16xf32>
    %11 = vector.multi_reduction <add>, %10, %cst_7 [1] : vector<16x32xf32> to vector<16xf32>
    %12 = vector.shape_cast %11 : vector<16xf32> to vector<16x1xf32>
    %cst_8 = arith.constant 3.200000e+01 : f32
    %13 = vector.broadcast %cst_8 : f32 to vector<16x1xf32>
    %14 = arith.divf %12, %13 : vector<16x1xf32>
    %cst_9 = arith.constant 9.99999974E-6 : f32
    %15 = vector.broadcast %cst_9 : f32 to vector<16x1xf32>
    %16 = arith.addf %14, %15 : vector<16x1xf32>
    %17 = math.rsqrt %16 : vector<16x1xf32>
    %18 = vector.broadcast %17 : vector<16x1xf32> to vector<16x32xf32>
    %19 = arith.mulf %9, %18 : vector<16x32xf32>
    %20 = vector.broadcast %2 : vector<1x32xf32> to vector<16x32xf32>
    %21 = arith.mulf %19, %20 : vector<16x32xf32>
    %22 = vector.broadcast %3 : vector<1x32xf32> to vector<16x32xf32>
    %23 = arith.addf %21, %22 : vector<16x32xf32>
    %c0_10 = arith.constant 0 : index
    %c0_11 = arith.constant 0 : index
    %24 = vector.load %arg5[%c0_10, %c0_11] : memref<32x32xf32, #tpu.memory_space<vmem>>, vector<32x32xf32>
    %c0_12 = arith.constant 0 : index
    %c0_13 = arith.constant 0 : index
    %25 = vector.load %arg6[%c0_12, %c0_13] : memref<32x32xf32, #tpu.memory_space<vmem>>, vector<32x32xf32>
    %c0_14 = arith.constant 0 : index
    %c0_15 = arith.constant 0 : index
    %26 = vector.load %arg7[%c0_14, %c0_15] : memref<32x32xf32, #tpu.memory_space<vmem>>, vector<32x32xf32>
    %c0_16 = arith.constant 0 : index
    %c0_17 = arith.constant 0 : index
    %c0_18 = arith.constant 0 : index
    %27 = vector.load %arg8[%c0_16, %c0_17, %c0_18] : memref<4x8x32xf32, #tpu.memory_space<vmem>>, vector<4x8x32xf32>
    %c0_19 = arith.constant 0 : index
    %c0_20 = arith.constant 0 : index
    %28 = vector.load %arg9[%c0_19, %c0_20] : memref<1x32xf32, #tpu.memory_space<vmem>>, vector<1x32xf32>
    %cst_21 = arith.constant dense<0.000000e+00> : vector<16x32xf32>
    %29 = tpu.matmul %23, %24, %cst_21 {dimension_numbers = #tpu.dot_dimension_numbers<[1], [0], [0], [1], [0, 0, 1, 1], [], []>} : vector<16x32xf32>, vector<32x32xf32>, vector<16x32xf32> -> vector<16x32xf32>
    %cst_22 = arith.constant dense<0.000000e+00> : vector<16x32xf32>
    %30 = tpu.matmul %23, %25, %cst_22 {dimension_numbers = #tpu.dot_dimension_numbers<[1], [0], [0], [1], [0, 0, 1, 1], [], []>} : vector<16x32xf32>, vector<32x32xf32>, vector<16x32xf32> -> vector<16x32xf32>
    %cst_23 = arith.constant dense<0.000000e+00> : vector<16x32xf32>
    %31 = tpu.matmul %23, %26, %cst_23 {dimension_numbers = #tpu.dot_dimension_numbers<[1], [0], [0], [1], [0, 0, 1, 1], [], []>} : vector<16x32xf32>, vector<32x32xf32>, vector<16x32xf32> -> vector<16x32xf32>
    %32 = vector.extract_strided_slice %29 {offsets = [0, 0], sizes = [16, 8], strides = [1, 1]} : vector<16x32xf32> to vector<16x8xf32>
    %33 = vector.extract_strided_slice %29 {offsets = [0, 8], sizes = [16, 8], strides = [1, 1]} : vector<16x32xf32> to vector<16x8xf32>
    %34 = vector.extract_strided_slice %29 {offsets = [0, 16], sizes = [16, 8], strides = [1, 1]} : vector<16x32xf32> to vector<16x8xf32>
    %35 = vector.extract_strided_slice %29 {offsets = [0, 24], sizes = [16, 8], strides = [1, 1]} : vector<16x32xf32> to vector<16x8xf32>
    %36 = vector.shape_cast %32 : vector<16x8xf32> to vector<1x16x8xf32>
    %37 = vector.shape_cast %33 : vector<16x8xf32> to vector<1x16x8xf32>
    %38 = vector.shape_cast %34 : vector<16x8xf32> to vector<1x16x8xf32>
    %39 = vector.shape_cast %35 : vector<16x8xf32> to vector<1x16x8xf32>
    %40 = tpu.concatenate %36, %37, %38, %39 in 0 : vector<1x16x8xf32>, vector<1x16x8xf32>, vector<1x16x8xf32>, vector<1x16x8xf32> -> vector<4x16x8xf32>
    %41 = vector.extract_strided_slice %30 {offsets = [0, 0], sizes = [16, 8], strides = [1, 1]} : vector<16x32xf32> to vector<16x8xf32>
    %42 = vector.extract_strided_slice %30 {offsets = [0, 8], sizes = [16, 8], strides = [1, 1]} : vector<16x32xf32> to vector<16x8xf32>
    %43 = vector.extract_strided_slice %30 {offsets = [0, 16], sizes = [16, 8], strides = [1, 1]} : vector<16x32xf32> to vector<16x8xf32>
    %44 = vector.extract_strided_slice %30 {offsets = [0, 24], sizes = [16, 8], strides = [1, 1]} : vector<16x32xf32> to vector<16x8xf32>
    %45 = vector.shape_cast %41 : vector<16x8xf32> to vector<1x16x8xf32>
    %46 = vector.shape_cast %42 : vector<16x8xf32> to vector<1x16x8xf32>
    %47 = vector.shape_cast %43 : vector<16x8xf32> to vector<1x16x8xf32>
    %48 = vector.shape_cast %44 : vector<16x8xf32> to vector<1x16x8xf32>
    %49 = tpu.concatenate %45, %46, %47, %48 in 0 : vector<1x16x8xf32>, vector<1x16x8xf32>, vector<1x16x8xf32>, vector<1x16x8xf32> -> vector<4x16x8xf32>
    %50 = vector.extract_strided_slice %31 {offsets = [0, 0], sizes = [16, 8], strides = [1, 1]} : vector<16x32xf32> to vector<16x8xf32>
    %51 = vector.extract_strided_slice %31 {offsets = [0, 8], sizes = [16, 8], strides = [1, 1]} : vector<16x32xf32> to vector<16x8xf32>
    %52 = vector.extract_strided_slice %31 {offsets = [0, 16], sizes = [16, 8], strides = [1, 1]} : vector<16x32xf32> to vector<16x8xf32>
    %53 = vector.extract_strided_slice %31 {offsets = [0, 24], sizes = [16, 8], strides = [1, 1]} : vector<16x32xf32> to vector<16x8xf32>
    %54 = vector.shape_cast %50 : vector<16x8xf32> to vector<1x16x8xf32>
    %55 = vector.shape_cast %51 : vector<16x8xf32> to vector<1x16x8xf32>
    %56 = vector.shape_cast %52 : vector<16x8xf32> to vector<1x16x8xf32>
    %57 = vector.shape_cast %53 : vector<16x8xf32> to vector<1x16x8xf32>
    %58 = tpu.concatenate %54, %55, %56, %57 in 0 : vector<1x16x8xf32>, vector<1x16x8xf32>, vector<1x16x8xf32>, vector<1x16x8xf32> -> vector<4x16x8xf32>
    %cst_24 = arith.constant dense<0.000000e+00> : vector<4x16x16xf32>
    %59 = tpu.matmul %40, %49, %cst_24 {dimension_numbers = #tpu.dot_dimension_numbers<[2], [2], [1], [1], [0, 0, 0, 1, 1, 1], [0], [0]>} : vector<4x16x8xf32>, vector<4x16x8xf32>, vector<4x16x16xf32> -> vector<4x16x16xf32>
    %cst_25 = arith.constant dense<0xFF800000> : vector<4x16xf32>
    %60 = vector.multi_reduction <maximumf>, %59, %cst_25 [2] : vector<4x16x16xf32> to vector<4x16xf32>
    %61 = vector.shape_cast %60 : vector<4x16xf32> to vector<4x16x1xf32>
    %62 = vector.broadcast %61 : vector<4x16x1xf32> to vector<4x16x16xf32>
    %63 = arith.subf %59, %62 : vector<4x16x16xf32>
    %64 = math.exp %63 : vector<4x16x16xf32>
    %cst_26 = arith.constant dense<0.000000e+00> : vector<4x16xf32>
    %65 = vector.multi_reduction <add>, %64, %cst_26 [2] : vector<4x16x16xf32> to vector<4x16xf32>
    %66 = vector.shape_cast %65 : vector<4x16xf32> to vector<4x16x1xf32>
    %cst_27 = arith.constant 1.000000e+00 : f32
    %67 = vector.broadcast %cst_27 : f32 to vector<4x16x1xf32>
    %68 = arith.divf %67, %66 : vector<4x16x1xf32>
    %69 = vector.broadcast %68 : vector<4x16x1xf32> to vector<4x16x16xf32>
    %70 = arith.mulf %64, %69 : vector<4x16x16xf32>
    %cst_28 = arith.constant dense<0.000000e+00> : vector<4x16x8xf32>
    %71 = tpu.matmul %70, %58, %cst_28 {dimension_numbers = #tpu.dot_dimension_numbers<[2], [1], [1], [2], [0, 0, 0, 1, 1, 2], [0], [0]>} : vector<4x16x16xf32>, vector<4x16x8xf32>, vector<4x16x8xf32> -> vector<4x16x8xf32>
    %cst_29 = arith.constant dense<0.000000e+00> : vector<4x16x32xf32>
    %72 = tpu.matmul %71, %27, %cst_29 {dimension_numbers = #tpu.dot_dimension_numbers<[2], [1], [1], [2], [0, 0, 0, 1, 1, 2], [0], [0]>} : vector<4x16x8xf32>, vector<4x8x32xf32>, vector<4x16x32xf32> -> vector<4x16x32xf32>
    %cst_30 = arith.constant dense<0.000000e+00> : vector<16x32xf32>
    %73 = vector.multi_reduction <add>, %72, %cst_30 [0] : vector<4x16x32xf32> to vector<16x32xf32>
    %74 = vector.broadcast %28 : vector<1x32xf32> to vector<16x32xf32>
    %75 = arith.addf %73, %74 : vector<16x32xf32>
    %76 = arith.addf %1, %75 : vector<16x32xf32>
    %c0_31 = arith.constant 0 : index
    %c0_32 = arith.constant 0 : index
    %77 = vector.load %arg10[%c0_31, %c0_32] : memref<1x32xf32, #tpu.memory_space<vmem>>, vector<1x32xf32>
    %c0_33 = arith.constant 0 : index
    %c0_34 = arith.constant 0 : index
    %78 = vector.load %arg11[%c0_33, %c0_34] : memref<1x32xf32, #tpu.memory_space<vmem>>, vector<1x32xf32>
    %cst_35 = arith.constant dense<0.000000e+00> : vector<16xf32>
    %79 = vector.multi_reduction <add>, %76, %cst_35 [1] : vector<16x32xf32> to vector<16xf32>
    %80 = vector.shape_cast %79 : vector<16xf32> to vector<16x1xf32>
    %cst_36 = arith.constant 3.200000e+01 : f32
    %81 = vector.broadcast %cst_36 : f32 to vector<16x1xf32>
    %82 = arith.divf %80, %81 : vector<16x1xf32>
    %83 = vector.broadcast %82 : vector<16x1xf32> to vector<16x32xf32>
    %84 = arith.subf %76, %83 : vector<16x32xf32>
    %85 = arith.mulf %84, %84 : vector<16x32xf32>
    %cst_37 = arith.constant dense<0.000000e+00> : vector<16xf32>
    %86 = vector.multi_reduction <add>, %85, %cst_37 [1] : vector<16x32xf32> to vector<16xf32>
    %87 = vector.shape_cast %86 : vector<16xf32> to vector<16x1xf32>
    %cst_38 = arith.constant 3.200000e+01 : f32
    %88 = vector.broadcast %cst_38 : f32 to vector<16x1xf32>
    %89 = arith.divf %87, %88 : vector<16x1xf32>
    %cst_39 = arith.constant 9.99999974E-6 : f32
    %90 = vector.broadcast %cst_39 : f32 to vector<16x1xf32>
    %91 = arith.addf %89, %90 : vector<16x1xf32>
    %92 = math.rsqrt %91 : vector<16x1xf32>
    %93 = vector.broadcast %92 : vector<16x1xf32> to vector<16x32xf32>
    %94 = arith.mulf %84, %93 : vector<16x32xf32>
    %95 = vector.broadcast %77 : vector<1x32xf32> to vector<16x32xf32>
    %96 = arith.mulf %94, %95 : vector<16x32xf32>
    %97 = vector.broadcast %78 : vector<1x32xf32> to vector<16x32xf32>
    %98 = arith.addf %96, %97 : vector<16x32xf32>
    %c0_40 = arith.constant 0 : index
    %c0_41 = arith.constant 0 : index
    %c0_42 = arith.constant 0 : index
    %99 = vector.load %arg2[%c0_40, %c0_41, %c0_42] : memref<1x8x24xf32, #tpu.memory_space<vmem>>, vector<1x8x24xf32>
    %100 = vector.shape_cast %99 : vector<1x8x24xf32> to vector<8x24xf32>
    %c0_43 = arith.constant 0 : index
    %c0_44 = arith.constant 0 : index
    %101 = vector.load %arg12[%c0_43, %c0_44] : memref<32x32xf32, #tpu.memory_space<vmem>>, vector<32x32xf32>
    %c0_45 = arith.constant 0 : index
    %c0_46 = arith.constant 0 : index
    %102 = vector.load %arg13[%c0_45, %c0_46] : memref<24x32xf32, #tpu.memory_space<vmem>>, vector<24x32xf32>
    %c0_47 = arith.constant 0 : index
    %c0_48 = arith.constant 0 : index
    %103 = vector.load %arg14[%c0_47, %c0_48] : memref<24x32xf32, #tpu.memory_space<vmem>>, vector<24x32xf32>
    %c0_49 = arith.constant 0 : index
    %c0_50 = arith.constant 0 : index
    %c0_51 = arith.constant 0 : index
    %104 = vector.load %arg15[%c0_49, %c0_50, %c0_51] : memref<4x8x32xf32, #tpu.memory_space<vmem>>, vector<4x8x32xf32>
    %c0_52 = arith.constant 0 : index
    %c0_53 = arith.constant 0 : index
    %105 = vector.load %arg16[%c0_52, %c0_53] : memref<1x32xf32, #tpu.memory_space<vmem>>, vector<1x32xf32>
    %cst_54 = arith.constant dense<0.000000e+00> : vector<16x32xf32>
    %106 = tpu.matmul %98, %101, %cst_54 {dimension_numbers = #tpu.dot_dimension_numbers<[1], [0], [0], [1], [0, 0, 1, 1], [], []>} : vector<16x32xf32>, vector<32x32xf32>, vector<16x32xf32> -> vector<16x32xf32>
    %cst_55 = arith.constant dense<0.000000e+00> : vector<8x32xf32>
    %107 = tpu.matmul %100, %102, %cst_55 {dimension_numbers = #tpu.dot_dimension_numbers<[1], [0], [0], [1], [0, 0, 1, 1], [], []>} : vector<8x24xf32>, vector<24x32xf32>, vector<8x32xf32> -> vector<8x32xf32>
    %cst_56 = arith.constant dense<0.000000e+00> : vector<8x32xf32>
    %108 = tpu.matmul %100, %103, %cst_56 {dimension_numbers = #tpu.dot_dimension_numbers<[1], [0], [0], [1], [0, 0, 1, 1], [], []>} : vector<8x24xf32>, vector<24x32xf32>, vector<8x32xf32> -> vector<8x32xf32>
    %109 = vector.extract_strided_slice %106 {offsets = [0, 0], sizes = [16, 8], strides = [1, 1]} : vector<16x32xf32> to vector<16x8xf32>
    %110 = vector.extract_strided_slice %106 {offsets = [0, 8], sizes = [16, 8], strides = [1, 1]} : vector<16x32xf32> to vector<16x8xf32>
    %111 = vector.extract_strided_slice %106 {offsets = [0, 16], sizes = [16, 8], strides = [1, 1]} : vector<16x32xf32> to vector<16x8xf32>
    %112 = vector.extract_strided_slice %106 {offsets = [0, 24], sizes = [16, 8], strides = [1, 1]} : vector<16x32xf32> to vector<16x8xf32>
    %113 = vector.shape_cast %109 : vector<16x8xf32> to vector<1x16x8xf32>
    %114 = vector.shape_cast %110 : vector<16x8xf32> to vector<1x16x8xf32>
    %115 = vector.shape_cast %111 : vector<16x8xf32> to vector<1x16x8xf32>
    %116 = vector.shape_cast %112 : vector<16x8xf32> to vector<1x16x8xf32>
    %117 = tpu.concatenate %113, %114, %115, %116 in 0 : vector<1x16x8xf32>, vector<1x16x8xf32>, vector<1x16x8xf32>, vector<1x16x8xf32> -> vector<4x16x8xf32>
    %118 = vector.extract_strided_slice %107 {offsets = [0, 0], sizes = [8, 8], strides = [1, 1]} : vector<8x32xf32> to vector<8x8xf32>
    %119 = vector.extract_strided_slice %107 {offsets = [0, 8], sizes = [8, 8], strides = [1, 1]} : vector<8x32xf32> to vector<8x8xf32>
    %120 = vector.extract_strided_slice %107 {offsets = [0, 16], sizes = [8, 8], strides = [1, 1]} : vector<8x32xf32> to vector<8x8xf32>
    %121 = vector.extract_strided_slice %107 {offsets = [0, 24], sizes = [8, 8], strides = [1, 1]} : vector<8x32xf32> to vector<8x8xf32>
    %122 = vector.shape_cast %118 : vector<8x8xf32> to vector<1x8x8xf32>
    %123 = vector.shape_cast %119 : vector<8x8xf32> to vector<1x8x8xf32>
    %124 = vector.shape_cast %120 : vector<8x8xf32> to vector<1x8x8xf32>
    %125 = vector.shape_cast %121 : vector<8x8xf32> to vector<1x8x8xf32>
    %126 = tpu.concatenate %122, %123, %124, %125 in 0 : vector<1x8x8xf32>, vector<1x8x8xf32>, vector<1x8x8xf32>, vector<1x8x8xf32> -> vector<4x8x8xf32>
    %127 = vector.extract_strided_slice %108 {offsets = [0, 0], sizes = [8, 8], strides = [1, 1]} : vector<8x32xf32> to vector<8x8xf32>
    %128 = vector.extract_strided_slice %108 {offsets = [0, 8], sizes = [8, 8], strides = [1, 1]} : vector<8x32xf32> to vector<8x8xf32>
    %129 = vector.extract_strided_slice %108 {offsets = [0, 16], sizes = [8, 8], strides = [1, 1]} : vector<8x32xf32> to vector<8x8xf32>
    %130 = vector.extract_strided_slice %108 {offsets = [0, 24], sizes = [8, 8], strides = [1, 1]} : vector<8x32xf32> to vector<8x8xf32>
    %131 = vector.shape_cast %127 : vector<8x8xf32> to vector<1x8x8xf32>
    %132 = vector.shape_cast %128 : vector<8x8xf32> to vector<1x8x8xf32>
    %133 = vector.shape_cast %129 : vector<8x8xf32> to vector<1x8x8xf32>
    %134 = vector.shape_cast %130 : vector<8x8xf32> to vector<1x8x8xf32>
    %135 = tpu.concatenate %131, %132, %133, %134 in 0 : vector<1x8x8xf32>, vector<1x8x8xf32>, vector<1x8x8xf32>, vector<1x8x8xf32> -> vector<4x8x8xf32>
    %cst_57 = arith.constant dense<0.000000e+00> : vector<4x16x8xf32>
    %136 = tpu.matmul %117, %126, %cst_57 {dimension_numbers = #tpu.dot_dimension_numbers<[2], [2], [1], [1], [0, 0, 0, 1, 1, 1], [0], [0]>} : vector<4x16x8xf32>, vector<4x8x8xf32>, vector<4x16x8xf32> -> vector<4x16x8xf32>
    %cst_58 = arith.constant dense<0xFF800000> : vector<4x16xf32>
    %137 = vector.multi_reduction <maximumf>, %136, %cst_58 [2] : vector<4x16x8xf32> to vector<4x16xf32>
    %138 = vector.shape_cast %137 : vector<4x16xf32> to vector<4x16x1xf32>
    %139 = vector.broadcast %138 : vector<4x16x1xf32> to vector<4x16x8xf32>
    %140 = arith.subf %136, %139 : vector<4x16x8xf32>
    %141 = math.exp %140 : vector<4x16x8xf32>
    %cst_59 = arith.constant dense<0.000000e+00> : vector<4x16xf32>
    %142 = vector.multi_reduction <add>, %141, %cst_59 [2] : vector<4x16x8xf32> to vector<4x16xf32>
    %143 = vector.shape_cast %142 : vector<4x16xf32> to vector<4x16x1xf32>
    %cst_60 = arith.constant 1.000000e+00 : f32
    %144 = vector.broadcast %cst_60 : f32 to vector<4x16x1xf32>
    %145 = arith.divf %144, %143 : vector<4x16x1xf32>
    %146 = vector.broadcast %145 : vector<4x16x1xf32> to vector<4x16x8xf32>
    %147 = arith.mulf %141, %146 : vector<4x16x8xf32>
    %cst_61 = arith.constant dense<0.000000e+00> : vector<4x16x8xf32>
    %148 = tpu.matmul %147, %135, %cst_61 {dimension_numbers = #tpu.dot_dimension_numbers<[2], [1], [1], [2], [0, 0, 0, 1, 1, 2], [0], [0]>} : vector<4x16x8xf32>, vector<4x8x8xf32>, vector<4x16x8xf32> -> vector<4x16x8xf32>
    %cst_62 = arith.constant dense<0.000000e+00> : vector<4x16x32xf32>
    %149 = tpu.matmul %148, %104, %cst_62 {dimension_numbers = #tpu.dot_dimension_numbers<[2], [1], [1], [2], [0, 0, 0, 1, 1, 2], [0], [0]>} : vector<4x16x8xf32>, vector<4x8x32xf32>, vector<4x16x32xf32> -> vector<4x16x32xf32>
    %cst_63 = arith.constant dense<0.000000e+00> : vector<16x32xf32>
    %150 = vector.multi_reduction <add>, %149, %cst_63 [0] : vector<4x16x32xf32> to vector<16x32xf32>
    %151 = vector.broadcast %105 : vector<1x32xf32> to vector<16x32xf32>
    %152 = arith.addf %150, %151 : vector<16x32xf32>
    %153 = arith.addf %76, %152 : vector<16x32xf32>
    %c0_64 = arith.constant 0 : index
    %c0_65 = arith.constant 0 : index
    %154 = vector.load %arg17[%c0_64, %c0_65] : memref<1x32xf32, #tpu.memory_space<vmem>>, vector<1x32xf32>
    %c0_66 = arith.constant 0 : index
    %c0_67 = arith.constant 0 : index
    %155 = vector.load %arg18[%c0_66, %c0_67] : memref<1x32xf32, #tpu.memory_space<vmem>>, vector<1x32xf32>
    %cst_68 = arith.constant dense<0.000000e+00> : vector<16xf32>
    %156 = vector.multi_reduction <add>, %153, %cst_68 [1] : vector<16x32xf32> to vector<16xf32>
    %157 = vector.shape_cast %156 : vector<16xf32> to vector<16x1xf32>
    %cst_69 = arith.constant 3.200000e+01 : f32
    %158 = vector.broadcast %cst_69 : f32 to vector<16x1xf32>
    %159 = arith.divf %157, %158 : vector<16x1xf32>
    %160 = vector.broadcast %159 : vector<16x1xf32> to vector<16x32xf32>
    %161 = arith.subf %153, %160 : vector<16x32xf32>
    %162 = arith.mulf %161, %161 : vector<16x32xf32>
    %cst_70 = arith.constant dense<0.000000e+00> : vector<16xf32>
    %163 = vector.multi_reduction <add>, %162, %cst_70 [1] : vector<16x32xf32> to vector<16xf32>
    %164 = vector.shape_cast %163 : vector<16xf32> to vector<16x1xf32>
    %cst_71 = arith.constant 3.200000e+01 : f32
    %165 = vector.broadcast %cst_71 : f32 to vector<16x1xf32>
    %166 = arith.divf %164, %165 : vector<16x1xf32>
    %cst_72 = arith.constant 9.99999974E-6 : f32
    %167 = vector.broadcast %cst_72 : f32 to vector<16x1xf32>
    %168 = arith.addf %166, %167 : vector<16x1xf32>
    %169 = math.rsqrt %168 : vector<16x1xf32>
    %170 = vector.broadcast %169 : vector<16x1xf32> to vector<16x32xf32>
    %171 = arith.mulf %161, %170 : vector<16x32xf32>
    %172 = vector.broadcast %154 : vector<1x32xf32> to vector<16x32xf32>
    %173 = arith.mulf %171, %172 : vector<16x32xf32>
    %174 = vector.broadcast %155 : vector<1x32xf32> to vector<16x32xf32>
    %175 = arith.addf %173, %174 : vector<16x32xf32>
    %c0_73 = arith.constant 0 : index
    %c0_74 = arith.constant 0 : index
    %176 = vector.load %arg19[%c0_73, %c0_74] : memref<32x128xf32, #tpu.memory_space<vmem>>, vector<32x128xf32>
    %cst_75 = arith.constant dense<0.000000e+00> : vector<16x128xf32>
    %177 = tpu.matmul %175, %176, %cst_75 {dimension_numbers = #tpu.dot_dimension_numbers<[1], [0], [0], [1], [0, 0, 1, 1], [], []>} : vector<16x32xf32>, vector<32x128xf32>, vector<16x128xf32> -> vector<16x128xf32>
    %c0_76 = arith.constant 0 : index
    %c0_77 = arith.constant 0 : index
    %178 = vector.load %arg20[%c0_76, %c0_77] : memref<1x128xf32, #tpu.memory_space<vmem>>, vector<1x128xf32>
    %179 = vector.broadcast %178 : vector<1x128xf32> to vector<16x128xf32>
    %180 = arith.addf %177, %179 : vector<16x128xf32>
    %cst_78 = arith.constant 5.000000e-01 : f32
    %181 = vector.broadcast %cst_78 : f32 to vector<16x128xf32>
    %182 = arith.mulf %181, %180 : vector<16x128xf32>
    %183 = arith.mulf %180, %180 : vector<16x128xf32>
    %184 = arith.mulf %183, %180 : vector<16x128xf32>
    %cst_79 = arith.constant 4.471500e-02 : f32
    %185 = vector.broadcast %cst_79 : f32 to vector<16x128xf32>
    %186 = arith.mulf %185, %184 : vector<16x128xf32>
    %187 = arith.addf %180, %186 : vector<16x128xf32>
    %cst_80 = arith.constant 0.797884583 : f32
    %188 = vector.broadcast %cst_80 : f32 to vector<16x128xf32>
    %189 = arith.mulf %188, %187 : vector<16x128xf32>
    %190 = math.tanh %189 : vector<16x128xf32>
    %cst_81 = arith.constant 1.000000e+00 : f32
    %191 = vector.broadcast %cst_81 : f32 to vector<16x128xf32>
    %192 = arith.addf %191, %190 : vector<16x128xf32>
    %193 = arith.mulf %182, %192 : vector<16x128xf32>
    %c0_82 = arith.constant 0 : index
    %c0_83 = arith.constant 0 : index
    %194 = vector.load %arg21[%c0_82, %c0_83] : memref<128x32xf32, #tpu.memory_space<vmem>>, vector<128x32xf32>
    %cst_84 = arith.constant dense<0.000000e+00> : vector<16x32xf32>
    %195 = tpu.matmul %193, %194, %cst_84 {dimension_numbers = #tpu.dot_dimension_numbers<[1], [0], [0], [1], [0, 0, 1, 1], [], []>} : vector<16x128xf32>, vector<128x32xf32>, vector<16x32xf32> -> vector<16x32xf32>
    %196 = arith.addf %153, %195 : vector<16x32xf32>
    %c0_85 = arith.constant 0 : index
    %c0_86 = arith.constant 0 : index
    %197 = vector.load %arg22[%c0_85, %c0_86] : memref<1x32xf32, #tpu.memory_space<vmem>>, vector<1x32xf32>
    %198 = vector.broadcast %197 : vector<1x32xf32> to vector<16x32xf32>
    %199 = arith.addf %196, %198 : vector<16x32xf32>
    %c0_87 = arith.constant 0 : index
    %c0_88 = arith.constant 0 : index
    %c0_89 = arith.constant 0 : index
    %200 = vector.load %arg23[%c0_87, %c0_88, %c0_89] : memref<1x16x32xf32, #tpu.memory_space<vmem>>, vector<1x16x32xf32>
    %201 = vector.shape_cast %200 : vector<1x16x32xf32> to vector<16x32xf32>
    %202 = vector.shape_cast %199 : vector<16x32xf32> to vector<1x16x32xf32>
    tpu.vector_store %arg23[%c0_87, %c0_88, %c0_89], %202 {strides = array<i32>} : memref<1x16x32xf32, #tpu.memory_space<vmem>>, vector<1x16x32xf32>,
    return
  }
  func.func @transform_0(%arg0: i32) -> (i32, i32, i32) {
    %c0_i32 = arith.constant 0 : i32
    %c0_i32_0 = arith.constant 0 : i32
    %c0_i32_1 = arith.constant 0 : i32
    return %arg0, %c0_i32, %c0_i32_0 : i32, i32, i32
  }
  func.func @transform_1(%arg0: i32) -> (i32, i32, i32) {
    %c0_i32 = arith.constant 0 : i32
    %c0_i32_0 = arith.constant 0 : i32
    %c0_i32_1 = arith.constant 0 : i32
    return %arg0, %c0_i32, %c0_i32_0 : i32, i32, i32
  }
  func.func @transform_2(%arg0: i32) -> (i32, i32) {
    %c0_i32 = arith.constant 0 : i32
    %c0_i32_0 = arith.constant 0 : i32
    %c0_i32_1 = arith.constant 0 : i32
    return %c0_i32, %c0_i32_0 : i32, i32
  }
  func.func @transform_3(%arg0: i32) -> (i32, i32) {
    %c0_i32 = arith.constant 0 : i32
    %c0_i32_0 = arith.constant 0 : i32
    %c0_i32_1 = arith.constant 0 : i32
    return %c0_i32, %c0_i32_0 : i32, i32
  }
  func.func @transform_4(%arg0: i32) -> (i32, i32) {
    %c0_i32 = arith.constant 0 : i32
    %c0_i32_0 = arith.constant 0 : i32
    %c0_i32_1 = arith.constant 0 : i32
    return %c0_i32, %c0_i32_0 : i32, i32
  }
  func.func @transform_5(%arg0: i32) -> (i32, i32) {
    %c0_i32 = arith.constant 0 : i32
    %c0_i32_0 = arith.constant 0 : i32
    %c0_i32_1 = arith.constant 0 : i32
    return %c0_i32, %c0_i32_0 : i32, i32
  }
  func.func @transform_6(%arg0: i32) -> (i32, i32) {
    %c0_i32 = arith.constant 0 : i32
    %c0_i32_0 = arith.constant 0 : i32
    %c0_i32_1 = arith.constant 0 : i32
    return %c0_i32, %c0_i32_0 : i32, i32
  }
  func.func @transform_7(%arg0: i32) -> (i32, i32, i32) {
    %c0_i32 = arith.constant 0 : i32
    %c0_i32_0 = arith.constant 0 : i32
    %c0_i32_1 = arith.constant 0 : i32
    %c0_i32_2 = arith.constant 0 : i32
    return %c0_i32, %c0_i32_0, %c0_i32_1 : i32, i32, i32
  }
  func.func @transform_8(%arg0: i32) -> (i32, i32) {
    %c0_i32 = arith.constant 0 : i32
    %c0_i32_0 = arith.constant 0 : i32
    %c0_i32_1 = arith.constant 0 : i32
    return %c0_i32, %c0_i32_0 : i32, i32
  }
  func.func @transform_9(%arg0: i32) -> (i32, i32) {
    %c0_i32 = arith.constant 0 : i32
    %c0_i32_0 = arith.constant 0 : i32
    %c0_i32_1 = arith.constant 0 : i32
    return %c0_i32, %c0_i32_0 : i32, i32
  }
  func.func @transform_10(%arg0: i32) -> (i32, i32) {
    %c0_i32 = arith.constant 0 : i32
    %c0_i32_0 = arith.constant 0 : i32
    %c0_i32_1 = arith.constant 0 : i32
    return %c0_i32, %c0_i32_0 : i32, i32
  }
  func.func @transform_11(%arg0: i32) -> (i32, i32) {
    %c0_i32 = arith.constant 0 : i32
    %c0_i32_0 = arith.constant 0 : i32
    %c0_i32_1 = arith.constant 0 : i32
    return %c0_i32, %c0_i32_0 : i32, i32
  }
  func.func @transform_12(%arg0: i32) -> (i32, i32) {
    %c0_i32 = arith.constant 0 : i32
    %c0_i32_0 = arith.constant 0 : i32
    %c0_i32_1 = arith.constant 0 : i32
    return %c0_i32, %c0_i32_0 : i32, i32
  }
  func.func @transform_13(%arg0: i32) -> (i32, i32) {
    %c0_i32 = arith.constant 0 : i32
    %c0_i32_0 = arith.constant 0 : i32
    %c0_i32_1 = arith.constant 0 : i32
    return %c0_i32, %c0_i32_0 : i32, i32
  }
  func.func @transform_14(%arg0: i32) -> (i32, i32, i32) {
    %c0_i32 = arith.constant 0 : i32
    %c0_i32_0 = arith.constant 0 : i32
    %c0_i32_1 = arith.constant 0 : i32
    %c0_i32_2 = arith.constant 0 : i32
    return %c0_i32, %c0_i32_0, %c0_i32_1 : i32, i32, i32
  }
  func.func @transform_15(%arg0: i32) -> (i32, i32) {
    %c0_i32 = arith.constant 0 : i32
    %c0_i32_0 = arith.constant 0 : i32
    %c0_i32_1 = arith.constant 0 : i32
    return %c0_i32, %c0_i32_0 : i32, i32
  }
  func.func @transform_16(%arg0: i32) -> (i32, i32) {
    %c0_i32 = arith.constant 0 : i32
    %c0_i32_0 = arith.constant 0 : i32
    %c0_i32_1 = arith.constant 0 : i32
    return %c0_i32, %c0_i32_0 : i32, i32
  }
  func.func @transform_17(%arg0: i32) -> (i32, i32) {
    %c0_i32 = arith.constant 0 : i32
    %c0_i32_0 = arith.constant 0 : i32
    %c0_i32_1 = arith.constant 0 : i32
    return %c0_i32, %c0_i32_0 : i32, i32
  }
  func.func @transform_18(%arg0: i32) -> (i32, i32) {
    %c0_i32 = arith.constant 0 : i32
    %c0_i32_0 = arith.constant 0 : i32
    %c0_i32_1 = arith.constant 0 : i32
    return %c0_i32, %c0_i32_0 : i32, i32
  }
  func.func @transform_19(%arg0: i32) -> (i32, i32) {
    %c0_i32 = arith.constant 0 : i32
    %c0_i32_0 = arith.constant 0 : i32
    %c0_i32_1 = arith.constant 0 : i32
    return %c0_i32, %c0_i32_0 : i32, i32
  }
  func.func @transform_20(%arg0: i32) -> (i32, i32) {
    %c0_i32 = arith.constant 0 : i32
    %c0_i32_0 = arith.constant 0 : i32
    %c0_i32_1 = arith.constant 0 : i32
    return %c0_i32, %c0_i32_0 : i32, i32
  }
  func.func @transform_21(%arg0: i32) -> (i32, i32) {
    %c0_i32 = arith.constant 0 : i32
    %c0_i32_0 = arith.constant 0 : i32
    %c0_i32_1 = arith.constant 0 : i32
    return %c0_i32, %c0_i32_0 : i32, i32
  }
  func.func @transform_22(%arg0: i32) -> (i32, i32, i32) {
    %c0_i32 = arith.constant 0 : i32
    %c0_i32_0 = arith.constant 0 : i32
    %c0_i32_1 = arith.constant 0 : i32
    return %arg0, %c0_i32, %c0_i32_0 : i32, i32, i32
  }
}

</mosaic_0001>

<llo_original>
// kernel: tpu_custom_call.1
$region0: #{tpu_custom_call.1}
  #allocation0 [shape = 'u32[]', space=smem, size = 0x4, offset = 0x4, fixed_abs, tag = 'smem constant byte address 0x4 - core index']
  #allocation1 [shape = 'u32[72,128]{1,0:T(1,128)}', space=vmem, size = 0x9000, scoped, tag = 'internal scratch']
  %s0 = inlined_call_operand.vmem [shape: f32[2,16,32], index: 0, kind: input, shape index: {}]
  %s1 = inlined_call_operand.hbm [shape: f32[2,8,24], index: 1, kind: input, shape index: {}]
  %s2 = inlined_call_operand.vmem [shape: f32[1,32], index: 2, kind: input, shape index: {}]
  %s3 = inlined_call_operand.hbm [shape: f32[1,32], index: 3, kind: input, shape index: {}]
  %s4 = inlined_call_operand.vmem [shape: f32[32,32], index: 4, kind: input, shape index: {}]
  %s5 = inlined_call_operand.vmem [shape: f32[32,32], index: 5, kind: input, shape index: {}]
  %s6 = inlined_call_operand.vmem [shape: f32[32,32], index: 6, kind: input, shape index: {}]
  %s7 = inlined_call_operand.vmem [shape: f32[4,8,32], index: 7, kind: input, shape index: {}]
  %s8 = inlined_call_operand.vmem [shape: f32[1,32], index: 8, kind: input, shape index: {}]
  %s9 = inlined_call_operand.vmem [shape: f32[1,32], index: 9, kind: input, shape index: {}]
  %s10 = inlined_call_operand.vmem [shape: f32[1,32], index: 10, kind: input, shape index: {}]
  %s11 = inlined_call_operand.hbm [shape: f32[32,32], index: 11, kind: input, shape index: {}]
  %s12 = inlined_call_operand.hbm [shape: f32[24,32], index: 12, kind: input, shape index: {}]
  %s13 = inlined_call_operand.hbm [shape: f32[24,32], index: 13, kind: input, shape index: {}]
  %s14 = inlined_call_operand.hbm [shape: f32[4,8,32], index: 14, kind: input, shape index: {}]
  %s15 = inlined_call_operand.vmem [shape: f32[1,32], index: 15, kind: input, shape index: {}]
  %s16 = inlined_call_operand.vmem [shape: f32[1,32], index: 16, kind: input, shape index: {}]
  %s17 = inlined_call_operand.vmem [shape: f32[1,32], index: 17, kind: input, shape index: {}]
  %s18 = inlined_call_operand.hbm [shape: f32[32,128], index: 18, kind: input, shape index: {}]
  %s19 = inlined_call_operand.vmem [shape: f32[1,128], index: 19, kind: input, shape index: {}]
  %s20 = inlined_call_operand.vmem [shape: f32[128,32], index: 20, kind: input, shape index: {}]
  %s21 = inlined_call_operand.vmem [shape: f32[1,32], index: 21, kind: input, shape index: {}]
  %s22 = inlined_call_operand.hbm [shape: f32[2,16,32], index: 22, kind: output, shape index: {}]
  %s23 = sld [smem:[#allocation0]]
  $region149: #{tpu_custom_call.1} parent=0
    _
  %s25 = ssub.s32 1, %s23
  %s26 = scalar_select 0, %s25, %s23
  $region1: #{tpu_custom_call.1} parent=0
    #allocation2 [shape = 'u8[8192]{0}', space=vmem, size = 0x2000, scoped, tag = 'input window, operand 1']
    #allocation3 [shape = 's32[2]{0}', space=sflag, size = 0x8, scoped, tag = 'scoped memory for tpu_custom_call.1']
    #allocation4 [shape = 's32[2]{0}', space=sflag, size = 0x8, scoped, tag = 'scoped memory for tpu_custom_call.1']
    #allocation5 [shape = 'u8[512]{0}', space=vmem, size = 0x400, scoped, tag = 'input window, operand 3, single buffered']
    #allocation6 [shape = 's32[1]{0}', space=sflag, size = 0x4, scoped, tag = 'scoped memory for tpu_custom_call.1']
    #allocation7 [shape = 'u8[16384]{0}', space=vmem, size = 0x4000, scoped, tag = 'input window, operand 11, single buffered']
    #allocation8 [shape = 'u8[12288]{0}', space=vmem, size = 0x3000, scoped, tag = 'input window, operand 12, single buffered']
    #allocation9 [shape = 's32[1]{0}', space=sflag, size = 0x4, scoped, tag = 'scoped memory for tpu_custom_call.1']
    #allocation10 [shape = 'u8[12288]{0}', space=vmem, size = 0x3000, scoped, tag = 'input window, operand 13, single buffered']
    #allocation11 [shape = 'u8[16384]{0}', space=vmem, size = 0x4000, scoped, tag = 'input window, operand 14, single buffered']
    #allocation12 [shape = 's32[1]{0}', space=sflag, size = 0x4, scoped, tag = 'scoped memory for tpu_custom_call.1']
    #allocation13 [shape = 'u8[16384]{0}', space=vmem, size = 0x4000, scoped, tag = 'input window, operand 18, single buffered']
    #allocation14 [shape = 'u8[16384]{0}', space=vmem, size = 0x4000, scoped, tag = 'output window, operand 0']
    %27 = vsyncpa [#allocation3], 0
    %s28 = scalar_lea.sflag [#allocation3], 1
    %29 = vsyncpa %s28, 0
    %30 = vsyncpa [#allocation6], 0
    %31 = vsyncpa [#allocation9], 0
    %32 = vsyncpa [#allocation12], 0
    %33 = vsyncpa [#allocation4], 0
    %s34 = scalar_lea.sflag [#allocation4], 1
    %35 = vsyncpa %s34, 0
    loop: start=0, step=1, limit=4
    $region2: #{tpu_custom_call.1} parent=1 // loop_pre_header
      _
    $region3: #{tpu_custom_call.1} parent=1 // loop_header
      %s37 = sphi 0, %s41
      %p38 = scmp.ge.s32.totalorder %s37, 4
      %s47 = sphi 0, %s49
      %s50 = sphi 0, %s47
      %s51 = sphi 0, %s50
      %s67 = sphi 0, %s51
      %s73 = sphi 0, %s75
      %s76 = sphi 0, %s73
      %s77 = sphi 0, %s76
      %s93 = sphi 0, %s77
      %s97 = sphi 0, %s97
      %s99 = sphi 0, %s97
      %s100 = sphi 0, %s99
      %s114 = sphi 0, %s100
      %s118 = sphi 0, %s118
      %s120 = sphi 0, %s118
      %s121 = sphi 0, %s120
      %s135 = sphi 0, %s121
      %s139 = sphi 0, %s139
      %s141 = sphi 0, %s139
      %s142 = sphi 0, %s141
      %s156 = sphi 0, %s142
      %s160 = sphi 0, %s160
      %s162 = sphi 0, %s160
      %s163 = sphi 0, %s162
      %s177 = sphi 0, %s163
      %s181 = sphi 0, %s181
      %s183 = sphi 0, %s181
      %s184 = sphi 0, %s183
      %s198 = sphi 0, %s184
      %s202 = sphi 0, %s202
      %s204 = sphi 0, %s202
      %s205 = sphi 0, %s204
      %s219 = sphi 0, %s205
      %s223 = sphi 0, %s223
      %s225 = sphi 0, %s223
      %s226 = sphi 0, %s225
      %s240 = sphi 0, %s226
      %s244 = sphi 0, %s244
      %s246 = sphi 0, %s244
      %s247 = sphi 0, %s246
      %s261 = sphi 0, %s247
      %s265 = sphi 0, %s265
      %s267 = sphi 0, %s265
      %s268 = sphi 0, %s267
      %s282 = sphi 0, %s268
      %s286 = sphi 0, %s286
      %s288 = sphi 0, %s286
      %s289 = sphi 0, %s288
      %s303 = sphi 0, %s289
      %s307 = sphi 0, %s307
      %s309 = sphi 0, %s307
      %s310 = sphi 0, %s309
      %s324 = sphi 0, %s310
      %s328 = sphi 0, %s328
      %s330 = sphi 0, %s328
      %s331 = sphi 0, %s330
      %s345 = sphi 0, %s331
      %s349 = sphi 0, %s349
      %s351 = sphi 0, %s349
      %s352 = sphi 0, %s351
      %s366 = sphi 0, %s352
      %s370 = sphi 0, %s370
      %s372 = sphi 0, %s370
      %s373 = sphi 0, %s372
      %s387 = sphi 0, %s373
      %s391 = sphi 0, %s391
      %s393 = sphi 0, %s391
      %s394 = sphi 0, %s393
      %s408 = sphi 0, %s394
      %s412 = sphi 0, %s412
      %s414 = sphi 0, %s412
      %s415 = sphi 0, %s414
      %s429 = sphi 0, %s415
      %s433 = sphi 0, %s433
      %s435 = sphi 0, %s433
      %s436 = sphi 0, %s435
      %s450 = sphi 0, %s436
      %s454 = sphi 0, %s454
      %s456 = sphi 0, %s454
      %s457 = sphi 0, %s456
      %s471 = sphi 0, %s457
      %s475 = sphi 0, %s475
      %s477 = sphi 0, %s475
      %s478 = sphi 0, %s477
      %s492 = sphi 0, %s478
      %s496 = sphi 0, %s496
      %s498 = sphi 0, %s496
      %s499 = sphi 0, %s498
      %s513 = sphi 0, %s499
      %s519 = sphi 0, %s521
      %s522 = sphi 0, %s519
      %s523 = sphi 0, %s522
      %s539 = sphi 0, %s523
    $region4: #{tpu_custom_call.1} parent=1 // loop_header_branch
      %40 = sbr.rel (%p38) target = $region8
    $region5: #{tpu_custom_call.1} parent=1 // loop_body
      %s42 = ssub.s32 %s37, 1
      %s43 = ssub.s32 %s37, 2
      %s44 = sadd.s32 %s37, 1
      %s45 = ssub.s32 %s37, %s44
      %p46 = scmp.eq.s32.totalorder %s45, 0
      %s48 = sadd.s32 %s47, 1
      %s49 = scalar_select %p46, %s47, %s48
      %p52 = pneg %p46
      %p53 = scmp.eq.s32.totalorder %s37, 1
      %p54 = por %p52, %p53
      %p55 = scmp.ne.s32.totalorder %s47, %s50
      %p56 = scmp.eq.s32.totalorder %s37, 0
      %p57 = por %p55, %p56
      %p58 = scmp.ne.s32.totalorder %s47, %s50
      %p59 = scmp.eq.s32.totalorder %s42, 1
      %p60 = por %p58, %p59
      %p61 = scmp.ne.s32.totalorder %s50, %s51
      %p62 = scmp.eq.s32.totalorder %s42, 0
      %p63 = por %p61, %p62
      %p64 = scmp.ne.s32.totalorder %s50, %s51
      %p65 = scmp.eq.s32.totalorder %s43, 1
      %p66 = por %p64, %p65
      %p68 = scmp.ne.s32.totalorder %s51, %s67
      %p69 = scmp.eq.s32.totalorder %s43, 0
      %p70 = por %p68, %p69
      %s71 = ssub.s32 %s37, %s44
      %p72 = scmp.eq.s32.totalorder %s71, 0
      %s74 = sadd.s32 %s73, 1
      %s75 = scalar_select %p72, %s73, %s74
      %p78 = pneg %p72
      %p79 = scmp.eq.s32.totalorder %s37, 1
      %p80 = por %p78, %p79
      %p81 = scmp.ne.s32.totalorder %s73, %s76
      %p82 = scmp.eq.s32.totalorder %s37, 0
      %p83 = por %p81, %p82
      %p84 = scmp.ne.s32.totalorder %s73, %s76
      %p85 = scmp.eq.s32.totalorder %s42, 1
      %p86 = por %p84, %p85
      %p87 = scmp.ne.s32.totalorder %s76, %s77
      %p88 = scmp.eq.s32.totalorder %s42, 0
      %p89 = por %p87, %p88
      %p90 = scmp.ne.s32.totalorder %s76, %s77
      %p91 = scmp.eq.s32.totalorder %s43, 1
      %p92 = por %p90, %p91
      %p94 = scmp.ne.s32.totalorder %s77, %s93
      %p95 = scmp.eq.s32.totalorder %s43, 0
      %p96 = por %p94, %p95
      %s98 = sadd.s32 %s97, 1
      %p101 = scmp.eq.s32.totalorder %s37, 1
      %p102 = scmp.ne.s32.totalorder %s97, %s99
      %p103 = scmp.eq.s32.totalorder %s37, 0
      %p104 = por %p102, %p103
      %p105 = scmp.ne.s32.totalorder %s97, %s99
      %p106 = scmp.eq.s32.totalorder %s42, 1
      %p107 = por %p105, %p106
      %p108 = scmp.ne.s32.totalorder %s99, %s100
      %p109 = scmp.eq.s32.totalorder %s42, 0
      %p110 = por %p108, %p109
      %p111 = scmp.ne.s32.totalorder %s99, %s100
      %p112 = scmp.eq.s32.totalorder %s43, 1
      %p113 = por %p111, %p112
      %p115 = scmp.ne.s32.totalorder %s100, %s114
      %p116 = scmp.eq.s32.totalorder %s43, 0
      %p117 = por %p115, %p116
      %s119 = sadd.s32 %s118, 1
      %p122 = scmp.eq.s32.totalorder %s37, 1
      %p123 = scmp.ne.s32.totalorder %s118, %s120
      %p124 = scmp.eq.s32.totalorder %s37, 0
      %p125 = por %p123, %p124
      %p126 = scmp.ne.s32.totalorder %s118, %s120
      %p127 = scmp.eq.s32.totalorder %s42, 1
      %p128 = por %p126, %p127
      %p129 = scmp.ne.s32.totalorder %s120, %s121
      %p130 = scmp.eq.s32.totalorder %s42, 0
      %p131 = por %p129, %p130
      %p132 = scmp.ne.s32.totalorder %s120, %s121
      %p133 = scmp.eq.s32.totalorder %s43, 1
      %p134 = por %p132, %p133
      %p136 = scmp.ne.s32.totalorder %s121, %s135
      %p137 = scmp.eq.s32.totalorder %s43, 0
      %p138 = por %p136, %p137
      %s140 = sadd.s32 %s139, 1
      %p143 = scmp.eq.s32.totalorder %s37, 1
      %p144 = scmp.ne.s32.totalorder %s139, %s141
      %p145 = scmp.eq.s32.totalorder %s37, 0
      %p146 = por %p144, %p145
      %p147 = scmp.ne.s32.totalorder %s139, %s141
      %p148 = scmp.eq.s32.totalorder %s42, 1
      %p149 = por %p147, %p148
      %p150 = scmp.ne.s32.totalorder %s141, %s142
      %p151 = scmp.eq.s32.totalorder %s42, 0
      %p152 = por %p150, %p151
      %p153 = scmp.ne.s32.totalorder %s141, %s142
      %p154 = scmp.eq.s32.totalorder %s43, 1
      %p155 = por %p153, %p154
      %p157 = scmp.ne.s32.totalorder %s142, %s156
      %p158 = scmp.eq.s32.totalorder %s43, 0
      %p159 = por %p157, %p158
      %s161 = sadd.s32 %s160, 1
      %p164 = scmp.eq.s32.totalorder %s37, 1
      %p165 = scmp.ne.s32.totalorder %s160, %s162
      %p166 = scmp.eq.s32.totalorder %s37, 0
      %p167 = por %p165, %p166
      %p168 = scmp.ne.s32.totalorder %s160, %s162
      %p169 = scmp.eq.s32.totalorder %s42, 1
      %p170 = por %p168, %p169
      %p171 = scmp.ne.s32.totalorder %s162, %s163
      %p172 = scmp.eq.s32.totalorder %s42, 0
      %p173 = por %p171, %p172
      %p174 = scmp.ne.s32.totalorder %s162, %s163
      %p175 = scmp.eq.s32.totalorder %s43, 1
      %p176 = por %p174, %p175
      %p178 = scmp.ne.s32.totalorder %s163, %s177
      %p179 = scmp.eq.s32.totalorder %s43, 0
      %p180 = por %p178, %p179
      %s182 = sadd.s32 %s181, 1
      %p185 = scmp.eq.s32.totalorder %s37, 1
      %p186 = scmp.ne.s32.totalorder %s181, %s183
      %p187 = scmp.eq.s32.totalorder %s37, 0
      %p188 = por %p186, %p187
      %p189 = scmp.ne.s32.totalorder %s181, %s183
      %p190 = scmp.eq.s32.totalorder %s42, 1
      %p191 = por %p189, %p190
      %p192 = scmp.ne.s32.totalorder %s183, %s184
      %p193 = scmp.eq.s32.totalorder %s42, 0
      %p194 = por %p192, %p193
      %p195 = scmp.ne.s32.totalorder %s183, %s184
      %p196 = scmp.eq.s32.totalorder %s43, 1
      %p197 = por %p195, %p196
      %p199 = scmp.ne.s32.totalorder %s184, %s198
      %p200 = scmp.eq.s32.totalorder %s43, 0
      %p201 = por %p199, %p200
      %s203 = sadd.s32 %s202, 1
      %p206 = scmp.eq.s32.totalorder %s37, 1
      %p207 = scmp.ne.s32.totalorder %s202, %s204
      %p208 = scmp.eq.s32.totalorder %s37, 0
      %p209 = por %p207, %p208
      %p210 = scmp.ne.s32.totalorder %s202, %s204
      %p211 = scmp.eq.s32.totalorder %s42, 1
      %p212 = por %p210, %p211
      %p213 = scmp.ne.s32.totalorder %s204, %s205
      %p214 = scmp.eq.s32.totalorder %s42, 0
      %p215 = por %p213, %p214
      %p216 = scmp.ne.s32.totalorder %s204, %s205
      %p217 = scmp.eq.s32.totalorder %s43, 1
      %p218 = por %p216, %p217
      %p220 = scmp.ne.s32.totalorder %s205, %s219
      %p221 = scmp.eq.s32.totalorder %s43, 0
      %p222 = por %p220, %p221
      %s224 = sadd.s32 %s223, 1
      %p227 = scmp.eq.s32.totalorder %s37, 1
      %p228 = scmp.ne.s32.totalorder %s223, %s225
      %p229 = scmp.eq.s32.totalorder %s37, 0
      %p230 = por %p228, %p229
      %p231 = scmp.ne.s32.totalorder %s223, %s225
      %p232 = scmp.eq.s32.totalorder %s42, 1
      %p233 = por %p231, %p232
      %p234 = scmp.ne.s32.totalorder %s225, %s226
      %p235 = scmp.eq.s32.totalorder %s42, 0
      %p236 = por %p234, %p235
      %p237 = scmp.ne.s32.totalorder %s225, %s226
      %p238 = scmp.eq.s32.totalorder %s43, 1
      %p239 = por %p237, %p238
      %p241 = scmp.ne.s32.totalorder %s226, %s240
      %p242 = scmp.eq.s32.totalorder %s43, 0
      %p243 = por %p241, %p242
      %s245 = sadd.s32 %s244, 1
      %p248 = scmp.eq.s32.totalorder %s37, 1
      %p249 = scmp.ne.s32.totalorder %s244, %s246
      %p250 = scmp.eq.s32.totalorder %s37, 0
      %p251 = por %p249, %p250
      %p252 = scmp.ne.s32.totalorder %s244, %s246
      %p253 = scmp.eq.s32.totalorder %s42, 1
      %p254 = por %p252, %p253
      %p255 = scmp.ne.s32.totalorder %s246, %s247
      %p256 = scmp.eq.s32.totalorder %s42, 0
      %p257 = por %p255, %p256
      %p258 = scmp.ne.s32.totalorder %s246, %s247
      %p259 = scmp.eq.s32.totalorder %s43, 1
      %p260 = por %p258, %p259
      %p262 = scmp.ne.s32.totalorder %s247, %s261
      %p263 = scmp.eq.s32.totalorder %s43, 0
      %p264 = por %p262, %p263
      %s266 = sadd.s32 %s265, 1
      %p269 = scmp.eq.s32.totalorder %s37, 1
      %p270 = scmp.ne.s32.totalorder %s265, %s267
      %p271 = scmp.eq.s32.totalorder %s37, 0
      %p272 = por %p270, %p271
      %p273 = scmp.ne.s32.totalorder %s265, %s267
      %p274 = scmp.eq.s32.totalorder %s42, 1
      %p275 = por %p273, %p274
      %p276 = scmp.ne.s32.totalorder %s267, %s268
      %p277 = scmp.eq.s32.totalorder %s42, 0
      %p278 = por %p276, %p277
      %p279 = scmp.ne.s32.totalorder %s267, %s268
      %p280 = scmp.eq.s32.totalorder %s43, 1
      %p281 = por %p279, %p280
      %p283 = scmp.ne.s32.totalorder %s268, %s282
      %p284 = scmp.eq.s32.totalorder %s43, 0
      %p285 = por %p283, %p284
      %s287 = sadd.s32 %s286, 1
      %p290 = scmp.eq.s32.totalorder %s37, 1
      %p291 = scmp.ne.s32.totalorder %s286, %s288
      %p292 = scmp.eq.s32.totalorder %s37, 0
      %p293 = por %p291, %p292
      %p294 = scmp.ne.s32.totalorder %s286, %s288
      %p295 = scmp.eq.s32.totalorder %s42, 1
      %p296 = por %p294, %p295
      %p297 = scmp.ne.s32.totalorder %s288, %s289
      %p298 = scmp.eq.s32.totalorder %s42, 0
      %p299 = por %p297, %p298
      %p300 = scmp.ne.s32.totalorder %s288, %s289
      %p301 = scmp.eq.s32.totalorder %s43, 1
      %p302 = por %p300, %p301
      %p304 = scmp.ne.s32.totalorder %s289, %s303
      %p305 = scmp.eq.s32.totalorder %s43, 0
      %p306 = por %p304, %p305
      %s308 = sadd.s32 %s307, 1
      %p311 = scmp.eq.s32.totalorder %s37, 1
      %p312 = scmp.ne.s32.totalorder %s307, %s309
      %p313 = scmp.eq.s32.totalorder %s37, 0
      %p314 = por %p312, %p313
      %p315 = scmp.ne.s32.totalorder %s307, %s309
      %p316 = scmp.eq.s32.totalorder %s42, 1
      %p317 = por %p315, %p316
      %p318 = scmp.ne.s32.totalorder %s309, %s310
      %p319 = scmp.eq.s32.totalorder %s42, 0
      %p320 = por %p318, %p319
      %p321 = scmp.ne.s32.totalorder %s309, %s310
      %p322 = scmp.eq.s32.totalorder %s43, 1
      %p323 = por %p321, %p322
      %p325 = scmp.ne.s32.totalorder %s310, %s324
      %p326 = scmp.eq.s32.totalorder %s43, 0
      %p327 = por %p325, %p326
      %s329 = sadd.s32 %s328, 1
      %p332 = scmp.eq.s32.totalorder %s37, 1
      %p333 = scmp.ne.s32.totalorder %s328, %s330
      %p334 = scmp.eq.s32.totalorder %s37, 0
      %p335 = por %p333, %p334
      %p336 = scmp.ne.s32.totalorder %s328, %s330
      %p337 = scmp.eq.s32.totalorder %s42, 1
      %p338 = por %p336, %p337
      %p339 = scmp.ne.s32.totalorder %s330, %s331
      %p340 = scmp.eq.s32.totalorder %s42, 0
      %p341 = por %p339, %p340
      %p342 = scmp.ne.s32.totalorder %s330, %s331
      %p343 = scmp.eq.s32.totalorder %s43, 1
      %p344 = por %p342, %p343
      %p346 = scmp.ne.s32.totalorder %s331, %s345
      %p347 = scmp.eq.s32.totalorder %s43, 0
      %p348 = por %p346, %p347
      %s350 = sadd.s32 %s349, 1
      %p353 = scmp.eq.s32.totalorder %s37, 1
      %p354 = scmp.ne.s32.totalorder %s349, %s351
      %p355 = scmp.eq.s32.totalorder %s37, 0
      %p356 = por %p354, %p355
      %p357 = scmp.ne.s32.totalorder %s349, %s351
      %p358 = scmp.eq.s32.totalorder %s42, 1
      %p359 = por %p357, %p358
      %p360 = scmp.ne.s32.totalorder %s351, %s352
      %p361 = scmp.eq.s32.totalorder %s42, 0
      %p362 = por %p360, %p361
      %p363 = scmp.ne.s32.totalorder %s351, %s352
      %p364 = scmp.eq.s32.totalorder %s43, 1
      %p365 = por %p363, %p364
      %p367 = scmp.ne.s32.totalorder %s352, %s366
      %p368 = scmp.eq.s32.totalorder %s43, 0
      %p369 = por %p367, %p368
      %s371 = sadd.s32 %s370, 1
      %p374 = scmp.eq.s32.totalorder %s37, 1
      %p375 = scmp.ne.s32.totalorder %s370, %s372
      %p376 = scmp.eq.s32.totalorder %s37, 0
      %p377 = por %p375, %p376
      %p378 = scmp.ne.s32.totalorder %s370, %s372
      %p379 = scmp.eq.s32.totalorder %s42, 1
      %p380 = por %p378, %p379
      %p381 = scmp.ne.s32.totalorder %s372, %s373
      %p382 = scmp.eq.s32.totalorder %s42, 0
      %p383 = por %p381, %p382
      %p384 = scmp.ne.s32.totalorder %s372, %s373
      %p385 = scmp.eq.s32.totalorder %s43, 1
      %p386 = por %p384, %p385
      %p388 = scmp.ne.s32.totalorder %s373, %s387
      %p389 = scmp.eq.s32.totalorder %s43, 0
      %p390 = por %p388, %p389
      %s392 = sadd.s32 %s391, 1
      %p395 = scmp.eq.s32.totalorder %s37, 1
      %p396 = scmp.ne.s32.totalorder %s391, %s393
      %p397 = scmp.eq.s32.totalorder %s37, 0
      %p398 = por %p396, %p397
      %p399 = scmp.ne.s32.totalorder %s391, %s393
      %p400 = scmp.eq.s32.totalorder %s42, 1
      %p401 = por %p399, %p400
      %p402 = scmp.ne.s32.totalorder %s393, %s394
      %p403 = scmp.eq.s32.totalorder %s42, 0
      %p404 = por %p402, %p403
      %p405 = scmp.ne.s32.totalorder %s393, %s394
      %p406 = scmp.eq.s32.totalorder %s43, 1
      %p407 = por %p405, %p406
      %p409 = scmp.ne.s32.totalorder %s394, %s408
      %p410 = scmp.eq.s32.totalorder %s43, 0
      %p411 = por %p409, %p410
      %s413 = sadd.s32 %s412, 1
      %p416 = scmp.eq.s32.totalorder %s37, 1
      %p417 = scmp.ne.s32.totalorder %s412, %s414
      %p418 = scmp.eq.s32.totalorder %s37, 0
      %p419 = por %p417, %p418
      %p420 = scmp.ne.s32.totalorder %s412, %s414
      %p421 = scmp.eq.s32.totalorder %s42, 1
      %p422 = por %p420, %p421
      %p423 = scmp.ne.s32.totalorder %s414, %s415
      %p424 = scmp.eq.s32.totalorder %s42, 0
      %p425 = por %p423, %p424
      %p426 = scmp.ne.s32.totalorder %s414, %s415
      %p427 = scmp.eq.s32.totalorder %s43, 1
      %p428 = por %p426, %p427
      %p430 = scmp.ne.s32.totalorder %s415, %s429
      %p431 = scmp.eq.s32.totalorder %s43, 0
      %p432 = por %p430, %p431
      %s434 = sadd.s32 %s433, 1
      %p437 = scmp.eq.s32.totalorder %s37, 1
      %p438 = scmp.ne.s32.totalorder %s433, %s435
      %p439 = scmp.eq.s32.totalorder %s37, 0
      %p440 = por %p438, %p439
      %p441 = scmp.ne.s32.totalorder %s433, %s435
      %p442 = scmp.eq.s32.totalorder %s42, 1
      %p443 = por %p441, %p442
      %p444 = scmp.ne.s32.totalorder %s435, %s436
      %p445 = scmp.eq.s32.totalorder %s42, 0
      %p446 = por %p444, %p445
      %p447 = scmp.ne.s32.totalorder %s435, %s436
      %p448 = scmp.eq.s32.totalorder %s43, 1
      %p449 = por %p447, %p448
      %p451 = scmp.ne.s32.totalorder %s436, %s450
      %p452 = scmp.eq.s32.totalorder %s43, 0
      %p453 = por %p451, %p452
      %s455 = sadd.s32 %s454, 1
      %p458 = scmp.eq.s32.totalorder %s37, 1
      %p459 = scmp.ne.s32.totalorder %s454, %s456
      %p460 = scmp.eq.s32.totalorder %s37, 0
      %p461 = por %p459, %p460
      %p462 = scmp.ne.s32.totalorder %s454, %s456
      %p463 = scmp.eq.s32.totalorder %s42, 1
      %p464 = por %p462, %p463
      %p465 = scmp.ne.s32.totalorder %s456, %s457
      %p466 = scmp.eq.s32.totalorder %s42, 0
      %p467 = por %p465, %p466
      %p468 = scmp.ne.s32.totalorder %s456, %s457
      %p469 = scmp.eq.s32.totalorder %s43, 1
      %p470 = por %p468, %p469
      %p472 = scmp.ne.s32.totalorder %s457, %s471
      %p473 = scmp.eq.s32.totalorder %s43, 0
      %p474 = por %p472, %p473
      %s476 = sadd.s32 %s475, 1
      %p479 = scmp.eq.s32.totalorder %s37, 1
      %p480 = scmp.ne.s32.totalorder %s475, %s477
      %p481 = scmp.eq.s32.totalorder %s37, 0
      %p482 = por %p480, %p481
      %p483 = scmp.ne.s32.totalorder %s475, %s477
      %p484 = scmp.eq.s32.totalorder %s42, 1
      %p485 = por %p483, %p484
      %p486 = scmp.ne.s32.totalorder %s477, %s478
      %p487 = scmp.eq.s32.totalorder %s42, 0
      %p488 = por %p486, %p487
      %p489 = scmp.ne.s32.totalorder %s477, %s478
      %p490 = scmp.eq.s32.totalorder %s43, 1
      %p491 = por %p489, %p490
      %p493 = scmp.ne.s32.totalorder %s478, %s492
      %p494 = scmp.eq.s32.totalorder %s43, 0
      %p495 = por %p493, %p494
      %s497 = sadd.s32 %s496, 1
      %p500 = scmp.eq.s32.totalorder %s37, 1
      %p501 = scmp.ne.s32.totalorder %s496, %s498
      %p502 = scmp.eq.s32.totalorder %s37, 0
      %p503 = por %p501, %p502
      %p504 = scmp.ne.s32.totalorder %s496, %s498
      %p505 = scmp.eq.s32.totalorder %s42, 1
      %p506 = por %p504, %p505
      %p507 = scmp.ne.s32.totalorder %s498, %s499
      %p508 = scmp.eq.s32.totalorder %s42, 0
      %p509 = por %p507, %p508
      %p510 = scmp.ne.s32.totalorder %s498, %s499
      %p511 = scmp.eq.s32.totalorder %s43, 1
      %p512 = por %p510, %p511
      %p514 = scmp.ne.s32.totalorder %s499, %s513
      %p515 = scmp.eq.s32.totalorder %s43, 0
      %p516 = por %p514, %p515
      %s517 = ssub.s32 %s37, %s44
      %p518 = scmp.eq.s32.totalorder %s517, 0
      %s520 = sadd.s32 %s519, 1
      %s521 = scalar_select %p518, %s519, %s520
      %p524 = pneg %p518
      %p525 = scmp.eq.s32.totalorder %s37, 1
      %p526 = por %p524, %p525
      %p527 = scmp.ne.s32.totalorder %s519, %s522
      %p528 = scmp.eq.s32.totalorder %s37, 0
      %p529 = por %p527, %p528
      %p530 = scmp.ne.s32.totalorder %s519, %s522
      %p531 = scmp.eq.s32.totalorder %s42, 1
      %p532 = por %p530, %p531
      %p533 = scmp.ne.s32.totalorder %s522, %s523
      %p534 = scmp.eq.s32.totalorder %s42, 0
      %p535 = por %p533, %p534
      %p536 = scmp.ne.s32.totalorder %s522, %s523
      %p537 = scmp.eq.s32.totalorder %s43, 1
      %p538 = por %p536, %p537
      %p540 = scmp.ne.s32.totalorder %s523, %s539
      %p541 = scmp.eq.s32.totalorder %s43, 0
      %p542 = por %p540, %p541
      %p543 = scmp.le.s32.totalorder 1, %s37
      %p544 = scmp.lt.s32.totalorder %s37, 3
      %p545 = pnand %p543, %p544
      %p546 = pneg %p545
      // Predicated region
      $region9: #{tpu_custom_call.1} parent=5 // pred_check
        _
      $region10: #{tpu_custom_call.1} parent=5 // pred_check_branch
        %548 = sbr.rel (%p545) target = $region12
      $region11: #{tpu_custom_call.1} parent=5 // pred_region
        %s549 = ssub.s32 %s37, 1
        // Predicated region
        $region13: #{tpu_custom_call.1} parent=11 // pred_check
          %p550 = pneg %p110
        $region14: #{tpu_custom_call.1} parent=11 // pred_check_branch
          %552 = sbr.rel (%p550) target = $region16
        $region15: #{tpu_custom_call.1} parent=11 // pred_region
          _
        $region16: #{tpu_custom_call.1} parent=11 // pred_fallthru
          _
        // Predicated region
        $region17: #{tpu_custom_call.1} parent=11 // pred_check
          %p553 = pneg %p131
        $region18: #{tpu_custom_call.1} parent=11 // pred_check_branch
          %555 = sbr.rel (%p553) target = $region20
        $region19: #{tpu_custom_call.1} parent=11 // pred_region
          %557 = vsyncadd [#allocation6], 0
          %s559 = sshll.u32 %s3, 4
          %s560 = int_to_ptr.hbm [resolvable:$true] %s559
          %s561 = sshll.u32 [#allocation5], 4
          %s562 = int_to_ptr.vmem [resolvable:$true] %s561
          %564 = dma.hbm_to_vmem [thread:$0]  %s560, 16, %s562, [#allocation6]
        $region20: #{tpu_custom_call.1} parent=11 // pred_fallthru
          _
        // Predicated region
        $region21: #{tpu_custom_call.1} parent=11 // pred_check
          %p565 = pneg %p152
        $region22: #{tpu_custom_call.1} parent=11 // pred_check_branch
          %567 = sbr.rel (%p565) target = $region24
        $region23: #{tpu_custom_call.1} parent=11 // pred_region
          _
        $region24: #{tpu_custom_call.1} parent=11 // pred_fallthru
          _
        // Predicated region
        $region25: #{tpu_custom_call.1} parent=11 // pred_check
          %p568 = pneg %p173
        $region26: #{tpu_custom_call.1} parent=11 // pred_check_branch
          %570 = sbr.rel (%p568) target = $region28
        $region27: #{tpu_custom_call.1} parent=11 // pred_region
          _
        $region28: #{tpu_custom_call.1} parent=11 // pred_fallthru
          _
        // Predicated region
        $region29: #{tpu_custom_call.1} parent=11 // pred_check
          %p571 = pneg %p194
        $region30: #{tpu_custom_call.1} parent=11 // pred_check_branch
          %573 = sbr.rel (%p571) target = $region32
        $region31: #{tpu_custom_call.1} parent=11 // pred_region
          _
        $region32: #{tpu_custom_call.1} parent=11 // pred_fallthru
          _
        // Predicated region
        $region33: #{tpu_custom_call.1} parent=11 // pred_check
          %p574 = pneg %p215
        $region34: #{tpu_custom_call.1} parent=11 // pred_check_branch
          %576 = sbr.rel (%p574) target = $region36
        $region35: #{tpu_custom_call.1} parent=11 // pred_region
          _
        $region36: #{tpu_custom_call.1} parent=11 // pred_fallthru
          _
        // Predicated region
        $region37: #{tpu_custom_call.1} parent=11 // pred_check
          %p577 = pneg %p236
        $region38: #{tpu_custom_call.1} parent=11 // pred_check_branch
          %579 = sbr.rel (%p577) target = $region40
        $region39: #{tpu_custom_call.1} parent=11 // pred_region
          _
        $region40: #{tpu_custom_call.1} parent=11 // pred_fallthru
          _
        // Predicated region
        $region41: #{tpu_custom_call.1} parent=11 // pred_check
          %p580 = pneg %p257
        $region42: #{tpu_custom_call.1} parent=11 // pred_check_branch
          %582 = sbr.rel (%p580) target = $region44
        $region43: #{tpu_custom_call.1} parent=11 // pred_region
          _
        $region44: #{tpu_custom_call.1} parent=11 // pred_fallthru
          _
        // Predicated region
        $region45: #{tpu_custom_call.1} parent=11 // pred_check
          %p583 = pneg %p278
        $region46: #{tpu_custom_call.1} parent=11 // pred_check_branch
          %585 = sbr.rel (%p583) target = $region48
        $region47: #{tpu_custom_call.1} parent=11 // pred_region
          _
        $region48: #{tpu_custom_call.1} parent=11 // pred_fallthru
          _
        // Predicated region
        $region49: #{tpu_custom_call.1} parent=11 // pred_check
          %p586 = pneg %p299
        $region50: #{tpu_custom_call.1} parent=11 // pred_check_branch
          %588 = sbr.rel (%p586) target = $region52
        $region51: #{tpu_custom_call.1} parent=11 // pred_region
          %590 = vsyncadd [#allocation6], 0
          %s591 = sshll.u32 %s11, 4
          %s592 = int_to_ptr.hbm [resolvable:$true] %s591
          %s593 = sshll.u32 [#allocation7], 4
          %s594 = int_to_ptr.vmem [resolvable:$true] %s593
          %599 = dma.hbm_to_vmem [thread:$0]  %s592, 512, %s594, [#allocation6], 128, 128, 8
        $region52: #{tpu_custom_call.1} parent=11 // pred_fallthru
          _
        // Predicated region
        $region53: #{tpu_custom_call.1} parent=11 // pred_check
          %p600 = pneg %p320
        $region54: #{tpu_custom_call.1} parent=11 // pred_check_branch
          %602 = sbr.rel (%p600) target = $region56
        $region55: #{tpu_custom_call.1} parent=11 // pred_region
          %604 = vsyncadd [#allocation9], 0
          %s605 = sshll.u32 %s12, 4
          %s606 = int_to_ptr.hbm [resolvable:$true] %s605
          %s607 = sshll.u32 [#allocation8], 4
          %s608 = int_to_ptr.vmem [resolvable:$true] %s607
          %613 = dma.hbm_to_vmem [thread:$0]  %s606, 384, %s608, [#allocation9], 128, 128, 8
        $region56: #{tpu_custom_call.1} parent=11 // pred_fallthru
          _
        // Predicated region
        $region57: #{tpu_custom_call.1} parent=11 // pred_check
          %p614 = pneg %p341
        $region58: #{tpu_custom_call.1} parent=11 // pred_check_branch
          %616 = sbr.rel (%p614) target = $region60
        $region59: #{tpu_custom_call.1} parent=11 // pred_region
          %618 = vsyncadd [#allocation9], 0
          %s619 = sshll.u32 %s13, 4
          %s620 = int_to_ptr.hbm [resolvable:$true] %s619
          %s621 = sshll.u32 [#allocation10], 4
          %s622 = int_to_ptr.vmem [resolvable:$true] %s621
          %627 = dma.hbm_to_vmem [thread:$0]  %s620, 384, %s622, [#allocation9], 128, 128, 8
        $region60: #{tpu_custom_call.1} parent=11 // pred_fallthru
          _
        // Predicated region
        $region61: #{tpu_custom_call.1} parent=11 // pred_check
          %p628 = pneg %p362
        $region62: #{tpu_custom_call.1} parent=11 // pred_check_branch
          %630 = sbr.rel (%p628) target = $region64
        $region63: #{tpu_custom_call.1} parent=11 // pred_region
          %632 = vsyncadd [#allocation12], 0
          %s633 = sshll.u32 %s14, 4
          %s634 = int_to_ptr.hbm [resolvable:$true] %s633
          %s635 = sshll.u32 [#allocation11], 4
          %s636 = int_to_ptr.vmem [resolvable:$true] %s635
          %641 = dma.hbm_to_vmem [thread:$0]  %s634, 512, %s636, [#allocation12], 128, 128, 8
        $region64: #{tpu_custom_call.1} parent=11 // pred_fallthru
          _
        // Predicated region
        $region65: #{tpu_custom_call.1} parent=11 // pred_check
          %p642 = pneg %p383
        $region66: #{tpu_custom_call.1} parent=11 // pred_check_branch
          %644 = sbr.rel (%p642) target = $region68
        $region67: #{tpu_custom_call.1} parent=11 // pred_region
          _
        $region68: #{tpu_custom_call.1} parent=11 // pred_fallthru
          _
        // Predicated region
        $region69: #{tpu_custom_call.1} parent=11 // pred_check
          %p645 = pneg %p404
        $region70: #{tpu_custom_call.1} parent=11 // pred_check_branch
          %647 = sbr.rel (%p645) target = $region72
        $region71: #{tpu_custom_call.1} parent=11 // pred_region
          _
        $region72: #{tpu_custom_call.1} parent=11 // pred_fallthru
          _
        // Predicated region
        $region73: #{tpu_custom_call.1} parent=11 // pred_check
          %p648 = pneg %p425
        $region74: #{tpu_custom_call.1} parent=11 // pred_check_branch
          %650 = sbr.rel (%p648) target = $region76
        $region75: #{tpu_custom_call.1} parent=11 // pred_region
          _
        $region76: #{tpu_custom_call.1} parent=11 // pred_fallthru
          _
        // Predicated region
        $region77: #{tpu_custom_call.1} parent=11 // pred_check
          %p651 = pneg %p446
        $region78: #{tpu_custom_call.1} parent=11 // pred_check_branch
          %653 = sbr.rel (%p651) target = $region80
        $region79: #{tpu_custom_call.1} parent=11 // pred_region
          %655 = vsyncadd [#allocation12], 0
          %s656 = sshll.u32 %s18, 4
          %s657 = int_to_ptr.hbm [resolvable:$true] %s656
          %s658 = sshll.u32 [#allocation13], 4
          %s659 = int_to_ptr.vmem [resolvable:$true] %s658
          %664 = dma.hbm_to_vmem [thread:$0]  %s657, 512, %s659, [#allocation12], 128, 128, 8
        $region80: #{tpu_custom_call.1} parent=11 // pred_fallthru
          _
        // Predicated region
        $region81: #{tpu_custom_call.1} parent=11 // pred_check
          %p665 = pneg %p467
        $region82: #{tpu_custom_call.1} parent=11 // pred_check_branch
          %667 = sbr.rel (%p665) target = $region84
        $region83: #{tpu_custom_call.1} parent=11 // pred_region
          _
        $region84: #{tpu_custom_call.1} parent=11 // pred_fallthru
          _
        // Predicated region
        $region85: #{tpu_custom_call.1} parent=11 // pred_check
          %p668 = pneg %p488
        $region86: #{tpu_custom_call.1} parent=11 // pred_check_branch
          %670 = sbr.rel (%p668) target = $region88
        $region87: #{tpu_custom_call.1} parent=11 // pred_region
          _
        $region88: #{tpu_custom_call.1} parent=11 // pred_fallthru
          _
        // Predicated region
        $region89: #{tpu_custom_call.1} parent=11 // pred_check
          %p671 = pneg %p509
        $region90: #{tpu_custom_call.1} parent=11 // pred_check_branch
          %673 = sbr.rel (%p671) target = $region92
        $region91: #{tpu_custom_call.1} parent=11 // pred_region
          _
        $region92: #{tpu_custom_call.1} parent=11 // pred_fallthru
          _
      $region12: #{tpu_custom_call.1} parent=5 // pred_fallthru
        _
      %p674 = scmp.lt.s32.totalorder %s37, 2
      // Predicated region
      $region93: #{tpu_custom_call.1} parent=5 // pred_check
        %p675 = pneg %p674
      $region94: #{tpu_custom_call.1} parent=5 // pred_check_branch
        %677 = sbr.rel (%p675) target = $region96
      $region95: #{tpu_custom_call.1} parent=5 // pred_region
        // Predicated region
        $region97: #{tpu_custom_call.1} parent=95 // pred_check
          %p678 = pneg %p57
        $region98: #{tpu_custom_call.1} parent=95 // pred_check_branch
          %680 = sbr.rel (%p678) target = $region100
        $region99: #{tpu_custom_call.1} parent=95 // pred_region
          %p681 = scmp.lt.s32.totalorder %s37, 1
          %s682 = scalar_select %p681, %s37, 1
          %s683 = smul.addr %s682, 2
          %s684 = smul.addr %s683, 8
          %s685 = scalar_lea.vmem %s0, %s684
        $region100: #{tpu_custom_call.1} parent=95 // pred_fallthru
          _
        // Predicated region
        $region101: #{tpu_custom_call.1} parent=95 // pred_check
          %p686 = pneg %p83
        $region102: #{tpu_custom_call.1} parent=95 // pred_check_branch
          %688 = sbr.rel (%p686) target = $region104
        $region103: #{tpu_custom_call.1} parent=95 // pred_region
          %s689 = sand.u32 %s73, 1
          %s690 = scalar_lea.sflag [#allocation3], %s689
          %s691 = sand.u32 %s73, 1
          %s692 = smul.addr %s691, 8
          %s693 = scalar_lea.vmem [#allocation2], %s692
          %695 = vsyncadd %s690, 0
          %s696 = smul.addr %s37, 8
          %s697 = scalar_lea.hbm %s1, %s696
          %s699 = sshll.u32 %s697, 4
          %s700 = int_to_ptr.hbm [resolvable:$true] %s699
          %s701 = sshll.u32 %s693, 4
          %s702 = int_to_ptr.vmem [resolvable:$true] %s701
          %704 = dma.hbm_to_vmem [thread:$0]  %s700, 128, %s702, %s690
        $region104: #{tpu_custom_call.1} parent=95 // pred_fallthru
          _
      $region96: #{tpu_custom_call.1} parent=5 // pred_fallthru
        _
      %p705 = scmp.le.s32.totalorder 1, %s37
      %p706 = scmp.lt.s32.totalorder %s37, 3
      %p707 = pnand %p705, %p706
      %p708 = pneg %p707
      // Predicated region
      $region105: #{tpu_custom_call.1} parent=5 // pred_check
        _
      $region106: #{tpu_custom_call.1} parent=5 // pred_check_branch
        %710 = sbr.rel (%p707) target = $region108
      $region107: #{tpu_custom_call.1} parent=5 // pred_region
        %s711 = ssub.s32 %s37, 1
        %s712 = sand.u32 %s76, 1
        %s713 = scalar_lea.sflag [#allocation3], %s712
        %s714 = sand.u32 %s76, 1
        %s715 = smul.addr %s714, 8
        %s716 = scalar_lea.vmem [#allocation2], %s715
        // Predicated region
        $region109: #{tpu_custom_call.1} parent=107 // pred_check
          %p717 = pneg %p89
        $region110: #{tpu_custom_call.1} parent=107 // pred_check_branch
          %719 = sbr.rel (%p717) target = $region112
        $region111: #{tpu_custom_call.1} parent=107 // pred_region
          %721 = dma.done %s713, 128
        $region112: #{tpu_custom_call.1} parent=107 // pred_fallthru
          _
        // Predicated region
        $region113: #{tpu_custom_call.1} parent=107 // pred_check
          %p722 = pneg %p131
        $region114: #{tpu_custom_call.1} parent=107 // pred_check_branch
          %724 = sbr.rel (%p722) target = $region116
        $region115: #{tpu_custom_call.1} parent=107 // pred_region
          %726 = dma.done [#allocation6], 16
        $region116: #{tpu_custom_call.1} parent=107 // pred_fallthru
          _
        // Predicated region
        $region117: #{tpu_custom_call.1} parent=107 // pred_check
          %p727 = pneg %p299
        $region118: #{tpu_custom_call.1} parent=107 // pred_check_branch
          %729 = sbr.rel (%p727) target = $region120
        $region119: #{tpu_custom_call.1} parent=107 // pred_region
          %731 = dma.done [#allocation6], 512
        $region120: #{tpu_custom_call.1} parent=107 // pred_fallthru
          _
        // Predicated region
        $region121: #{tpu_custom_call.1} parent=107 // pred_check
          %p732 = pneg %p320
        $region122: #{tpu_custom_call.1} parent=107 // pred_check_branch
          %734 = sbr.rel (%p732) target = $region124
        $region123: #{tpu_custom_call.1} parent=107 // pred_region
          %736 = dma.done [#allocation9], 384
        $region124: #{tpu_custom_call.1} parent=107 // pred_fallthru
          _
        // Predicated region
        $region125: #{tpu_custom_call.1} parent=107 // pred_check
          %p737 = pneg %p341
        $region126: #{tpu_custom_call.1} parent=107 // pred_check_branch
          %739 = sbr.rel (%p737) target = $region128
        $region127: #{tpu_custom_call.1} parent=107 // pred_region
          %741 = dma.done [#allocation9], 384
        $region128: #{tpu_custom_call.1} parent=107 // pred_fallthru
          _
        // Predicated region
        $region129: #{tpu_custom_call.1} parent=107 // pred_check
          %p742 = pneg %p362
        $region130: #{tpu_custom_call.1} parent=107 // pred_check_branch
          %744 = sbr.rel (%p742) target = $region132
        $region131: #{tpu_custom_call.1} parent=107 // pred_region
          %746 = dma.done [#allocation12], 512
        $region132: #{tpu_custom_call.1} parent=107 // pred_fallthru
          _
        // Predicated region
        $region133: #{tpu_custom_call.1} parent=107 // pred_check
          %p747 = pneg %p446
        $region134: #{tpu_custom_call.1} parent=107 // pred_check_branch
          %749 = sbr.rel (%p747) target = $region136
        $region135: #{tpu_custom_call.1} parent=107 // pred_region
          %751 = dma.done [#allocation12], 512
        $region136: #{tpu_custom_call.1} parent=107 // pred_fallthru
          _
        %p752 = scmp.lt.s32.totalorder %s42, 1
        %s753 = scalar_select %p752, %s42, 1
        %s754 = smul.addr %s753, 2
        %s755 = smul.addr %s754, 8
        %s756 = scalar_lea.vmem %s0, %s755
        %p757 = pneg %p63
        %p758 = pneg %p60
        %s759 = sand.u32 %s76, 1
        %s760 = scalar_lea.sflag [#allocation3], %s759
        %s761 = sand.u32 %s76, 1
        %s762 = smul.addr %s761, 8
        %s763 = scalar_lea.vmem [#allocation2], %s762
        %p764 = pneg %p89
        %p765 = pneg %p86
        %p766 = pneg %p110
        %p767 = pneg %p107
        %p768 = pneg %p131
        %p769 = pneg %p128
        %p770 = pneg %p152
        %p771 = pneg %p149
        %p772 = pneg %p173
        %p773 = pneg %p170
        %p774 = pneg %p194
        %p775 = pneg %p191
        %p776 = pneg %p215
        %p777 = pneg %p212
        %p778 = pneg %p236
        %p779 = pneg %p233
        %p780 = pneg %p257
        %p781 = pneg %p254
        %p782 = pneg %p278
        %p783 = pneg %p275
        %p784 = pneg %p299
        %p785 = pneg %p296
        %p786 = pneg %p320
        %p787 = pneg %p317
        %p788 = pneg %p341
        %p789 = pneg %p338
        %p790 = pneg %p362
        %p791 = pneg %p359
        %p792 = pneg %p383
        %p793 = pneg %p380
        %p794 = pneg %p404
        %p795 = pneg %p401
        %p796 = pneg %p425
        %p797 = pneg %p422
        %p798 = pneg %p446
        %p799 = pneg %p443
        %p800 = pneg %p467
        %p801 = pneg %p464
        %p802 = pneg %p488
        %p803 = pneg %p485
        %p804 = pneg %p509
        %p805 = pneg %p506
        %p806 = pneg %p535
        %p807 = pneg %p532
        %s808 = sand.u32 %s522, 1
        %s809 = scalar_lea.sflag [#allocation4], %s808
        %s810 = sand.u32 %s522, 1
        %s811 = smul.addr %s810, 16
        %s812 = scalar_lea.vmem [#allocation14], %s811
        %p813 = scmp.lt.s32.totalorder %s42, 1
        %s814 = scalar_select %p813, %s42, 1
        %s815 = smul.addr %s814, 2
        %s816 = smul.addr %s815, 8
        %s817 = scalar_lea.vmem %s0, %s816
        %v818 = vld [vmem:[%s817] sm:$0xff]
        %v819 = vld [vmem:[%s817 + $0x8] sm:$0xff]
        %v820 = vld [vmem:[%s2] sm:$0x1]
        %v821 = vld [vmem:[#allocation5] sm:$0x1]
        %vm822 = vcmask 261120
        %v823 = vsel %vm822, %v818, 0.0
        %824 = vadd.xlane.f32.xlu0 %v823
        %v825 = vpop.xlane.xlu0 %824
        %v826 = vsel %vm822, %v819, 0.0
        %827 = vadd.xlane.f32.xlu0 %v826
        %v828 = vpop.xlane.xlu0 %827
        %v829 = vrcp.pop 32.0
        %v830 = vmul.f32 32.0, %v829
        %v831 = vsub.f32 1.0, %v830
        %v832 = vmul.f32 %v829, %v831
        %v833 = vadd.f32 %v829, %v832
        %vm834 = vweird.f32 %v829
        %v835 = vsel %vm834, %v829, %v833
        %v836 = vmul.f32 %v825, %v835
        %v837 = vmul.f32 %v828, %v835
        %v838 = vsub.f32 %v818, %v836
        %v839 = vsub.f32 %v819, %v837
        %v840 = vmul.f32 %v838, %v838
        %v841 = vmul.f32 %v839, %v839
        %v842 = vsel %vm822, %v840, 0.0
        %843 = vadd.xlane.f32.xlu0 %v842
        %v844 = vpop.xlane.xlu0 %843
        %v845 = vsel %vm822, %v841, 0.0
        %846 = vadd.xlane.f32.xlu0 %v845
        %v847 = vpop.xlane.xlu0 %846
        %v848 = vmul.f32 %v844, %v835
        %v849 = vmul.f32 %v847, %v835
        %v850 = vadd.f32 %v848, 1e-05
        %v851 = vadd.f32 %v849, 1e-05
        %v852 = vrsqrt.pop %v850
        %v853 = vmul.f32 %v852, %v850
        %v854 = vmul.f32 %v853, %v852
        %v855 = vmul.f32 0.5, %v854
        %v856 = vsub.f32 1.5, %v855
        %v857 = vmul.f32 %v852, %v856
        %vm858 = vweird.f32 %v850
        %vm859 = vweird.f32 %v852
        %vm860 = vmor %vm858, %vm859
        %v861 = vsel %vm860, %v852, %v857
        %v862 = vrsqrt.pop %v851
        %v863 = vmul.f32 %v862, %v851
        %v864 = vmul.f32 %v863, %v862
        %v865 = vmul.f32 0.5, %v864
        %v866 = vsub.f32 1.5, %v865
        %v867 = vmul.f32 %v862, %v866
        %vm868 = vweird.f32 %v851
        %vm869 = vweird.f32 %v862
        %vm870 = vmor %vm868, %vm869
        %v871 = vsel %vm870, %v862, %v867
        %v872 = vmul.f32 %v838, %v861
        %v873 = vmul.f32 %v839, %v871
        %v875 = vperm.slane %v820, 0
        %v877 = vmul.f32 %v872, %v875
        %v878 = vmul.f32 %v873, %v875
        %v880 = vperm.slane %v821, 0
        %v882 = vadd.f32 %v877, %v880
        %v883 = vadd.f32 %v878, %v880
        %v884 = vld [vmem:[%s4] sm:$0xff]
        %v885 = vld [vmem:[%s4 + $0x8] sm:$0xff]
        %v886 = vld [vmem:[%s4 + $0x10] sm:$0xff]
        %v887 = vld [vmem:[%s4 + $0x18] sm:$0xff]
        %v888 = vld [vmem:[%s5] sm:$0xff]
        %v889 = vld [vmem:[%s5 + $0x8] sm:$0xff]
        %v890 = vld [vmem:[%s5 + $0x10] sm:$0xff]
        %v891 = vld [vmem:[%s5 + $0x18] sm:$0xff]
        %v892 = vld [vmem:[%s6] sm:$0xff]
        %v893 = vld [vmem:[%s6 + $0x8] sm:$0xff]
        %v894 = vld [vmem:[%s6 + $0x10] sm:$0xff]
        %v895 = vld [vmem:[%s6 + $0x18] sm:$0xff]
        %v896 = vld [vmem:[%s7] sm:$0xff]
        %v897 = vld [vmem:[%s7 + $0x8] sm:$0xff]
        %v898 = vld [vmem:[%s7 + $0x10] sm:$0xff]
        %v899 = vld [vmem:[%s7 + $0x18] sm:$0xff]
        %v900 = vld [vmem:[%s8] sm:$0x1]
        %v902 = vsel %vm822, %v882, 0
        %v905 = vsel %vm822, %v883, 0
        %907 = vmatpush.msra.mxu0 0.0
        %908 = vmatpush.msra.mxu0 0.0
        %909 = vmatpush.msra.mxu0 0.0
        %910 = vmatpush.msra.mxu0 0.0
        %911 = vmatpush.msra.mxu0 0.0
        %912 = vmatpush.msra.mxu0 0.0
        %913 = vmatpush.msra.mxu0 0.0
        %914 = vmatpush.msra.mxu0 0.0
        %915 = vmatpush.msra.mxu0 0.0
        %916 = vmatpush.msra.mxu0 0.0
        %917 = vmatpush.msra.mxu0 0.0
        %918 = vmatpush.msra.mxu0 0.0
        %919 = vmatpush.msra.mxu0 %v887
        %920 = vmatpush.msra.mxu0 %v886
        %921 = vmatpush.msra.mxu0 %v885
        %922 = vmatpush.msra.mxu0 %v884
        %923 = vmatmul.f32.gmra.mxu0 %v902
        %v924 = vpop.f32.mrf.mxu0
        %v925 = vadd.f32 0.0, %v924
        %926 = vmatmul.f32.gmra.mxu0 %v905
        %v927 = vpop.f32.mrf.mxu0
        %v928 = vadd.f32 0.0, %v927
        %929 = vdwg.mxu0
        %930 = vmatpush.msra.mxu0 0.0
        %931 = vmatpush.msra.mxu0 0.0
        %932 = vmatpush.msra.mxu0 0.0
        %933 = vmatpush.msra.mxu0 0.0
        %934 = vmatpush.msra.mxu0 0.0
        %935 = vmatpush.msra.mxu0 0.0
        %936 = vmatpush.msra.mxu0 0.0
        %937 = vmatpush.msra.mxu0 0.0
        %938 = vmatpush.msra.mxu0 0.0
        %939 = vmatpush.msra.mxu0 0.0
        %940 = vmatpush.msra.mxu0 0.0
        %941 = vmatpush.msra.mxu0 0.0
        %942 = vmatpush.msra.mxu0 %v891
        %943 = vmatpush.msra.mxu0 %v890
        %944 = vmatpush.msra.mxu0 %v889
        %945 = vmatpush.msra.mxu0 %v888
        %946 = vmatmul.f32.gmra.mxu0 %v902
        %v947 = vpop.f32.mrf.mxu0
        %v948 = vadd.f32 0.0, %v947
        %949 = vmatmul.f32.gmra.mxu0 %v905
        %v950 = vpop.f32.mrf.mxu0
        %v951 = vadd.f32 0.0, %v950
        %952 = vdwg.mxu0
        %953 = vmatpush.msra.mxu0 0.0
        %954 = vmatpush.msra.mxu0 0.0
        %955 = vmatpush.msra.mxu0 0.0
        %956 = vmatpush.msra.mxu0 0.0
        %957 = vmatpush.msra.mxu0 0.0
        %958 = vmatpush.msra.mxu0 0.0
        %959 = vmatpush.msra.mxu0 0.0
        %960 = vmatpush.msra.mxu0 0.0
        %961 = vmatpush.msra.mxu0 0.0
        %962 = vmatpush.msra.mxu0 0.0
        %963 = vmatpush.msra.mxu0 0.0
        %964 = vmatpush.msra.mxu0 0.0
        %965 = vmatpush.msra.mxu0 %v895
        %966 = vmatpush.msra.mxu0 %v894
        %967 = vmatpush.msra.mxu0 %v893
        %968 = vmatpush.msra.mxu0 %v892
        %969 = vmatmul.f32.gmra.mxu0 %v902
        %v970 = vpop.f32.mrf.mxu0
        %v971 = vadd.f32 0.0, %v970
        %972 = vmatmul.f32.gmra.mxu0 %v905
        %v973 = vpop.f32.mrf.mxu0
        %v974 = vadd.f32 0.0, %v973
        %975 = vdwg.mxu0
        %978 = vrot.lane.b32.xlu0 %v925, 120
        %v979 = vpop.permute.xlu0 %978
        %980 = vrot.lane.b32.xlu0 %v928, 120
        %v981 = vpop.permute.xlu0 %980
        %982 = vrot.lane.b32.xlu0 %v925, 112
        %v983 = vpop.permute.xlu0 %982
        %984 = vrot.lane.b32.xlu0 %v928, 112
        %v985 = vpop.permute.xlu0 %984
        %986 = vrot.lane.b32.xlu0 %v925, 104
        %v987 = vpop.permute.xlu0 %986
        %988 = vrot.lane.b32.xlu0 %v928, 104
        %v989 = vpop.permute.xlu0 %988
        %992 = vrot.lane.b32.xlu0 %v948, 120
        %v993 = vpop.permute.xlu0 %992
        %994 = vrot.lane.b32.xlu0 %v951, 120
        %v995 = vpop.permute.xlu0 %994
        %996 = vrot.lane.b32.xlu0 %v948, 112
        %v997 = vpop.permute.xlu0 %996
        %998 = vrot.lane.b32.xlu0 %v951, 112
        %v999 = vpop.permute.xlu0 %998
        %1000 = vrot.lane.b32.xlu0 %v948, 104
        %v1001 = vpop.permute.xlu0 %1000
        %1002 = vrot.lane.b32.xlu0 %v951, 104
        %v1003 = vpop.permute.xlu0 %1002
        %1006 = vrot.lane.b32.xlu0 %v971, 120
        %v1007 = vpop.permute.xlu0 %1006
        %1008 = vrot.lane.b32.xlu0 %v974, 120
        %v1009 = vpop.permute.xlu0 %1008
        %1012 = vrot.lane.b32.xlu0 %v971, 112
        %v1013 = vpop.permute.xlu0 %1012
        %1014 = vrot.lane.b32.xlu0 %v974, 112
        %v1015 = vpop.permute.xlu0 %1014
        %1018 = vrot.lane.b32.xlu0 %v971, 104
        %v1019 = vpop.permute.xlu0 %1018
        %1020 = vrot.lane.b32.xlu0 %v974, 104
        %v1021 = vpop.permute.xlu0 %1020
        %vm1024 = vcmask 64512
        %v1025 = vsel %vm1024, %v925, 0
        %v1027 = vsel %vm1024, %v928, 0
        %v1029 = vsel %vm1024, %v948, 0
        %v1031 = vsel %vm1024, %v951, 0
        %1033 = vmatpush.xpose.msra.mxu0 0.0
        %1034 = vmatpush.xpose.msra.mxu0 0.0
        %1035 = vmatpush.xpose.msra.mxu0 0.0
        %1036 = vmatpush.xpose.msra.mxu0 0.0
        %1037 = vmatpush.xpose.msra.mxu0 0.0
        %1038 = vmatpush.xpose.msra.mxu0 0.0
        %1039 = vmatpush.xpose.msra.mxu0 0.0
        %1040 = vmatpush.xpose.msra.mxu0 0.0
        %1041 = vmatpush.xpose.msra.mxu0 0.0
        %1042 = vmatpush.xpose.msra.mxu0 0.0
        %1043 = vmatpush.xpose.msra.mxu0 0.0
        %1044 = vmatpush.xpose.msra.mxu0 0.0
        %1045 = vmatpush.xpose.msra.mxu0 0.0
        %1046 = vmatpush.xpose.msra.mxu0 0.0
        %1047 = vmatpush.xpose.msra.mxu0 %v1031
        %1048 = vmatpush.xpose.msra.mxu0 %v1029
        %1049 = vmatmul.f32.gmra.mxu0 %v1025
        %v1050 = vpop.f32.mrf.mxu0
        %v1051 = vadd.f32 0.0, %v1050
        %1052 = vmatmul.f32.gmra.mxu0 %v1027
        %v1053 = vpop.f32.mrf.mxu0
        %v1054 = vadd.f32 0.0, %v1053
        %1055 = vdwg.mxu0
        %v1056 = vsel %vm1024, %v979, 0
        %v1058 = vsel %vm1024, %v981, 0
        %v1060 = vsel %vm1024, %v993, 0
        %v1062 = vsel %vm1024, %v995, 0
        %1064 = vmatpush.xpose.msra.mxu0 0.0
        %1065 = vmatpush.xpose.msra.mxu0 0.0
        %1066 = vmatpush.xpose.msra.mxu0 0.0
        %1067 = vmatpush.xpose.msra.mxu0 0.0
        %1068 = vmatpush.xpose.msra.mxu0 0.0
        %1069 = vmatpush.xpose.msra.mxu0 0.0
        %1070 = vmatpush.xpose.msra.mxu0 0.0
        %1071 = vmatpush.xpose.msra.mxu0 0.0
        %1072 = vmatpush.xpose.msra.mxu0 0.0
        %1073 = vmatpush.xpose.msra.mxu0 0.0
        %1074 = vmatpush.xpose.msra.mxu0 0.0
        %1075 = vmatpush.xpose.msra.mxu0 0.0
        %1076 = vmatpush.xpose.msra.mxu0 0.0
        %1077 = vmatpush.xpose.msra.mxu0 0.0
        %1078 = vmatpush.xpose.msra.mxu0 %v1062
        %1079 = vmatpush.xpose.msra.mxu0 %v1060
        %1080 = vmatmul.f32.gmra.mxu0 %v1056
        %v1081 = vpop.f32.mrf.mxu0
        %v1082 = vadd.f32 0.0, %v1081
        %1083 = vmatmul.f32.gmra.mxu0 %v1058
        %v1084 = vpop.f32.mrf.mxu0
        %v1085 = vadd.f32 0.0, %v1084
        %1086 = vdwg.mxu0
        %v1087 = vsel %vm1024, %v983, 0
        %v1089 = vsel %vm1024, %v985, 0
        %v1091 = vsel %vm1024, %v997, 0
        %v1093 = vsel %vm1024, %v999, 0
        %1095 = vmatpush.xpose.msra.mxu0 0.0
        %1096 = vmatpush.xpose.msra.mxu0 0.0
        %1097 = vmatpush.xpose.msra.mxu0 0.0
        %1098 = vmatpush.xpose.msra.mxu0 0.0
        %1099 = vmatpush.xpose.msra.mxu0 0.0
        %1100 = vmatpush.xpose.msra.mxu0 0.0
        %1101 = vmatpush.xpose.msra.mxu0 0.0
        %1102 = vmatpush.xpose.msra.mxu0 0.0
        %1103 = vmatpush.xpose.msra.mxu0 0.0
        %1104 = vmatpush.xpose.msra.mxu0 0.0
        %1105 = vmatpush.xpose.msra.mxu0 0.0
        %1106 = vmatpush.xpose.msra.mxu0 0.0
        %1107 = vmatpush.xpose.msra.mxu0 0.0
        %1108 = vmatpush.xpose.msra.mxu0 0.0
        %1109 = vmatpush.xpose.msra.mxu0 %v1093
        %1110 = vmatpush.xpose.msra.mxu0 %v1091
        %1111 = vmatmul.f32.gmra.mxu0 %v1087
        %v1112 = vpop.f32.mrf.mxu0
        %v1113 = vadd.f32 0.0, %v1112
        %1114 = vmatmul.f32.gmra.mxu0 %v1089
        %v1115 = vpop.f32.mrf.mxu0
        %v1116 = vadd.f32 0.0, %v1115
        %1117 = vdwg.mxu0
        %v1118 = vsel %vm1024, %v987, 0
        %v1120 = vsel %vm1024, %v989, 0
        %v1122 = vsel %vm1024, %v1001, 0
        %v1124 = vsel %vm1024, %v1003, 0
        %1126 = vmatpush.xpose.msra.mxu0 0.0
        %1127 = vmatpush.xpose.msra.mxu0 0.0
        %1128 = vmatpush.xpose.msra.mxu0 0.0
        %1129 = vmatpush.xpose.msra.mxu0 0.0
        %1130 = vmatpush.xpose.msra.mxu0 0.0
        %1131 = vmatpush.xpose.msra.mxu0 0.0
        %1132 = vmatpush.xpose.msra.mxu0 0.0
        %1133 = vmatpush.xpose.msra.mxu0 0.0
        %1134 = vmatpush.xpose.msra.mxu0 0.0
        %1135 = vmatpush.xpose.msra.mxu0 0.0
        %1136 = vmatpush.xpose.msra.mxu0 0.0
        %1137 = vmatpush.xpose.msra.mxu0 0.0
        %1138 = vmatpush.xpose.msra.mxu0 0.0
        %1139 = vmatpush.xpose.msra.mxu0 0.0
        %1140 = vmatpush.xpose.msra.mxu0 %v1124
        %1141 = vmatpush.xpose.msra.mxu0 %v1122
        %1142 = vmatmul.f32.gmra.mxu0 %v1118
        %v1143 = vpop.f32.mrf.mxu0
        %v1144 = vadd.f32 0.0, %v1143
        %1145 = vmatmul.f32.gmra.mxu0 %v1120
        %v1146 = vpop.f32.mrf.mxu0
        %v1147 = vadd.f32 0.0, %v1146
        %1148 = vdwg.mxu0
        %vm1149 = vcmask 130048
        %v1150 = vsel %vm1149, %v1051, -inf
        %1151 = vmax.xlane.f32.xlu0 %v1150
        %v1152 = vpop.xlane.xlu0 %1151
        %v1153 = vsel %vm1149, %v1054, -inf
        %1154 = vmax.xlane.f32.xlu0 %v1153
        %v1155 = vpop.xlane.xlu0 %1154
        %v1156 = vsel %vm1149, %v1082, -inf
        %1157 = vmax.xlane.f32.xlu0 %v1156
        %v1158 = vpop.xlane.xlu0 %1157
        %v1159 = vsel %vm1149, %v1085, -inf
        %1160 = vmax.xlane.f32.xlu0 %v1159
        %v1161 = vpop.xlane.xlu0 %1160
        %v1162 = vsel %vm1149, %v1113, -inf
        %1163 = vmax.xlane.f32.xlu0 %v1162
        %v1164 = vpop.xlane.xlu0 %1163
        %v1165 = vsel %vm1149, %v1116, -inf
        %1166 = vmax.xlane.f32.xlu0 %v1165
        %v1167 = vpop.xlane.xlu0 %1166
        %v1168 = vsel %vm1149, %v1144, -inf
        %1169 = vmax.xlane.f32.xlu0 %v1168
        %v1170 = vpop.xlane.xlu0 %1169
        %v1171 = vsel %vm1149, %v1147, -inf
        %1172 = vmax.xlane.f32.xlu0 %v1171
        %v1173 = vpop.xlane.xlu0 %1172
        %v1174 = vsub.f32 %v1051, %v1152
        %v1175 = vsub.f32 %v1054, %v1155
        %v1176 = vsub.f32 %v1082, %v1158
        %v1177 = vsub.f32 %v1085, %v1161
        %v1178 = vsub.f32 %v1113, %v1164
        %v1179 = vsub.f32 %v1116, %v1167
        %v1180 = vsub.f32 %v1144, %v1170
        %v1181 = vsub.f32 %v1147, %v1173
        %v1182 = vmul.f32 %v1174, 1.442695
        %v1183 = vpow.pop %v1182
        %v1184 = vmul.f32 %v1175, 1.442695
        %v1185 = vpow.pop %v1184
        %v1186 = vmul.f32 %v1176, 1.442695
        %v1187 = vpow.pop %v1186
        %v1188 = vmul.f32 %v1177, 1.442695
        %v1189 = vpow.pop %v1188
        %v1190 = vmul.f32 %v1178, 1.442695
        %v1191 = vpow.pop %v1190
        %v1192 = vmul.f32 %v1179, 1.442695
        %v1193 = vpow.pop %v1192
        %v1194 = vmul.f32 %v1180, 1.442695
        %v1195 = vpow.pop %v1194
        %v1196 = vmul.f32 %v1181, 1.442695
        %v1197 = vpow.pop %v1196
        %v1198 = vsel %vm1149, %v1183, 0.0
        %1199 = vadd.xlane.f32.xlu0 %v1198
        %v1200 = vpop.xlane.xlu0 %1199
        %v1201 = vsel %vm1149, %v1185, 0.0
        %1202 = vadd.xlane.f32.xlu0 %v1201
        %v1203 = vpop.xlane.xlu0 %1202
        %v1204 = vsel %vm1149, %v1187, 0.0
        %1205 = vadd.xlane.f32.xlu0 %v1204
        %v1206 = vpop.xlane.xlu0 %1205
        %v1207 = vsel %vm1149, %v1189, 0.0
        %1208 = vadd.xlane.f32.xlu0 %v1207
        %v1209 = vpop.xlane.xlu0 %1208
        %v1210 = vsel %vm1149, %v1191, 0.0
        %1211 = vadd.xlane.f32.xlu0 %v1210
        %v1212 = vpop.xlane.xlu0 %1211
        %v1213 = vsel %vm1149, %v1193, 0.0
        %1214 = vadd.xlane.f32.xlu0 %v1213
        %v1215 = vpop.xlane.xlu0 %1214
        %v1216 = vsel %vm1149, %v1195, 0.0
        %1217 = vadd.xlane.f32.xlu0 %v1216
        %v1218 = vpop.xlane.xlu0 %1217
        %v1219 = vsel %vm1149, %v1197, 0.0
        %1220 = vadd.xlane.f32.xlu0 %v1219
        %v1221 = vpop.xlane.xlu0 %1220
        %v1222 = vrcp.pop %v1200
        %v1223 = vmul.f32 %v1200, %v1222
        %v1224 = vsub.f32 1.0, %v1223
        %v1225 = vmul.f32 %v1222, %v1224
        %v1226 = vadd.f32 %v1222, %v1225
        %vm1227 = vweird.f32 %v1200
        %vm1228 = vweird.f32 %v1222
        %vm1229 = vmor %vm1227, %vm1228
        %v1230 = vsel %vm1229, %v1222, %v1226
        %v1231 = vand.u32 2147483647, %v1200
        %vm1232 = vcmp.eq.f32.partialorder %v1231, 8.507059e+37
        %v1233 = vand.u32 %v1200, 2147483648
        %v1234 = vor.u32 1.1754944e-38, %v1233
        %v1235 = vsel %vm1232, %v1234, %v1230
        %v1236 = vmul.f32 1.0, %v1235
        %v1237 = vrcp.pop %v1203
        %v1238 = vmul.f32 %v1203, %v1237
        %v1239 = vsub.f32 1.0, %v1238
        %v1240 = vmul.f32 %v1237, %v1239
        %v1241 = vadd.f32 %v1237, %v1240
        %vm1242 = vweird.f32 %v1203
        %vm1243 = vweird.f32 %v1237
        %vm1244 = vmor %vm1242, %vm1243
        %v1245 = vsel %vm1244, %v1237, %v1241
        %v1246 = vand.u32 2147483647, %v1203
        %vm1247 = vcmp.eq.f32.partialorder %v1246, 8.507059e+37
        %v1248 = vand.u32 %v1203, 2147483648
        %v1249 = vor.u32 1.1754944e-38, %v1248
        %v1250 = vsel %vm1247, %v1249, %v1245
        %v1251 = vmul.f32 1.0, %v1250
        %v1252 = vrcp.pop %v1206
        %v1253 = vmul.f32 %v1206, %v1252
        %v1254 = vsub.f32 1.0, %v1253
        %v1255 = vmul.f32 %v1252, %v1254
        %v1256 = vadd.f32 %v1252, %v1255
        %vm1257 = vweird.f32 %v1206
        %vm1258 = vweird.f32 %v1252
        %vm1259 = vmor %vm1257, %vm1258
        %v1260 = vsel %vm1259, %v1252, %v1256
        %v1261 = vand.u32 2147483647, %v1206
        %vm1262 = vcmp.eq.f32.partialorder %v1261, 8.507059e+37
        %v1263 = vand.u32 %v1206, 2147483648
        %v1264 = vor.u32 1.1754944e-38, %v1263
        %v1265 = vsel %vm1262, %v1264, %v1260
        %v1266 = vmul.f32 1.0, %v1265
        %v1267 = vrcp.pop %v1209
        %v1268 = vmul.f32 %v1209, %v1267
        %v1269 = vsub.f32 1.0, %v1268
        %v1270 = vmul.f32 %v1267, %v1269
        %v1271 = vadd.f32 %v1267, %v1270
        %vm1272 = vweird.f32 %v1209
        %vm1273 = vweird.f32 %v1267
        %vm1274 = vmor %vm1272, %vm1273
        %v1275 = vsel %vm1274, %v1267, %v1271
        %v1276 = vand.u32 2147483647, %v1209
        %vm1277 = vcmp.eq.f32.partialorder %v1276, 8.507059e+37
        %v1278 = vand.u32 %v1209, 2147483648
        %v1279 = vor.u32 1.1754944e-38, %v1278
        %v1280 = vsel %vm1277, %v1279, %v1275
        %v1281 = vmul.f32 1.0, %v1280
        %v1282 = vrcp.pop %v1212
        %v1283 = vmul.f32 %v1212, %v1282
        %v1284 = vsub.f32 1.0, %v1283
        %v1285 = vmul.f32 %v1282, %v1284
        %v1286 = vadd.f32 %v1282, %v1285
        %vm1287 = vweird.f32 %v1212
        %vm1288 = vweird.f32 %v1282
        %vm1289 = vmor %vm1287, %vm1288
        %v1290 = vsel %vm1289, %v1282, %v1286
        %v1291 = vand.u32 2147483647, %v1212
        %vm1292 = vcmp.eq.f32.partialorder %v1291, 8.507059e+37
        %v1293 = vand.u32 %v1212, 2147483648
        %v1294 = vor.u32 1.1754944e-38, %v1293
        %v1295 = vsel %vm1292, %v1294, %v1290
        %v1296 = vmul.f32 1.0, %v1295
        %v1297 = vrcp.pop %v1215
        %v1298 = vmul.f32 %v1215, %v1297
        %v1299 = vsub.f32 1.0, %v1298
        %v1300 = vmul.f32 %v1297, %v1299
        %v1301 = vadd.f32 %v1297, %v1300
        %vm1302 = vweird.f32 %v1215
        %vm1303 = vweird.f32 %v1297
        %vm1304 = vmor %vm1302, %vm1303
        %v1305 = vsel %vm1304, %v1297, %v1301
        %v1306 = vand.u32 2147483647, %v1215
        %vm1307 = vcmp.eq.f32.partialorder %v1306, 8.507059e+37
        %v1308 = vand.u32 %v1215, 2147483648
        %v1309 = vor.u32 1.1754944e-38, %v1308
        %v1310 = vsel %vm1307, %v1309, %v1305
        %v1311 = vmul.f32 1.0, %v1310
        %v1312 = vrcp.pop %v1218
        %v1313 = vmul.f32 %v1218, %v1312
        %v1314 = vsub.f32 1.0, %v1313
        %v1315 = vmul.f32 %v1312, %v1314
        %v1316 = vadd.f32 %v1312, %v1315
        %vm1317 = vweird.f32 %v1218
        %vm1318 = vweird.f32 %v1312
        %vm1319 = vmor %vm1317, %vm1318
        %v1320 = vsel %vm1319, %v1312, %v1316
        %v1321 = vand.u32 2147483647, %v1218
        %vm1322 = vcmp.eq.f32.partialorder %v1321, 8.507059e+37
        %v1323 = vand.u32 %v1218, 2147483648
        %v1324 = vor.u32 1.1754944e-38, %v1323
        %v1325 = vsel %vm1322, %v1324, %v1320
        %v1326 = vmul.f32 1.0, %v1325
        %v1327 = vrcp.pop %v1221
        %v1328 = vmul.f32 %v1221, %v1327
        %v1329 = vsub.f32 1.0, %v1328
        %v1330 = vmul.f32 %v1327, %v1329
        %v1331 = vadd.f32 %v1327, %v1330
        %vm1332 = vweird.f32 %v1221
        %vm1333 = vweird.f32 %v1327
        %vm1334 = vmor %vm1332, %vm1333
        %v1335 = vsel %vm1334, %v1327, %v1331
        %v1336 = vand.u32 2147483647, %v1221
        %vm1337 = vcmp.eq.f32.partialorder %v1336, 8.507059e+37
        %v1338 = vand.u32 %v1221, 2147483648
        %v1339 = vor.u32 1.1754944e-38, %v1338
        %v1340 = vsel %vm1337, %v1339, %v1335
        %v1341 = vmul.f32 1.0, %v1340
        %v1342 = vmul.f32 %v1183, %v1236
        %v1343 = vmul.f32 %v1185, %v1251
        %v1344 = vmul.f32 %v1187, %v1266
        %v1345 = vmul.f32 %v1189, %v1281
        %v1346 = vmul.f32 %v1191, %v1296
        %v1347 = vmul.f32 %v1193, %v1311
        %v1348 = vmul.f32 %v1195, %v1326
        %v1349 = vmul.f32 %v1197, %v1341
        %v1351 = vsel %vm1149, %v1342, 0
        %v1354 = vsel %vm1149, %v1343, 0
        %1356 = vmatpush.msra.mxu0 0.0
        %1357 = vmatpush.msra.mxu0 0.0
        %1358 = vmatpush.msra.mxu0 0.0
        %1359 = vmatpush.msra.mxu0 0.0
        %1360 = vmatpush.msra.mxu0 0.0
        %1361 = vmatpush.msra.mxu0 0.0
        %1362 = vmatpush.msra.mxu0 0.0
        %1363 = vmatpush.msra.mxu0 0.0
        %1364 = vmatpush.msra.mxu0 0.0
        %1365 = vmatpush.msra.mxu0 0.0
        %1366 = vmatpush.msra.mxu0 0.0
        %1367 = vmatpush.msra.mxu0 0.0
        %1368 = vmatpush.msra.mxu0 0.0
        %1369 = vmatpush.msra.mxu0 0.0
        %1370 = vmatpush.msra.mxu0 %v974
        %1371 = vmatpush.msra.mxu0 %v971
        %1372 = vmatmul.f32.gmra.mxu0 %v1351
        %v1373 = vpop.f32.mrf.mxu0
        %v1374 = vadd.f32 0.0, %v1373
        %1375 = vmatmul.f32.gmra.mxu0 %v1354
        %v1376 = vpop.f32.mrf.mxu0
        %v1377 = vadd.f32 0.0, %v1376
        %1378 = vdwg.mxu0
        %v1380 = vsel %vm1149, %v1344, 0
        %v1383 = vsel %vm1149, %v1345, 0
        %1385 = vmatpush.msra.mxu0 0.0
        %1386 = vmatpush.msra.mxu0 0.0
        %1387 = vmatpush.msra.mxu0 0.0
        %1388 = vmatpush.msra.mxu0 0.0
        %1389 = vmatpush.msra.mxu0 0.0
        %1390 = vmatpush.msra.mxu0 0.0
        %1391 = vmatpush.msra.mxu0 0.0
        %1392 = vmatpush.msra.mxu0 0.0
        %1393 = vmatpush.msra.mxu0 0.0
        %1394 = vmatpush.msra.mxu0 0.0
        %1395 = vmatpush.msra.mxu0 0.0
        %1396 = vmatpush.msra.mxu0 0.0
        %1397 = vmatpush.msra.mxu0 0.0
        %1398 = vmatpush.msra.mxu0 0.0
        %1399 = vmatpush.msra.mxu0 %v1009
        %1400 = vmatpush.msra.mxu0 %v1007
        %1401 = vmatmul.f32.gmra.mxu0 %v1380
        %v1402 = vpop.f32.mrf.mxu0
        %v1403 = vadd.f32 0.0, %v1402
        %1404 = vmatmul.f32.gmra.mxu0 %v1383
        %v1405 = vpop.f32.mrf.mxu0
        %v1406 = vadd.f32 0.0, %v1405
        %1407 = vdwg.mxu0
        %v1409 = vsel %vm1149, %v1346, 0
        %v1412 = vsel %vm1149, %v1347, 0
        %1414 = vmatpush.msra.mxu0 0.0
        %1415 = vmatpush.msra.mxu0 0.0
        %1416 = vmatpush.msra.mxu0 0.0
        %1417 = vmatpush.msra.mxu0 0.0
        %1418 = vmatpush.msra.mxu0 0.0
        %1419 = vmatpush.msra.mxu0 0.0
        %1420 = vmatpush.msra.mxu0 0.0
        %1421 = vmatpush.msra.mxu0 0.0
        %1422 = vmatpush.msra.mxu0 0.0
        %1423 = vmatpush.msra.mxu0 0.0
        %1424 = vmatpush.msra.mxu0 0.0
        %1425 = vmatpush.msra.mxu0 0.0
        %1426 = vmatpush.msra.mxu0 0.0
        %1427 = vmatpush.msra.mxu0 0.0
        %1428 = vmatpush.msra.mxu0 %v1015
        %1429 = vmatpush.msra.mxu0 %v1013
        %1430 = vmatmul.f32.gmra.mxu0 %v1409
        %v1431 = vpop.f32.mrf.mxu0
        %v1432 = vadd.f32 0.0, %v1431
        %1433 = vmatmul.f32.gmra.mxu0 %v1412
        %v1434 = vpop.f32.mrf.mxu0
        %v1435 = vadd.f32 0.0, %v1434
        %1436 = vdwg.mxu0
        %v1438 = vsel %vm1149, %v1348, 0
        %v1441 = vsel %vm1149, %v1349, 0
        %1443 = vmatpush.msra.mxu0 0.0
        %1444 = vmatpush.msra.mxu0 0.0
        %1445 = vmatpush.msra.mxu0 0.0
        %1446 = vmatpush.msra.mxu0 0.0
        %1447 = vmatpush.msra.mxu0 0.0
        %1448 = vmatpush.msra.mxu0 0.0
        %1449 = vmatpush.msra.mxu0 0.0
        %1450 = vmatpush.msra.mxu0 0.0
        %1451 = vmatpush.msra.mxu0 0.0
        %1452 = vmatpush.msra.mxu0 0.0
        %1453 = vmatpush.msra.mxu0 0.0
        %1454 = vmatpush.msra.mxu0 0.0
        %1455 = vmatpush.msra.mxu0 0.0
        %1456 = vmatpush.msra.mxu0 0.0
        %1457 = vmatpush.msra.mxu0 %v1021
        %1458 = vmatpush.msra.mxu0 %v1019
        %1459 = vmatmul.f32.gmra.mxu0 %v1438
        %v1460 = vpop.f32.mrf.mxu0
        %v1461 = vadd.f32 0.0, %v1460
        %1462 = vmatmul.f32.gmra.mxu0 %v1441
        %v1463 = vpop.f32.mrf.mxu0
        %v1464 = vadd.f32 0.0, %v1463
        %1465 = vdwg.mxu0
        %v1467 = vsel %vm1024, %v1374, 0
        %v1470 = vsel %vm1024, %v1377, 0
        %1472 = vmatpush.msra.mxu0 0.0
        %1473 = vmatpush.msra.mxu0 0.0
        %1474 = vmatpush.msra.mxu0 0.0
        %1475 = vmatpush.msra.mxu0 0.0
        %1476 = vmatpush.msra.mxu0 0.0
        %1477 = vmatpush.msra.mxu0 0.0
        %1478 = vmatpush.msra.mxu0 0.0
        %1479 = vmatpush.msra.mxu0 0.0
        %1480 = vmatpush.msra.mxu0 0.0
        %1481 = vmatpush.msra.mxu0 0.0
        %1482 = vmatpush.msra.mxu0 0.0
        %1483 = vmatpush.msra.mxu0 0.0
        %1484 = vmatpush.msra.mxu0 0.0
        %1485 = vmatpush.msra.mxu0 0.0
        %1486 = vmatpush.msra.mxu0 0.0
        %1487 = vmatpush.msra.mxu0 %v896
        %1488 = vmatmul.f32.gmra.mxu0 %v1467
        %v1489 = vpop.f32.mrf.mxu0
        %v1490 = vadd.f32 0.0, %v1489
        %1491 = vmatmul.f32.gmra.mxu0 %v1470
        %v1492 = vpop.f32.mrf.mxu0
        %v1493 = vadd.f32 0.0, %v1492
        %1494 = vdwg.mxu0
        %v1496 = vsel %vm1024, %v1403, 0
        %v1499 = vsel %vm1024, %v1406, 0
        %1501 = vmatpush.msra.mxu0 0.0
        %1502 = vmatpush.msra.mxu0 0.0
        %1503 = vmatpush.msra.mxu0 0.0
        %1504 = vmatpush.msra.mxu0 0.0
        %1505 = vmatpush.msra.mxu0 0.0
        %1506 = vmatpush.msra.mxu0 0.0
        %1507 = vmatpush.msra.mxu0 0.0
        %1508 = vmatpush.msra.mxu0 0.0
        %1509 = vmatpush.msra.mxu0 0.0
        %1510 = vmatpush.msra.mxu0 0.0
        %1511 = vmatpush.msra.mxu0 0.0
        %1512 = vmatpush.msra.mxu0 0.0
        %1513 = vmatpush.msra.mxu0 0.0
        %1514 = vmatpush.msra.mxu0 0.0
        %1515 = vmatpush.msra.mxu0 0.0
        %1516 = vmatpush.msra.mxu0 %v897
        %1517 = vmatmul.f32.gmra.mxu0 %v1496
        %v1518 = vpop.f32.mrf.mxu0
        %v1519 = vadd.f32 0.0, %v1518
        %1520 = vmatmul.f32.gmra.mxu0 %v1499
        %v1521 = vpop.f32.mrf.mxu0
        %v1522 = vadd.f32 0.0, %v1521
        %1523 = vdwg.mxu0
        %v1525 = vsel %vm1024, %v1432, 0
        %v1528 = vsel %vm1024, %v1435, 0
        %1530 = vmatpush.msra.mxu0 0.0
        %1531 = vmatpush.msra.mxu0 0.0
        %1532 = vmatpush.msra.mxu0 0.0
        %1533 = vmatpush.msra.mxu0 0.0
        %1534 = vmatpush.msra.mxu0 0.0
        %1535 = vmatpush.msra.mxu0 0.0
        %1536 = vmatpush.msra.mxu0 0.0
        %1537 = vmatpush.msra.mxu0 0.0
        %1538 = vmatpush.msra.mxu0 0.0
        %1539 = vmatpush.msra.mxu0 0.0
        %1540 = vmatpush.msra.mxu0 0.0
        %1541 = vmatpush.msra.mxu0 0.0
        %1542 = vmatpush.msra.mxu0 0.0
        %1543 = vmatpush.msra.mxu0 0.0
        %1544 = vmatpush.msra.mxu0 0.0
        %1545 = vmatpush.msra.mxu0 %v898
        %1546 = vmatmul.f32.gmra.mxu0 %v1525
        %v1547 = vpop.f32.mrf.mxu0
        %v1548 = vadd.f32 0.0, %v1547
        %1549 = vmatmul.f32.gmra.mxu0 %v1528
        %v1550 = vpop.f32.mrf.mxu0
        %v1551 = vadd.f32 0.0, %v1550
        %1552 = vdwg.mxu0
        %v1554 = vsel %vm1024, %v1461, 0
        %v1557 = vsel %vm1024, %v1464, 0
        %1559 = vmatpush.msra.mxu0 0.0
        %1560 = vmatpush.msra.mxu0 0.0
        %1561 = vmatpush.msra.mxu0 0.0
        %1562 = vmatpush.msra.mxu0 0.0
        %1563 = vmatpush.msra.mxu0 0.0
        %1564 = vmatpush.msra.mxu0 0.0
        %1565 = vmatpush.msra.mxu0 0.0
        %1566 = vmatpush.msra.mxu0 0.0
        %1567 = vmatpush.msra.mxu0 0.0
        %1568 = vmatpush.msra.mxu0 0.0
        %1569 = vmatpush.msra.mxu0 0.0
        %1570 = vmatpush.msra.mxu0 0.0
        %1571 = vmatpush.msra.mxu0 0.0
        %1572 = vmatpush.msra.mxu0 0.0
        %1573 = vmatpush.msra.mxu0 0.0
        %1574 = vmatpush.msra.mxu0 %v899
        %1575 = vmatmul.f32.gmra.mxu0 %v1554
        %v1576 = vpop.f32.mrf.mxu0
        %v1577 = vadd.f32 0.0, %v1576
        %1578 = vmatmul.f32.gmra.mxu0 %v1557
        %v1579 = vpop.f32.mrf.mxu0
        %v1580 = vadd.f32 0.0, %v1579
        %1581 = vdwg.mxu0
        %v1582 = vsel %vm822, %v1490, 0.0
        %v1583 = vsel %vm822, %v1519, 0.0
        %v1584 = vadd.f32 %v1582, %v1583
        %v1585 = vsel %vm822, %v1548, 0.0
        %v1586 = vadd.f32 %v1584, %v1585
        %v1587 = vsel %vm822, %v1577, 0.0
        %v1588 = vadd.f32 %v1586, %v1587
        %v1589 = vsel %vm822, %v1493, 0.0
        %v1590 = vsel %vm822, %v1522, 0.0
        %v1591 = vadd.f32 %v1589, %v1590
        %v1592 = vsel %vm822, %v1551, 0.0
        %v1593 = vadd.f32 %v1591, %v1592
        %v1594 = vsel %vm822, %v1580, 0.0
        %v1595 = vadd.f32 %v1593, %v1594
        %v1597 = vperm.slane %v900, 0
        %v1599 = vadd.f32 %v1588, %v1597
        %v1600 = vadd.f32 %v1595, %v1597
        %v1601 = vadd.f32 %v818, %v1599
        %v1602 = vadd.f32 %v819, %v1600
        %v1603 = vld [vmem:[%s9] sm:$0x1]
        %v1604 = vld [vmem:[%s10] sm:$0x1]
        %v1605 = vsel %vm822, %v1601, 0.0
        %1606 = vadd.xlane.f32.xlu0 %v1605
        %v1607 = vpop.xlane.xlu0 %1606
        %v1608 = vsel %vm822, %v1602, 0.0
        %1609 = vadd.xlane.f32.xlu0 %v1608
        %v1610 = vpop.xlane.xlu0 %1609
        %v1611 = vmul.f32 %v1607, %v835
        %v1612 = vmul.f32 %v1610, %v835
        %v1613 = vsub.f32 %v1601, %v1611
        %v1614 = vsub.f32 %v1602, %v1612
        %v1615 = vmul.f32 %v1613, %v1613
        %v1616 = vmul.f32 %v1614, %v1614
        %v1617 = vsel %vm822, %v1615, 0.0
        %1618 = vadd.xlane.f32.xlu0 %v1617
        %v1619 = vpop.xlane.xlu0 %1618
        %v1620 = vsel %vm822, %v1616, 0.0
        %1621 = vadd.xlane.f32.xlu0 %v1620
        %v1622 = vpop.xlane.xlu0 %1621
        %v1623 = vmul.f32 %v1619, %v835
        %v1624 = vmul.f32 %v1622, %v835
        %v1625 = vadd.f32 %v1623, 1e-05
        %v1626 = vadd.f32 %v1624, 1e-05
        %v1627 = vrsqrt.pop %v1625
        %v1628 = vmul.f32 %v1627, %v1625
        %v1629 = vmul.f32 %v1628, %v1627
        %v1630 = vmul.f32 0.5, %v1629
        %v1631 = vsub.f32 1.5, %v1630
        %v1632 = vmul.f32 %v1627, %v1631
        %vm1633 = vweird.f32 %v1625
        %vm1634 = vweird.f32 %v1627
        %vm1635 = vmor %vm1633, %vm1634
        %v1636 = vsel %vm1635, %v1627, %v1632
        %v1637 = vrsqrt.pop %v1626
        %v1638 = vmul.f32 %v1637, %v1626
        %v1639 = vmul.f32 %v1638, %v1637
        %v1640 = vmul.f32 0.5, %v1639
        %v1641 = vsub.f32 1.5, %v1640
        %v1642 = vmul.f32 %v1637, %v1641
        %vm1643 = vweird.f32 %v1626
        %vm1644 = vweird.f32 %v1637
        %vm1645 = vmor %vm1643, %vm1644
        %v1646 = vsel %vm1645, %v1637, %v1642
        %v1647 = vmul.f32 %v1613, %v1636
        %v1648 = vmul.f32 %v1614, %v1646
        %v1650 = vperm.slane %v1603, 0
        %v1652 = vmul.f32 %v1647, %v1650
        %v1653 = vmul.f32 %v1648, %v1650
        %v1655 = vperm.slane %v1604, 0
        %v1657 = vadd.f32 %v1652, %v1655
        %v1658 = vadd.f32 %v1653, %v1655
        %v1659 = vld [vmem:[%s716] sm:$0xff]
        %v1660 = vld [vmem:[#allocation7] sm:$0xff]
        %v1661 = vld [vmem:[#allocation7 + $0x8] sm:$0xff]
        %v1662 = vld [vmem:[#allocation7 + $0x10] sm:$0xff]
        %v1663 = vld [vmem:[#allocation7 + $0x18] sm:$0xff]
        %v1664 = vld [vmem:[#allocation8] sm:$0xff]
        %v1665 = vld [vmem:[#allocation8 + $0x8] sm:$0xff]
        %v1666 = vld [vmem:[#allocation8 + $0x10] sm:$0xff]
        %v1667 = vld [vmem:[#allocation10] sm:$0xff]
        %v1668 = vld [vmem:[#allocation10 + $0x8] sm:$0xff]
        %v1669 = vld [vmem:[#allocation10 + $0x10] sm:$0xff]
        %v1670 = vld [vmem:[#allocation11] sm:$0xff]
        %v1671 = vld [vmem:[#allocation11 + $0x8] sm:$0xff]
        %v1672 = vld [vmem:[#allocation11 + $0x10] sm:$0xff]
        %v1673 = vld [vmem:[#allocation11 + $0x18] sm:$0xff]
        %v1674 = vld [vmem:[%s15] sm:$0x1]
        %v1676 = vsel %vm822, %v1657, 0
        %v1679 = vsel %vm822, %v1658, 0
        %1681 = vmatpush.msra.mxu0 0.0
        %1682 = vmatpush.msra.mxu0 0.0
        %1683 = vmatpush.msra.mxu0 0.0
        %1684 = vmatpush.msra.mxu0 0.0
        %1685 = vmatpush.msra.mxu0 0.0
        %1686 = vmatpush.msra.mxu0 0.0
        %1687 = vmatpush.msra.mxu0 0.0
        %1688 = vmatpush.msra.mxu0 0.0
        %1689 = vmatpush.msra.mxu0 0.0
        %1690 = vmatpush.msra.mxu0 0.0
        %1691 = vmatpush.msra.mxu0 0.0
        %1692 = vmatpush.msra.mxu0 0.0
        %1693 = vmatpush.msra.mxu0 %v1663
        %1694 = vmatpush.msra.mxu0 %v1662
        %1695 = vmatpush.msra.mxu0 %v1661
        %1696 = vmatpush.msra.mxu0 %v1660
        %1697 = vmatmul.f32.gmra.mxu0 %v1676
        %v1698 = vpop.f32.mrf.mxu0
        %v1699 = vadd.f32 0.0, %v1698
        %1700 = vmatmul.f32.gmra.mxu0 %v1679
        %v1701 = vpop.f32.mrf.mxu0
        %v1702 = vadd.f32 0.0, %v1701
        %1703 = vdwg.mxu0
        %vm1704 = vcmask 195584
        %v1706 = vsel %vm1704, %v1659, 0
        %1708 = vmatpush.msra.mxu0 0.0
        %1709 = vmatpush.msra.mxu0 0.0
        %1710 = vmatpush.msra.mxu0 0.0
        %1711 = vmatpush.msra.mxu0 0.0
        %1712 = vmatpush.msra.mxu0 0.0
        %1713 = vmatpush.msra.mxu0 0.0
        %1714 = vmatpush.msra.mxu0 0.0
        %1715 = vmatpush.msra.mxu0 0.0
        %1716 = vmatpush.msra.mxu0 0.0
        %1717 = vmatpush.msra.mxu0 0.0
        %1718 = vmatpush.msra.mxu0 0.0
        %1719 = vmatpush.msra.mxu0 0.0
        %1720 = vmatpush.msra.mxu0 0.0
        %1721 = vmatpush.msra.mxu0 %v1666
        %1722 = vmatpush.msra.mxu0 %v1665
        %1723 = vmatpush.msra.mxu0 %v1664
        %1724 = vmatmul.f32.gmra.mxu0 %v1706
        %v1725 = vpop.f32.mrf.mxu0
        %v1726 = vadd.f32 0.0, %v1725
        %1727 = vdwg.mxu0
        %1728 = vmatpush.msra.mxu0 0.0
        %1729 = vmatpush.msra.mxu0 0.0
        %1730 = vmatpush.msra.mxu0 0.0
        %1731 = vmatpush.msra.mxu0 0.0
        %1732 = vmatpush.msra.mxu0 0.0
        %1733 = vmatpush.msra.mxu0 0.0
        %1734 = vmatpush.msra.mxu0 0.0
        %1735 = vmatpush.msra.mxu0 0.0
        %1736 = vmatpush.msra.mxu0 0.0
        %1737 = vmatpush.msra.mxu0 0.0
        %1738 = vmatpush.msra.mxu0 0.0
        %1739 = vmatpush.msra.mxu0 0.0
        %1740 = vmatpush.msra.mxu0 0.0
        %1741 = vmatpush.msra.mxu0 %v1669
        %1742 = vmatpush.msra.mxu0 %v1668
        %1743 = vmatpush.msra.mxu0 %v1667
        %1744 = vmatmul.f32.gmra.mxu0 %v1706
        %v1745 = vpop.f32.mrf.mxu0
        %v1746 = vadd.f32 0.0, %v1745
        %1747 = vdwg.mxu0
        %1750 = vrot.lane.b32.xlu0 %v1699, 120
        %v1751 = vpop.permute.xlu0 %1750
        %1752 = vrot.lane.b32.xlu0 %v1702, 120
        %v1753 = vpop.permute.xlu0 %1752
        %1754 = vrot.lane.b32.xlu0 %v1699, 112
        %v1755 = vpop.permute.xlu0 %1754
        %1756 = vrot.lane.b32.xlu0 %v1702, 112
        %v1757 = vpop.permute.xlu0 %1756
        %1758 = vrot.lane.b32.xlu0 %v1699, 104
        %v1759 = vpop.permute.xlu0 %1758
        %1760 = vrot.lane.b32.xlu0 %v1702, 104
        %v1761 = vpop.permute.xlu0 %1760
        %1763 = vrot.lane.b32.xlu0 %v1726, 120
        %v1764 = vpop.permute.xlu0 %1763
        %1765 = vrot.lane.b32.xlu0 %v1726, 112
        %v1766 = vpop.permute.xlu0 %1765
        %1767 = vrot.lane.b32.xlu0 %v1726, 104
        %v1768 = vpop.permute.xlu0 %1767
        %1770 = vrot.lane.b32.xlu0 %v1746, 120
        %v1771 = vpop.permute.xlu0 %1770
        %1773 = vrot.lane.b32.xlu0 %v1746, 112
        %v1774 = vpop.permute.xlu0 %1773
        %1776 = vrot.lane.b32.xlu0 %v1746, 104
        %v1777 = vpop.permute.xlu0 %1776
        %v1779 = vsel %vm1024, %v1699, 0
        %v1781 = vsel %vm1024, %v1702, 0
        %v1783 = vsel %vm1024, %v1726, 0
        %1785 = vmatpush.xpose.msra.mxu0 0.0
        %1786 = vmatpush.xpose.msra.mxu0 0.0
        %1787 = vmatpush.xpose.msra.mxu0 0.0
        %1788 = vmatpush.xpose.msra.mxu0 0.0
        %1789 = vmatpush.xpose.msra.mxu0 0.0
        %1790 = vmatpush.xpose.msra.mxu0 0.0
        %1791 = vmatpush.xpose.msra.mxu0 0.0
        %1792 = vmatpush.xpose.msra.mxu0 0.0
        %1793 = vmatpush.xpose.msra.mxu0 0.0
        %1794 = vmatpush.xpose.msra.mxu0 0.0
        %1795 = vmatpush.xpose.msra.mxu0 0.0
        %1796 = vmatpush.xpose.msra.mxu0 0.0
        %1797 = vmatpush.xpose.msra.mxu0 0.0
        %1798 = vmatpush.xpose.msra.mxu0 0.0
        %1799 = vmatpush.xpose.msra.mxu0 0.0
        %1800 = vmatpush.xpose.msra.mxu0 %v1783
        %1801 = vmatmul.f32.gmra.mxu0 %v1779
        %v1802 = vpop.f32.mrf.mxu0
        %v1803 = vadd.f32 0.0, %v1802
        %1804 = vmatmul.f32.gmra.mxu0 %v1781
        %v1805 = vpop.f32.mrf.mxu0
        %v1806 = vadd.f32 0.0, %v1805
        %1807 = vdwg.mxu0
        %v1808 = vsel %vm1024, %v1751, 0
        %v1810 = vsel %vm1024, %v1753, 0
        %v1812 = vsel %vm1024, %v1764, 0
        %1814 = vmatpush.xpose.msra.mxu0 0.0
        %1815 = vmatpush.xpose.msra.mxu0 0.0
        %1816 = vmatpush.xpose.msra.mxu0 0.0
        %1817 = vmatpush.xpose.msra.mxu0 0.0
        %1818 = vmatpush.xpose.msra.mxu0 0.0
        %1819 = vmatpush.xpose.msra.mxu0 0.0
        %1820 = vmatpush.xpose.msra.mxu0 0.0
        %1821 = vmatpush.xpose.msra.mxu0 0.0
        %1822 = vmatpush.xpose.msra.mxu0 0.0
        %1823 = vmatpush.xpose.msra.mxu0 0.0
        %1824 = vmatpush.xpose.msra.mxu0 0.0
        %1825 = vmatpush.xpose.msra.mxu0 0.0
        %1826 = vmatpush.xpose.msra.mxu0 0.0
        %1827 = vmatpush.xpose.msra.mxu0 0.0
        %1828 = vmatpush.xpose.msra.mxu0 0.0
        %1829 = vmatpush.xpose.msra.mxu0 %v1812
        %1830 = vmatmul.f32.gmra.mxu0 %v1808
        %v1831 = vpop.f32.mrf.mxu0
        %v1832 = vadd.f32 0.0, %v1831
        %1833 = vmatmul.f32.gmra.mxu0 %v1810
        %v1834 = vpop.f32.mrf.mxu0
        %v1835 = vadd.f32 0.0, %v1834
        %1836 = vdwg.mxu0
        %v1837 = vsel %vm1024, %v1755, 0
        %v1839 = vsel %vm1024, %v1757, 0
        %v1841 = vsel %vm1024, %v1766, 0
        %1843 = vmatpush.xpose.msra.mxu0 0.0
        %1844 = vmatpush.xpose.msra.mxu0 0.0
        %1845 = vmatpush.xpose.msra.mxu0 0.0
        %1846 = vmatpush.xpose.msra.mxu0 0.0
        %1847 = vmatpush.xpose.msra.mxu0 0.0
        %1848 = vmatpush.xpose.msra.mxu0 0.0
        %1849 = vmatpush.xpose.msra.mxu0 0.0
        %1850 = vmatpush.xpose.msra.mxu0 0.0
        %1851 = vmatpush.xpose.msra.mxu0 0.0
        %1852 = vmatpush.xpose.msra.mxu0 0.0
        %1853 = vmatpush.xpose.msra.mxu0 0.0
        %1854 = vmatpush.xpose.msra.mxu0 0.0
        %1855 = vmatpush.xpose.msra.mxu0 0.0
        %1856 = vmatpush.xpose.msra.mxu0 0.0
        %1857 = vmatpush.xpose.msra.mxu0 0.0
        %1858 = vmatpush.xpose.msra.mxu0 %v1841
        %1859 = vmatmul.f32.gmra.mxu0 %v1837
        %v1860 = vpop.f32.mrf.mxu0
        %v1861 = vadd.f32 0.0, %v1860
        %1862 = vmatmul.f32.gmra.mxu0 %v1839
        %v1863 = vpop.f32.mrf.mxu0
        %v1864 = vadd.f32 0.0, %v1863
        %1865 = vdwg.mxu0
        %v1866 = vsel %vm1024, %v1759, 0
        %v1868 = vsel %vm1024, %v1761, 0
        %v1870 = vsel %vm1024, %v1768, 0
        %1872 = vmatpush.xpose.msra.mxu0 0.0
        %1873 = vmatpush.xpose.msra.mxu0 0.0
        %1874 = vmatpush.xpose.msra.mxu0 0.0
        %1875 = vmatpush.xpose.msra.mxu0 0.0
        %1876 = vmatpush.xpose.msra.mxu0 0.0
        %1877 = vmatpush.xpose.msra.mxu0 0.0
        %1878 = vmatpush.xpose.msra.mxu0 0.0
        %1879 = vmatpush.xpose.msra.mxu0 0.0
        %1880 = vmatpush.xpose.msra.mxu0 0.0
        %1881 = vmatpush.xpose.msra.mxu0 0.0
        %1882 = vmatpush.xpose.msra.mxu0 0.0
        %1883 = vmatpush.xpose.msra.mxu0 0.0
        %1884 = vmatpush.xpose.msra.mxu0 0.0
        %1885 = vmatpush.xpose.msra.mxu0 0.0
        %1886 = vmatpush.xpose.msra.mxu0 0.0
        %1887 = vmatpush.xpose.msra.mxu0 %v1870
        %1888 = vmatmul.f32.gmra.mxu0 %v1866
        %v1889 = vpop.f32.mrf.mxu0
        %v1890 = vadd.f32 0.0, %v1889
        %1891 = vmatmul.f32.gmra.mxu0 %v1868
        %v1892 = vpop.f32.mrf.mxu0
        %v1893 = vadd.f32 0.0, %v1892
        %1894 = vdwg.mxu0
        %v1895 = vsel %vm1024, %v1803, -inf
        %1896 = vmax.xlane.f32.xlu0 %v1895
        %v1897 = vpop.xlane.xlu0 %1896
        %v1898 = vsel %vm1024, %v1806, -inf
        %1899 = vmax.xlane.f32.xlu0 %v1898
        %v1900 = vpop.xlane.xlu0 %1899
        %v1901 = vsel %vm1024, %v1832, -inf
        %1902 = vmax.xlane.f32.xlu0 %v1901
        %v1903 = vpop.xlane.xlu0 %1902
        %v1904 = vsel %vm1024, %v1835, -inf
        %1905 = vmax.xlane.f32.xlu0 %v1904
        %v1906 = vpop.xlane.xlu0 %1905
        %v1907 = vsel %vm1024, %v1861, -inf
        %1908 = vmax.xlane.f32.xlu0 %v1907
        %v1909 = vpop.xlane.xlu0 %1908
        %v1910 = vsel %vm1024, %v1864, -inf
        %1911 = vmax.xlane.f32.xlu0 %v1910
        %v1912 = vpop.xlane.xlu0 %1911
        %v1913 = vsel %vm1024, %v1890, -inf
        %1914 = vmax.xlane.f32.xlu0 %v1913
        %v1915 = vpop.xlane.xlu0 %1914
        %v1916 = vsel %vm1024, %v1893, -inf
        %1917 = vmax.xlane.f32.xlu0 %v1916
        %v1918 = vpop.xlane.xlu0 %1917
        %v1919 = vsub.f32 %v1803, %v1897
        %v1920 = vsub.f32 %v1806, %v1900
        %v1921 = vsub.f32 %v1832, %v1903
        %v1922 = vsub.f32 %v1835, %v1906
        %v1923 = vsub.f32 %v1861, %v1909
        %v1924 = vsub.f32 %v1864, %v1912
        %v1925 = vsub.f32 %v1890, %v1915
        %v1926 = vsub.f32 %v1893, %v1918
        %v1927 = vmul.f32 %v1919, 1.442695
        %v1928 = vpow.pop %v1927
        %v1929 = vmul.f32 %v1920, 1.442695
        %v1930 = vpow.pop %v1929
        %v1931 = vmul.f32 %v1921, 1.442695
        %v1932 = vpow.pop %v1931
        %v1933 = vmul.f32 %v1922, 1.442695
        %v1934 = vpow.pop %v1933
        %v1935 = vmul.f32 %v1923, 1.442695
        %v1936 = vpow.pop %v1935
        %v1937 = vmul.f32 %v1924, 1.442695
        %v1938 = vpow.pop %v1937
        %v1939 = vmul.f32 %v1925, 1.442695
        %v1940 = vpow.pop %v1939
        %v1941 = vmul.f32 %v1926, 1.442695
        %v1942 = vpow.pop %v1941
        %v1943 = vsel %vm1024, %v1928, 0.0
        %1944 = vadd.xlane.f32.xlu0 %v1943
        %v1945 = vpop.xlane.xlu0 %1944
        %v1946 = vsel %vm1024, %v1930, 0.0
        %1947 = vadd.xlane.f32.xlu0 %v1946
        %v1948 = vpop.xlane.xlu0 %1947
        %v1949 = vsel %vm1024, %v1932, 0.0
        %1950 = vadd.xlane.f32.xlu0 %v1949
        %v1951 = vpop.xlane.xlu0 %1950
        %v1952 = vsel %vm1024, %v1934, 0.0
        %1953 = vadd.xlane.f32.xlu0 %v1952
        %v1954 = vpop.xlane.xlu0 %1953
        %v1955 = vsel %vm1024, %v1936, 0.0
        %1956 = vadd.xlane.f32.xlu0 %v1955
        %v1957 = vpop.xlane.xlu0 %1956
        %v1958 = vsel %vm1024, %v1938, 0.0
        %1959 = vadd.xlane.f32.xlu0 %v1958
        %v1960 = vpop.xlane.xlu0 %1959
        %v1961 = vsel %vm1024, %v1940, 0.0
        %1962 = vadd.xlane.f32.xlu0 %v1961
        %v1963 = vpop.xlane.xlu0 %1962
        %v1964 = vsel %vm1024, %v1942, 0.0
        %1965 = vadd.xlane.f32.xlu0 %v1964
        %v1966 = vpop.xlane.xlu0 %1965
        %v1967 = vrcp.pop %v1945
        %v1968 = vmul.f32 %v1945, %v1967
        %v1969 = vsub.f32 1.0, %v1968
        %v1970 = vmul.f32 %v1967, %v1969
        %v1971 = vadd.f32 %v1967, %v1970
        %vm1972 = vweird.f32 %v1945
        %vm1973 = vweird.f32 %v1967
        %vm1974 = vmor %vm1972, %vm1973
        %v1975 = vsel %vm1974, %v1967, %v1971
        %v1976 = vand.u32 2147483647, %v1945
        %vm1977 = vcmp.eq.f32.partialorder %v1976, 8.507059e+37
        %v1978 = vand.u32 %v1945, 2147483648
        %v1979 = vor.u32 1.1754944e-38, %v1978
        %v1980 = vsel %vm1977, %v1979, %v1975
        %v1981 = vmul.f32 1.0, %v1980
        %v1982 = vrcp.pop %v1948
        %v1983 = vmul.f32 %v1948, %v1982
        %v1984 = vsub.f32 1.0, %v1983
        %v1985 = vmul.f32 %v1982, %v1984
        %v1986 = vadd.f32 %v1982, %v1985
        %vm1987 = vweird.f32 %v1948
        %vm1988 = vweird.f32 %v1982
        %vm1989 = vmor %vm1987, %vm1988
        %v1990 = vsel %vm1989, %v1982, %v1986
        %v1991 = vand.u32 2147483647, %v1948
        %vm1992 = vcmp.eq.f32.partialorder %v1991, 8.507059e+37
        %v1993 = vand.u32 %v1948, 2147483648
        %v1994 = vor.u32 1.1754944e-38, %v1993
        %v1995 = vsel %vm1992, %v1994, %v1990
        %v1996 = vmul.f32 1.0, %v1995
        %v1997 = vrcp.pop %v1951
        %v1998 = vmul.f32 %v1951, %v1997
        %v1999 = vsub.f32 1.0, %v1998
        %v2000 = vmul.f32 %v1997, %v1999
        %v2001 = vadd.f32 %v1997, %v2000
        %vm2002 = vweird.f32 %v1951
        %vm2003 = vweird.f32 %v1997
        %vm2004 = vmor %vm2002, %vm2003
        %v2005 = vsel %vm2004, %v1997, %v2001
        %v2006 = vand.u32 2147483647, %v1951
        %vm2007 = vcmp.eq.f32.partialorder %v2006, 8.507059e+37
        %v2008 = vand.u32 %v1951, 2147483648
        %v2009 = vor.u32 1.1754944e-38, %v2008
        %v2010 = vsel %vm2007, %v2009, %v2005
        %v2011 = vmul.f32 1.0, %v2010
        %v2012 = vrcp.pop %v1954
        %v2013 = vmul.f32 %v1954, %v2012
        %v2014 = vsub.f32 1.0, %v2013
        %v2015 = vmul.f32 %v2012, %v2014
        %v2016 = vadd.f32 %v2012, %v2015
        %vm2017 = vweird.f32 %v1954
        %vm2018 = vweird.f32 %v2012
        %vm2019 = vmor %vm2017, %vm2018
        %v2020 = vsel %vm2019, %v2012, %v2016
        %v2021 = vand.u32 2147483647, %v1954
        %vm2022 = vcmp.eq.f32.partialorder %v2021, 8.507059e+37
        %v2023 = vand.u32 %v1954, 2147483648
        %v2024 = vor.u32 1.1754944e-38, %v2023
        %v2025 = vsel %vm2022, %v2024, %v2020
        %v2026 = vmul.f32 1.0, %v2025
        %v2027 = vrcp.pop %v1957
        %v2028 = vmul.f32 %v1957, %v2027
        %v2029 = vsub.f32 1.0, %v2028
        %v2030 = vmul.f32 %v2027, %v2029
        %v2031 = vadd.f32 %v2027, %v2030
        %vm2032 = vweird.f32 %v1957
        %vm2033 = vweird.f32 %v2027
        %vm2034 = vmor %vm2032, %vm2033
        %v2035 = vsel %vm2034, %v2027, %v2031
        %v2036 = vand.u32 2147483647, %v1957
        %vm2037 = vcmp.eq.f32.partialorder %v2036, 8.507059e+37
        %v2038 = vand.u32 %v1957, 2147483648
        %v2039 = vor.u32 1.1754944e-38, %v2038
        %v2040 = vsel %vm2037, %v2039, %v2035
        %v2041 = vmul.f32 1.0, %v2040
        %v2042 = vrcp.pop %v1960
        %v2043 = vmul.f32 %v1960, %v2042
        %v2044 = vsub.f32 1.0, %v2043
        %v2045 = vmul.f32 %v2042, %v2044
        %v2046 = vadd.f32 %v2042, %v2045
        %vm2047 = vweird.f32 %v1960
        %vm2048 = vweird.f32 %v2042
        %vm2049 = vmor %vm2047, %vm2048
        %v2050 = vsel %vm2049, %v2042, %v2046
        %v2051 = vand.u32 2147483647, %v1960
        %vm2052 = vcmp.eq.f32.partialorder %v2051, 8.507059e+37
        %v2053 = vand.u32 %v1960, 2147483648
        %v2054 = vor.u32 1.1754944e-38, %v2053
        %v2055 = vsel %vm2052, %v2054, %v2050
        %v2056 = vmul.f32 1.0, %v2055
        %v2057 = vrcp.pop %v1963
        %v2058 = vmul.f32 %v1963, %v2057
        %v2059 = vsub.f32 1.0, %v2058
        %v2060 = vmul.f32 %v2057, %v2059
        %v2061 = vadd.f32 %v2057, %v2060
        %vm2062 = vweird.f32 %v1963
        %vm2063 = vweird.f32 %v2057
        %vm2064 = vmor %vm2062, %vm2063
        %v2065 = vsel %vm2064, %v2057, %v2061
        %v2066 = vand.u32 2147483647, %v1963
        %vm2067 = vcmp.eq.f32.partialorder %v2066, 8.507059e+37
        %v2068 = vand.u32 %v1963, 2147483648
        %v2069 = vor.u32 1.1754944e-38, %v2068
        %v2070 = vsel %vm2067, %v2069, %v2065
        %v2071 = vmul.f32 1.0, %v2070
        %v2072 = vrcp.pop %v1966
        %v2073 = vmul.f32 %v1966, %v2072
        %v2074 = vsub.f32 1.0, %v2073
        %v2075 = vmul.f32 %v2072, %v2074
        %v2076 = vadd.f32 %v2072, %v2075
        %vm2077 = vweird.f32 %v1966
        %vm2078 = vweird.f32 %v2072
        %vm2079 = vmor %vm2077, %vm2078
        %v2080 = vsel %vm2079, %v2072, %v2076
        %v2081 = vand.u32 2147483647, %v1966
        %vm2082 = vcmp.eq.f32.partialorder %v2081, 8.507059e+37
        %v2083 = vand.u32 %v1966, 2147483648
        %v2084 = vor.u32 1.1754944e-38, %v2083
        %v2085 = vsel %vm2082, %v2084, %v2080
        %v2086 = vmul.f32 1.0, %v2085
        %v2087 = vmul.f32 %v1928, %v1981
        %v2088 = vmul.f32 %v1930, %v1996
        %v2089 = vmul.f32 %v1932, %v2011
        %v2090 = vmul.f32 %v1934, %v2026
        %v2091 = vmul.f32 %v1936, %v2041
        %v2092 = vmul.f32 %v1938, %v2056
        %v2093 = vmul.f32 %v1940, %v2071
        %v2094 = vmul.f32 %v1942, %v2086
        %v2096 = vsel %vm1024, %v2087, 0
        %v2099 = vsel %vm1024, %v2088, 0
        %2101 = vmatpush.msra.mxu0 0.0
        %2102 = vmatpush.msra.mxu0 0.0
        %2103 = vmatpush.msra.mxu0 0.0
        %2104 = vmatpush.msra.mxu0 0.0
        %2105 = vmatpush.msra.mxu0 0.0
        %2106 = vmatpush.msra.mxu0 0.0
        %2107 = vmatpush.msra.mxu0 0.0
        %2108 = vmatpush.msra.mxu0 0.0
        %2109 = vmatpush.msra.mxu0 0.0
        %2110 = vmatpush.msra.mxu0 0.0
        %2111 = vmatpush.msra.mxu0 0.0
        %2112 = vmatpush.msra.mxu0 0.0
        %2113 = vmatpush.msra.mxu0 0.0
        %2114 = vmatpush.msra.mxu0 0.0
        %2115 = vmatpush.msra.mxu0 0.0
        %2116 = vmatpush.msra.mxu0 %v1746
        %2117 = vmatmul.f32.gmra.mxu0 %v2096
        %v2118 = vpop.f32.mrf.mxu0
        %v2119 = vadd.f32 0.0, %v2118
        %2120 = vmatmul.f32.gmra.mxu0 %v2099
        %v2121 = vpop.f32.mrf.mxu0
        %v2122 = vadd.f32 0.0, %v2121
        %2123 = vdwg.mxu0
        %v2125 = vsel %vm1024, %v2089, 0
        %v2128 = vsel %vm1024, %v2090, 0
        %2130 = vmatpush.msra.mxu0 0.0
        %2131 = vmatpush.msra.mxu0 0.0
        %2132 = vmatpush.msra.mxu0 0.0
        %2133 = vmatpush.msra.mxu0 0.0
        %2134 = vmatpush.msra.mxu0 0.0
        %2135 = vmatpush.msra.mxu0 0.0
        %2136 = vmatpush.msra.mxu0 0.0
        %2137 = vmatpush.msra.mxu0 0.0
        %2138 = vmatpush.msra.mxu0 0.0
        %2139 = vmatpush.msra.mxu0 0.0
        %2140 = vmatpush.msra.mxu0 0.0
        %2141 = vmatpush.msra.mxu0 0.0
        %2142 = vmatpush.msra.mxu0 0.0
        %2143 = vmatpush.msra.mxu0 0.0
        %2144 = vmatpush.msra.mxu0 0.0
        %2145 = vmatpush.msra.mxu0 %v1771
        %2146 = vmatmul.f32.gmra.mxu0 %v2125
        %v2147 = vpop.f32.mrf.mxu0
        %v2148 = vadd.f32 0.0, %v2147
        %2149 = vmatmul.f32.gmra.mxu0 %v2128
        %v2150 = vpop.f32.mrf.mxu0
        %v2151 = vadd.f32 0.0, %v2150
        %2152 = vdwg.mxu0
        %v2154 = vsel %vm1024, %v2091, 0
        %v2157 = vsel %vm1024, %v2092, 0
        %2159 = vmatpush.msra.mxu0 0.0
        %2160 = vmatpush.msra.mxu0 0.0
        %2161 = vmatpush.msra.mxu0 0.0
        %2162 = vmatpush.msra.mxu0 0.0
        %2163 = vmatpush.msra.mxu0 0.0
        %2164 = vmatpush.msra.mxu0 0.0
        %2165 = vmatpush.msra.mxu0 0.0
        %2166 = vmatpush.msra.mxu0 0.0
        %2167 = vmatpush.msra.mxu0 0.0
        %2168 = vmatpush.msra.mxu0 0.0
        %2169 = vmatpush.msra.mxu0 0.0
        %2170 = vmatpush.msra.mxu0 0.0
        %2171 = vmatpush.msra.mxu0 0.0
        %2172 = vmatpush.msra.mxu0 0.0
        %2173 = vmatpush.msra.mxu0 0.0
        %2174 = vmatpush.msra.mxu0 %v1774
        %2175 = vmatmul.f32.gmra.mxu0 %v2154
        %v2176 = vpop.f32.mrf.mxu0
        %v2177 = vadd.f32 0.0, %v2176
        %2178 = vmatmul.f32.gmra.mxu0 %v2157
        %v2179 = vpop.f32.mrf.mxu0
        %v2180 = vadd.f32 0.0, %v2179
        %2181 = vdwg.mxu0
        %v2183 = vsel %vm1024, %v2093, 0
        %v2186 = vsel %vm1024, %v2094, 0
        %2188 = vmatpush.msra.mxu0 0.0
        %2189 = vmatpush.msra.mxu0 0.0
        %2190 = vmatpush.msra.mxu0 0.0
        %2191 = vmatpush.msra.mxu0 0.0
        %2192 = vmatpush.msra.mxu0 0.0
        %2193 = vmatpush.msra.mxu0 0.0
        %2194 = vmatpush.msra.mxu0 0.0
        %2195 = vmatpush.msra.mxu0 0.0
        %2196 = vmatpush.msra.mxu0 0.0
        %2197 = vmatpush.msra.mxu0 0.0
        %2198 = vmatpush.msra.mxu0 0.0
        %2199 = vmatpush.msra.mxu0 0.0
        %2200 = vmatpush.msra.mxu0 0.0
        %2201 = vmatpush.msra.mxu0 0.0
        %2202 = vmatpush.msra.mxu0 0.0
        %2203 = vmatpush.msra.mxu0 %v1777
        %2204 = vmatmul.f32.gmra.mxu0 %v2183
        %v2205 = vpop.f32.mrf.mxu0
        %v2206 = vadd.f32 0.0, %v2205
        %2207 = vmatmul.f32.gmra.mxu0 %v2186
        %v2208 = vpop.f32.mrf.mxu0
        %v2209 = vadd.f32 0.0, %v2208
        %2210 = vdwg.mxu0
        %v2212 = vsel %vm1024, %v2119, 0
        %v2215 = vsel %vm1024, %v2122, 0
        %2217 = vmatpush.msra.mxu0 0.0
        %2218 = vmatpush.msra.mxu0 0.0
        %2219 = vmatpush.msra.mxu0 0.0
        %2220 = vmatpush.msra.mxu0 0.0
        %2221 = vmatpush.msra.mxu0 0.0
        %2222 = vmatpush.msra.mxu0 0.0
        %2223 = vmatpush.msra.mxu0 0.0
        %2224 = vmatpush.msra.mxu0 0.0
        %2225 = vmatpush.msra.mxu0 0.0
        %2226 = vmatpush.msra.mxu0 0.0
        %2227 = vmatpush.msra.mxu0 0.0
        %2228 = vmatpush.msra.mxu0 0.0
        %2229 = vmatpush.msra.mxu0 0.0
        %2230 = vmatpush.msra.mxu0 0.0
        %2231 = vmatpush.msra.mxu0 0.0
        %2232 = vmatpush.msra.mxu0 %v1670
        %2233 = vmatmul.f32.gmra.mxu0 %v2212
        %v2234 = vpop.f32.mrf.mxu0
        %v2235 = vadd.f32 0.0, %v2234
        %2236 = vmatmul.f32.gmra.mxu0 %v2215
        %v2237 = vpop.f32.mrf.mxu0
        %v2238 = vadd.f32 0.0, %v2237
        %2239 = vdwg.mxu0
        %v2241 = vsel %vm1024, %v2148, 0
        %v2244 = vsel %vm1024, %v2151, 0
        %2246 = vmatpush.msra.mxu0 0.0
        %2247 = vmatpush.msra.mxu0 0.0
        %2248 = vmatpush.msra.mxu0 0.0
        %2249 = vmatpush.msra.mxu0 0.0
        %2250 = vmatpush.msra.mxu0 0.0
        %2251 = vmatpush.msra.mxu0 0.0
        %2252 = vmatpush.msra.mxu0 0.0
        %2253 = vmatpush.msra.mxu0 0.0
        %2254 = vmatpush.msra.mxu0 0.0
        %2255 = vmatpush.msra.mxu0 0.0
        %2256 = vmatpush.msra.mxu0 0.0
        %2257 = vmatpush.msra.mxu0 0.0
        %2258 = vmatpush.msra.mxu0 0.0
        %2259 = vmatpush.msra.mxu0 0.0
        %2260 = vmatpush.msra.mxu0 0.0
        %2261 = vmatpush.msra.mxu0 %v1671
        %2262 = vmatmul.f32.gmra.mxu0 %v2241
        %v2263 = vpop.f32.mrf.mxu0
        %v2264 = vadd.f32 0.0, %v2263
        %2265 = vmatmul.f32.gmra.mxu0 %v2244
        %v2266 = vpop.f32.mrf.mxu0
        %v2267 = vadd.f32 0.0, %v2266
        %2268 = vdwg.mxu0
        %v2270 = vsel %vm1024, %v2177, 0
        %v2273 = vsel %vm1024, %v2180, 0
        %2275 = vmatpush.msra.mxu0 0.0
        %2276 = vmatpush.msra.mxu0 0.0
        %2277 = vmatpush.msra.mxu0 0.0
        %2278 = vmatpush.msra.mxu0 0.0
        %2279 = vmatpush.msra.mxu0 0.0
        %2280 = vmatpush.msra.mxu0 0.0
        %2281 = vmatpush.msra.mxu0 0.0
        %2282 = vmatpush.msra.mxu0 0.0
        %2283 = vmatpush.msra.mxu0 0.0
        %2284 = vmatpush.msra.mxu0 0.0
        %2285 = vmatpush.msra.mxu0 0.0
        %2286 = vmatpush.msra.mxu0 0.0
        %2287 = vmatpush.msra.mxu0 0.0
        %2288 = vmatpush.msra.mxu0 0.0
        %2289 = vmatpush.msra.mxu0 0.0
        %2290 = vmatpush.msra.mxu0 %v1672
        %2291 = vmatmul.f32.gmra.mxu0 %v2270
        %v2292 = vpop.f32.mrf.mxu0
        %v2293 = vadd.f32 0.0, %v2292
        %2294 = vmatmul.f32.gmra.mxu0 %v2273
        %v2295 = vpop.f32.mrf.mxu0
        %v2296 = vadd.f32 0.0, %v2295
        %2297 = vdwg.mxu0
        %v2299 = vsel %vm1024, %v2206, 0
        %v2302 = vsel %vm1024, %v2209, 0
        %2304 = vmatpush.msra.mxu0 0.0
        %2305 = vmatpush.msra.mxu0 0.0
        %2306 = vmatpush.msra.mxu0 0.0
        %2307 = vmatpush.msra.mxu0 0.0
        %2308 = vmatpush.msra.mxu0 0.0
        %2309 = vmatpush.msra.mxu0 0.0
        %2310 = vmatpush.msra.mxu0 0.0
        %2311 = vmatpush.msra.mxu0 0.0
        %2312 = vmatpush.msra.mxu0 0.0
        %2313 = vmatpush.msra.mxu0 0.0
        %2314 = vmatpush.msra.mxu0 0.0
        %2315 = vmatpush.msra.mxu0 0.0
        %2316 = vmatpush.msra.mxu0 0.0
        %2317 = vmatpush.msra.mxu0 0.0
        %2318 = vmatpush.msra.mxu0 0.0
        %2319 = vmatpush.msra.mxu0 %v1673
        %2320 = vmatmul.f32.gmra.mxu0 %v2299
        %v2321 = vpop.f32.mrf.mxu0
        %v2322 = vadd.f32 0.0, %v2321
        %2323 = vmatmul.f32.gmra.mxu0 %v2302
        %v2324 = vpop.f32.mrf.mxu0
        %v2325 = vadd.f32 0.0, %v2324
        %2326 = vdwg.mxu0
        %v2327 = vsel %vm822, %v2235, 0.0
        %v2328 = vsel %vm822, %v2264, 0.0
        %v2329 = vadd.f32 %v2327, %v2328
        %v2330 = vsel %vm822, %v2293, 0.0
        %v2331 = vadd.f32 %v2329, %v2330
        %v2332 = vsel %vm822, %v2322, 0.0
        %v2333 = vadd.f32 %v2331, %v2332
        %v2334 = vsel %vm822, %v2238, 0.0
        %v2335 = vsel %vm822, %v2267, 0.0
        %v2336 = vadd.f32 %v2334, %v2335
        %v2337 = vsel %vm822, %v2296, 0.0
        %v2338 = vadd.f32 %v2336, %v2337
        %v2339 = vsel %vm822, %v2325, 0.0
        %v2340 = vadd.f32 %v2338, %v2339
        %v2342 = vperm.slane %v1674, 0
        %v2344 = vadd.f32 %v2333, %v2342
        %v2345 = vadd.f32 %v2340, %v2342
        %v2346 = vadd.f32 %v1601, %v2344
        %v2347 = vadd.f32 %v1602, %v2345
        %v2348 = vld [vmem:[%s16] sm:$0x1]
        %v2349 = vld [vmem:[%s17] sm:$0x1]
        %v2350 = vsel %vm822, %v2346, 0.0
        %2351 = vadd.xlane.f32.xlu0 %v2350
        %v2352 = vpop.xlane.xlu0 %2351
        %v2353 = vsel %vm822, %v2347, 0.0
        %2354 = vadd.xlane.f32.xlu0 %v2353
        %v2355 = vpop.xlane.xlu0 %2354
        %v2356 = vmul.f32 %v2352, %v835
        %v2357 = vmul.f32 %v2355, %v835
        %v2358 = vsub.f32 %v2346, %v2356
        %v2359 = vsub.f32 %v2347, %v2357
        %v2360 = vmul.f32 %v2358, %v2358
        %v2361 = vmul.f32 %v2359, %v2359
        %v2362 = vsel %vm822, %v2360, 0.0
        %2363 = vadd.xlane.f32.xlu0 %v2362
        %v2364 = vpop.xlane.xlu0 %2363
        %v2365 = vsel %vm822, %v2361, 0.0
        %2366 = vadd.xlane.f32.xlu0 %v2365
        %v2367 = vpop.xlane.xlu0 %2366
        %v2368 = vmul.f32 %v2364, %v835
        %v2369 = vmul.f32 %v2367, %v835
        %v2370 = vadd.f32 %v2368, 1e-05
        %v2371 = vadd.f32 %v2369, 1e-05
        %v2372 = vrsqrt.pop %v2370
        %v2373 = vmul.f32 %v2372, %v2370
        %v2374 = vmul.f32 %v2373, %v2372
        %v2375 = vmul.f32 0.5, %v2374
        %v2376 = vsub.f32 1.5, %v2375
        %v2377 = vmul.f32 %v2372, %v2376
        %vm2378 = vweird.f32 %v2370
        %vm2379 = vweird.f32 %v2372
        %vm2380 = vmor %vm2378, %vm2379
        %v2381 = vsel %vm2380, %v2372, %v2377
        %v2382 = vrsqrt.pop %v2371
        %v2383 = vmul.f32 %v2382, %v2371
        %v2384 = vmul.f32 %v2383, %v2382
        %v2385 = vmul.f32 0.5, %v2384
        %v2386 = vsub.f32 1.5, %v2385
        %v2387 = vmul.f32 %v2382, %v2386
        %vm2388 = vweird.f32 %v2371
        %vm2389 = vweird.f32 %v2382
        %vm2390 = vmor %vm2388, %vm2389
        %v2391 = vsel %vm2390, %v2382, %v2387
        %v2392 = vmul.f32 %v2358, %v2381
        %v2393 = vmul.f32 %v2359, %v2391
        %v2395 = vperm.slane %v2348, 0
        %v2397 = vmul.f32 %v2392, %v2395
        %v2398 = vmul.f32 %v2393, %v2395
        %v2400 = vperm.slane %v2349, 0
        %v2402 = vadd.f32 %v2397, %v2400
        %v2403 = vadd.f32 %v2398, %v2400
        %v2404 = vld [vmem:[#allocation13] sm:$0xff]
        %v2405 = vld [vmem:[#allocation13 + $0x8] sm:$0xff]
        %v2406 = vld [vmem:[#allocation13 + $0x10] sm:$0xff]
        %v2407 = vld [vmem:[#allocation13 + $0x18] sm:$0xff]
        %v2408 = vld [vmem:[%s19] sm:$0x1]
        %v2410 = vperm.slane %v2408, 0
        %v2413 = vsel %vm822, %v2402, 0
        %v2416 = vsel %vm822, %v2403, 0
        %2418 = vmatpush.msra.mxu0 0.0
        %2419 = vmatpush.msra.mxu0 0.0
        %2420 = vmatpush.msra.mxu0 0.0
        %2421 = vmatpush.msra.mxu0 0.0
        %2422 = vmatpush.msra.mxu0 0.0
        %2423 = vmatpush.msra.mxu0 0.0
        %2424 = vmatpush.msra.mxu0 0.0
        %2425 = vmatpush.msra.mxu0 0.0
        %2426 = vmatpush.msra.mxu0 0.0
        %2427 = vmatpush.msra.mxu0 0.0
        %2428 = vmatpush.msra.mxu0 0.0
        %2429 = vmatpush.msra.mxu0 0.0
        %2430 = vmatpush.msra.mxu0 %v2407
        %2431 = vmatpush.msra.mxu0 %v2406
        %2432 = vmatpush.msra.mxu0 %v2405
        %2433 = vmatpush.msra.mxu0 %v2404
        %2434 = vmatmul.f32.gmra.mxu0 %v2413
        %v2435 = vpop.f32.mrf.mxu0
        %v2436 = vadd.f32 %v2410, %v2435
        %2437 = vmatmul.f32.gmra.mxu0 %v2416
        %v2438 = vpop.f32.mrf.mxu0
        %v2439 = vadd.f32 %v2410, %v2438
        %2440 = vdwg.mxu0
        %v2441 = vmul.f32 %v2436, 0.5
        %v2442 = vmul.f32 %v2439, 0.5
        %v2443 = vmul.f32 %v2436, %v2436
        %v2444 = vmul.f32 %v2439, %v2439
        %v2445 = vmul.f32 %v2443, %v2436
        %v2446 = vmul.f32 %v2444, %v2439
        %v2447 = vmul.f32 %v2445, 0.044715
        %v2448 = vmul.f32 %v2446, 0.044715
        %v2449 = vadd.f32 %v2436, %v2447
        %v2450 = vadd.f32 %v2439, %v2448
        %v2451 = vmul.f32 %v2449, 0.7978846
        %v2452 = vmul.f32 %v2450, 0.7978846
        %v2453 = vtanh.pop %v2451
        %v2454 = vtanh.pop %v2452
        %v2455 = vadd.f32 %v2453, 1.0
        %v2456 = vadd.f32 %v2454, 1.0
        %v2457 = vmul.f32 %v2441, %v2455
        %v2458 = vmul.f32 %v2442, %v2456
        %v2459 = vld [vmem:[%s20] sm:$0xff]
        %v2460 = vld [vmem:[%s20 + $0x8] sm:$0xff]
        %v2461 = vld [vmem:[%s20 + $0x10] sm:$0xff]
        %v2462 = vld [vmem:[%s20 + $0x18] sm:$0xff]
        %v2463 = vld [vmem:[%s20 + $0x20] sm:$0xff]
        %v2464 = vld [vmem:[%s20 + $0x28] sm:$0xff]
        %v2465 = vld [vmem:[%s20 + $0x30] sm:$0xff]
        %v2466 = vld [vmem:[%s20 + $0x38] sm:$0xff]
        %v2467 = vld [vmem:[%s20 + $0x40] sm:$0xff]
        %v2468 = vld [vmem:[%s20 + $0x48] sm:$0xff]
        %v2469 = vld [vmem:[%s20 + $0x50] sm:$0xff]
        %v2470 = vld [vmem:[%s20 + $0x58] sm:$0xff]
        %v2471 = vld [vmem:[%s20 + $0x60] sm:$0xff]
        %v2472 = vld [vmem:[%s20 + $0x68] sm:$0xff]
        %v2473 = vld [vmem:[%s20 + $0x70] sm:$0xff]
        %v2474 = vld [vmem:[%s20 + $0x78] sm:$0xff]
        %2475 = vmatpush.msra.mxu0 %v2474
        %2476 = vmatpush.msra.mxu0 %v2473
        %2477 = vmatpush.msra.mxu0 %v2472
        %2478 = vmatpush.msra.mxu0 %v2471
        %2479 = vmatpush.msra.mxu0 %v2470
        %2480 = vmatpush.msra.mxu0 %v2469
        %2481 = vmatpush.msra.mxu0 %v2468
        %2482 = vmatpush.msra.mxu0 %v2467
        %2483 = vmatpush.msra.mxu0 %v2466
        %2484 = vmatpush.msra.mxu0 %v2465
        %2485 = vmatpush.msra.mxu0 %v2464
        %2486 = vmatpush.msra.mxu0 %v2463
        %2487 = vmatpush.msra.mxu0 %v2462
        %2488 = vmatpush.msra.mxu0 %v2461
        %2489 = vmatpush.msra.mxu0 %v2460
        %2490 = vmatpush.msra.mxu0 %v2459
        %2491 = vmatmul.f32.gmra.mxu0 %v2457
        %v2492 = vpop.f32.mrf.mxu0
        %v2493 = vadd.f32 0.0, %v2492
        %2494 = vmatmul.f32.gmra.mxu0 %v2458
        %v2495 = vpop.f32.mrf.mxu0
        %v2496 = vadd.f32 0.0, %v2495
        %2497 = vdwg.mxu0
        %v2498 = vadd.f32 %v2346, %v2493
        %v2499 = vadd.f32 %v2347, %v2496
        %v2500 = vld [vmem:[%s21] sm:$0x1]
        %v2502 = vperm.slane %v2500, 0
        %v2504 = vadd.f32 %v2498, %v2502
        %v2505 = vadd.f32 %v2499, %v2502
        %2506 = vst.msk [vmem:[%s812] sm:$0xff] %vm822, %v2504
        %2507 = vst.msk [vmem:[%s812 + $0x8] sm:$0xff] %vm822, %v2505
        %s2508 = sand.u32 %s522, 1
        %s2509 = scalar_lea.sflag [#allocation4], %s2508
        %s2510 = sand.u32 %s522, 1
        %s2511 = smul.addr %s2510, 16
        %s2512 = scalar_lea.vmem [#allocation14], %s2511
        // Predicated region
        $region137: #{tpu_custom_call.1} parent=107 // pred_check
          %p2513 = pneg %p532
        $region138: #{tpu_custom_call.1} parent=107 // pred_check_branch
          %2515 = sbr.rel (%p2513) target = $region140
        $region139: #{tpu_custom_call.1} parent=107 // pred_region
          %2517 = vsyncadd %s2509, 0
          %s2518 = smul.addr %s42, 2
          %s2519 = smul.addr %s2518, 8
          %s2520 = scalar_lea.hbm %s22, %s2519
          %s2521 = sshll.u32 %s2512, 4
          %s2522 = int_to_ptr.vmem [resolvable:$true] %s2521
          %s2523 = sshll.u32 %s2520, 4
          %s2524 = int_to_ptr.hbm [resolvable:$true] %s2523
          %2529 = dma.vmem_to_hbm [thread:$0]  %s2522, 256, %s2524, %s2509, 128, 128, 8
        $region140: #{tpu_custom_call.1} parent=107 // pred_fallthru
          _
      $region108: #{tpu_custom_call.1} parent=5 // pred_fallthru
        _
      %p2530 = scmp.le.s32.totalorder 2, %s37
      // Predicated region
      $region141: #{tpu_custom_call.1} parent=5 // pred_check
        %p2531 = pneg %p2530
      $region142: #{tpu_custom_call.1} parent=5 // pred_check_branch
        %2533 = sbr.rel (%p2531) target = $region144
      $region143: #{tpu_custom_call.1} parent=5 // pred_region
        %s2534 = ssub.s32 %s37, 2
        // Predicated region
        $region145: #{tpu_custom_call.1} parent=143 // pred_check
          %p2535 = pneg %p538
        $region146: #{tpu_custom_call.1} parent=143 // pred_check_branch
          %2537 = sbr.rel (%p2535) target = $region148
        $region147: #{tpu_custom_call.1} parent=143 // pred_region
          %s2538 = sand.u32 %s523, 1
          %s2539 = scalar_lea.sflag [#allocation4], %s2538
          %s2540 = sand.u32 %s523, 1
          %s2541 = smul.addr %s2540, 16
          %s2542 = scalar_lea.vmem [#allocation14], %s2541
          %2544 = dma.done %s2539, 256
        $region148: #{tpu_custom_call.1} parent=143 // pred_fallthru
          _
      $region144: #{tpu_custom_call.1} parent=5 // pred_fallthru
        _
    $region6: #{tpu_custom_call.1} parent=1 // loop_footer
      %s41 = sadd.s32 1, %s37
    $region7: #{tpu_custom_call.1} parent=1 // loop_footer_branch
      %36 = sbr.rel target = $region3
    $region8: #{tpu_custom_call.1} parent=1 // loop_exit
      _
    %2545 = vsyncpa [#allocation3], 1
    %s2546 = scalar_lea.sflag [#allocation3], 1
    %2547 = vsyncpa %s2546, 1
    %2548 = vsyncpa [#allocation6], 1
    %2549 = vsyncpa [#allocation9], 1
    %2550 = vsyncpa [#allocation12], 1
    %2551 = vsyncpa [#allocation4], 1
    %s2552 = scalar_lea.sflag [#allocation4], 1
    %2553 = vsyncpa %s2552, 1

</llo_original>
